<compile_context>
chip_gen: v7x
topology: tpu7x:2x2x1
jax: 0.10.0
libtpu: 0.0.40
codegen_flags: <defaults>
</compile_context>

<pallas_src>
import math

import jax
import jax.numpy as jnp
from jax import lax
from jax.experimental import pallas as pl
from jax.experimental.pallas import tpu as pltpu


def _round_up(x, m):
    return (x + m - 1) // m * m


# --------------------------------------------------------------------------
# Fused kernel: all GRU layers + final Linear in one pallas_call
# --------------------------------------------------------------------------
def _make_fused_gru_fc_kernel(num_layers, T, Bp, H):
    """Build a kernel closure for fixed (num_layers, T, padded batch Bp, H)."""

    def kernel(*refs):
        # ---- unpack (inputs..., output, scratches...) ---------------------
        i = 0
        x_ref = refs[i]; i += 1                         # (T*Bp, D0)  bf16
        layer_refs = []
        for _ in range(num_layers):
            layer_refs.append(refs[i:i + 8]); i += 8
        fcw_ref = refs[i]; i += 1                       # (H, O)  bf16
        fcb_ref = refs[i]; i += 1                       # (1, O)  f32
        out_ref = refs[i]; i += 1                       # (Bp, O) f32
        gi_r_scr = refs[i]; i += 1                      # (T*Bp, H) f32
        gi_z_scr = refs[i]; i += 1                      # (T*Bp, H) f32
        gi_n_scr = refs[i]; i += 1                      # (T*Bp, H) f32
        hs_scr = refs[i]; i += 1                        # (T*Bp, H) f32 inter-layer h-seq

        h_last = None
        for l in range(num_layers):
            (wih_ref, u_r_ref, u_z_ref, u_n_ref,
             b_r_ref, b_z_ref, b_in_ref, b_hn_ref) = layer_refs[l]

            # ---- hoisted input projection: one GEMM over ALL timesteps ----
            inp = x_ref[...] if l == 0 else hs_scr[...].astype(jnp.bfloat16)
            gi = jnp.dot(inp, wih_ref[...],
                         preferred_element_type=jnp.float32)     # (T*Bp, 3H)
            # split per gate ONCE (outside the serial loop), fold biases,
            # and park each gate in its own lane-aligned scratch.
            gi_r_scr[...] = gi[:, 0 * H:1 * H] + b_r_ref[...]    # b_ih_r + b_hh_r
            gi_z_scr[...] = gi[:, 1 * H:2 * H] + b_z_ref[...]    # b_ih_z + b_hh_z
            gi_n_scr[...] = gi[:, 2 * H:3 * H] + b_in_ref[...]   # b_ih_n only

            u_r = u_r_ref[...]                                   # (H, H) bf16
            u_z = u_z_ref[...]
            u_n = u_n_ref[...]
            b_hn = b_hn_ref[...]                                 # (1, H) f32
            write_seq = l < num_layers - 1   # last layer only needs final h

            def step(t, h):
                base = pl.multiple_of(t * Bp, Bp)
                h_bf = h.astype(jnp.bfloat16)
                gh_r = jnp.dot(h_bf, u_r, preferred_element_type=jnp.float32)
                gh_z = jnp.dot(h_bf, u_z, preferred_element_type=jnp.float32)
                gh_n = jnp.dot(h_bf, u_n, preferred_element_type=jnp.float32)
                r = jax.nn.sigmoid(gi_r_scr[pl.ds(base, Bp), :] + gh_r)
                z = jax.nn.sigmoid(gi_z_scr[pl.ds(base, Bp), :] + gh_z)
                n = jnp.tanh(gi_n_scr[pl.ds(base, Bp), :] + r * (gh_n + b_hn))
                h_new = (1.0 - z) * n + z * h
                if write_seq:
                    hs_scr[pl.ds(base, Bp), :] = h_new
                return h_new

            h0 = jnp.zeros((Bp, H), jnp.float32)
            h_last = lax.fori_loop(0, T, step, h0, unroll=True)

        # ---- final Linear fused on the last hidden state -------------------
        out = (jnp.dot(h_last.astype(jnp.bfloat16), fcw_ref[...],
                       preferred_element_type=jnp.float32) + fcb_ref[...])
        out_ref[...] = out.astype(out_ref.dtype)

    return kernel


# --------------------------------------------------------------------------
# One-time weight preparation (pre-transpose / pre-split / pre-cast / fold bias)
# --------------------------------------------------------------------------
def prepare_kernel_params(params):
    layers = []
    for p in params["gru"]:
        w_ih = jnp.asarray(p["w_ih"], jnp.float32)    # (3H, D)
        w_hh = jnp.asarray(p["w_hh"], jnp.float32)    # (3H, H)
        b_ih = jnp.asarray(p["b_ih"], jnp.float32)    # (3H,)
        b_hh = jnp.asarray(p["b_hh"], jnp.float32)    # (3H,)
        H = w_hh.shape[1]
        layers.append(dict(
            wih_t=w_ih.T.astype(jnp.bfloat16),                     # (D, 3H)
            u_r=w_hh[0:H].T.astype(jnp.bfloat16),                  # (H, H)
            u_z=w_hh[H:2 * H].T.astype(jnp.bfloat16),              # (H, H)
            u_n=w_hh[2 * H:3 * H].T.astype(jnp.bfloat16),          # (H, H)
            b_r=(b_ih[0:H] + b_hh[0:H]).reshape(1, H),
            b_z=(b_ih[H:2 * H] + b_hh[H:2 * H]).reshape(1, H),
            b_in=b_ih[2 * H:3 * H].reshape(1, H),
            b_hn=b_hh[2 * H:3 * H].reshape(1, H),
        ))
    O = params["fc_w"].shape[0]
    return dict(
        layers=layers,
        fc_w_t=jnp.asarray(params["fc_w"], jnp.float32).T.astype(jnp.bfloat16),  # (H, O)
        fc_b=jnp.asarray(params["fc_b"], jnp.float32).reshape(1, O),
    )


# --------------------------------------------------------------------------
# Forward wrapper (equivalent of GRU.forward with batch_first x)
# --------------------------------------------------------------------------
def gru_model_forward(x, kparams):
    B, T, D = x.shape
    layers = kparams["layers"]
    H = layers[0]["u_r"].shape[0]
    O = kparams["fc_b"].shape[1]
    L = len(layers)
    Bp = max(8, _round_up(B, 8))          # pad batch to >= 8 sublanes

    # batch-first -> time-major, pad batch, flatten (T, Bp) rows, cast bf16.
    x_tm = jnp.transpose(x, (1, 0, 2)).astype(jnp.float32)          # (T, B, D)
    x_tm = jnp.pad(x_tm, ((0, 0), (0, Bp - B), (0, 0)))             # (T, Bp, D)
    x2d = x_tm.reshape(T * Bp, D).astype(jnp.bfloat16)              # (T*Bp, D)

    args = [x2d]
    for lp in layers:
        args += [lp["wih_t"], lp["u_r"], lp["u_z"], lp["u_n"],
                 lp["b_r"], lp["b_z"], lp["b_in"], lp["b_hn"]]
    args += [kparams["fc_w_t"], kparams["fc_b"]]

    # Small shapes: everything (inputs, weights, inter-layer hidden sequence)
    # is resident in VMEM for a single kernel invocation.
    # TODO(synk): for large T/H, chunk the time axis with a grid and shard the
    # (padded) batch across v7x's two TensorCores via dimension_semantics.
    out = pl.pallas_call(
        _make_fused_gru_fc_kernel(L, T, Bp, H),
        out_shape=jax.ShapeDtypeStruct((Bp, O), jnp.float32),
        scratch_shapes=[
            pltpu.VMEM((T * Bp, H), jnp.float32),   # gi_r
            pltpu.VMEM((T * Bp, H), jnp.float32),   # gi_z
            pltpu.VMEM((T * Bp, H), jnp.float32),   # gi_n
            pltpu.VMEM((T * Bp, H), jnp.float32),   # inter-layer hidden sequence
        ],
    )(*args)
    return out[:B]


# --------------------------------------------------------------------------
# Deterministic parameter init (mirrors PyTorch uniform(-1/sqrt(H), 1/sqrt(H)))
# --------------------------------------------------------------------------
def init_params(key, input_dim, hidden_dim, num_layers, output_dim):
    params = {"gru": []}
    k = 1.0 / math.sqrt(hidden_dim)
    for l in range(num_layers):
        d_in = input_dim if l == 0 else hidden_dim
        key, k1, k2, k3, k4 = jax.random.split(key, 5)
        params["gru"].append(dict(
            w_ih=jax.random.uniform(k1, (3 * hidden_dim, d_in), jnp.float32, -k, k),
            w_hh=jax.random.uniform(k2, (3 * hidden_dim, hidden_dim), jnp.float32, -k, k),
            b_ih=jax.random.uniform(k3, (3 * hidden_dim,), jnp.float32, -k, k),
            b_hh=jax.random.uniform(k4, (3 * hidden_dim,), jnp.float32, -k, k),
        ))
    key, kf1, kf2 = jax.random.split(key, 3)
    params["fc_w"] = jax.random.uniform(kf1, (output_dim, hidden_dim),
                                        jnp.float32, -k, k)
    params["fc_b"] = jax.random.uniform(kf2, (output_dim,), jnp.float32, -k, k)
    return params


# --------------------------------------------------------------------------
# Pure-JAX f32 reference (PyTorch GRU semantics) for the correctness check
# --------------------------------------------------------------------------
def gru_model_reference(x, params):
    H = params["gru"][0]["w_hh"].shape[1]
    x_tm = jnp.transpose(x, (1, 0, 2)).astype(jnp.float32)

    def layer_ref(x_tm, p):
        def step(h, x_t):
            gi = x_t @ p["w_ih"].T + p["b_ih"]
            gh = h @ p["w_hh"].T + p["b_hh"]
            i_r, i_z, i_n = jnp.split(gi, 3, axis=-1)
            h_r, h_z, h_n = jnp.split(gh, 3, axis=-1)
            r = jax.nn.sigmoid(i_r + h_r)
            z = jax.nn.sigmoid(i_z + h_z)
            n = jnp.tanh(i_n + r * h_n)
            h_new = (1.0 - z) * n + z * h
            return h_new, h_new
        h0 = jnp.zeros((x_tm.shape[1], H), jnp.float32)
        _, hs = jax.lax.scan(step, h0, x_tm)
        return hs

    for p in params["gru"]:
        x_tm = layer_ref(x_tm, p)
    return x_tm[-1] @ params["fc_w"].T + params["fc_b"]


# --------------------------------------------------------------------------
if __name__ == "__main__":
    INPUT_DIM, HIDDEN_DIM, NUM_LAYERS, OUTPUT_DIM = 4, 32, 2, 4
    BATCH, SEQ = 2, 8

    key = jax.random.PRNGKey(0)
    key, kx, kp = jax.random.split(key, 3)
    x = jax.random.normal(kx, (BATCH, SEQ, INPUT_DIM), jnp.float32)
    params = init_params(kp, INPUT_DIM, HIDDEN_DIM, NUM_LAYERS, OUTPUT_DIM)
    kparams = prepare_kernel_params(params)

    out = gru_model_forward(x, kparams)
    out = jax.block_until_ready(out)

    ref = gru_model_reference(x, params)
    assert out.shape == (BATCH, OUTPUT_DIM)
    # bf16 matmul operands (f32 accumulation / f32 gate math) vs pure-f32 ref:
    assert jnp.allclose(out, ref, atol=5e-2, rtol=5e-2), "mismatch vs reference"

    print("KERNEL_OK")
</pallas_src>

<mosaic_0001>
module attributes {stable_mosaic.version = 11 : i64} {
  func.func @kernel(%arg0: memref<64x4xbf16, #tpu.memory_space<vmem>>, %arg1: memref<4x96xbf16, #tpu.memory_space<vmem>>, %arg2: memref<32x32xbf16, #tpu.memory_space<vmem>>, %arg3: memref<32x32xbf16, #tpu.memory_space<vmem>>, %arg4: memref<32x32xbf16, #tpu.memory_space<vmem>>, %arg5: memref<1x32xf32, #tpu.memory_space<vmem>>, %arg6: memref<1x32xf32, #tpu.memory_space<vmem>>, %arg7: memref<1x32xf32, #tpu.memory_space<vmem>>, %arg8: memref<1x32xf32, #tpu.memory_space<vmem>>, %arg9: memref<32x96xbf16, #tpu.memory_space<vmem>>, %arg10: memref<32x32xbf16, #tpu.memory_space<vmem>>, %arg11: memref<32x32xbf16, #tpu.memory_space<vmem>>, %arg12: memref<32x32xbf16, #tpu.memory_space<vmem>>, %arg13: memref<1x32xf32, #tpu.memory_space<vmem>>, %arg14: memref<1x32xf32, #tpu.memory_space<vmem>>, %arg15: memref<1x32xf32, #tpu.memory_space<vmem>>, %arg16: memref<1x32xf32, #tpu.memory_space<vmem>>, %arg17: memref<32x4xbf16, #tpu.memory_space<vmem>>, %arg18: memref<1x4xf32, #tpu.memory_space<vmem>>, %arg19: memref<8x4xf32, #tpu.memory_space<vmem>>, %arg20: memref<64x32xf32, #tpu.memory_space<vmem>>, %arg21: memref<64x32xf32, #tpu.memory_space<vmem>>, %arg22: memref<64x32xf32, #tpu.memory_space<vmem>>, %arg23: memref<64x32xf32, #tpu.memory_space<vmem>>) attributes {dimension_semantics = [], scalar_prefetch = 0 : i64, scratch_operands = 4 : i64, tpu.core_type = #tpu.core_type<tc>} {
    %c0 = arith.constant 0 : index
    %c0_0 = arith.constant 0 : index
    %0 = vector.load %arg0[%c0, %c0_0] : memref<64x4xbf16, #tpu.memory_space<vmem>>, vector<64x4xbf16>
    %c0_1 = arith.constant 0 : index
    %c0_2 = arith.constant 0 : index
    %1 = vector.load %arg1[%c0_1, %c0_2] : memref<4x96xbf16, #tpu.memory_space<vmem>>, vector<4x96xbf16>
    %cst = arith.constant dense<0.000000e+00> : vector<64x96xf32>
    %2 = tpu.matmul %0, %1, %cst {dimension_numbers = #tpu.dot_dimension_numbers<[1], [0], [0], [1], [0, 0, 1, 1], [], []>} : vector<64x4xbf16>, vector<4x96xbf16>, vector<64x96xf32> -> vector<64x96xf32>
    %3 = vector.extract_strided_slice %2 {offsets = [0, 0], sizes = [64, 32], strides = [1, 1]} : vector<64x96xf32> to vector<64x32xf32>
    %c0_3 = arith.constant 0 : index
    %c0_4 = arith.constant 0 : index
    %4 = vector.load %arg5[%c0_3, %c0_4] : memref<1x32xf32, #tpu.memory_space<vmem>>, vector<1x32xf32>
    %5 = vector.broadcast %4 : vector<1x32xf32> to vector<64x32xf32>
    %6 = arith.addf %3, %5 : vector<64x32xf32>
    %c0_5 = arith.constant 0 : index
    %c0_6 = arith.constant 0 : index
    %7 = vector.load %arg20[%c0_5, %c0_6] : memref<64x32xf32, #tpu.memory_space<vmem>>, vector<64x32xf32>
    tpu.vector_store %arg20[%c0_5, %c0_6], %6 {strides = array<i32>} : memref<64x32xf32, #tpu.memory_space<vmem>>, vector<64x32xf32>,
    %8 = vector.extract_strided_slice %2 {offsets = [0, 32], sizes = [64, 32], strides = [1, 1]} : vector<64x96xf32> to vector<64x32xf32>
    %c0_7 = arith.constant 0 : index
    %c0_8 = arith.constant 0 : index
    %9 = vector.load %arg6[%c0_7, %c0_8] : memref<1x32xf32, #tpu.memory_space<vmem>>, vector<1x32xf32>
    %10 = vector.broadcast %9 : vector<1x32xf32> to vector<64x32xf32>
    %11 = arith.addf %8, %10 : vector<64x32xf32>
    %c0_9 = arith.constant 0 : index
    %c0_10 = arith.constant 0 : index
    %12 = vector.load %arg21[%c0_9, %c0_10] : memref<64x32xf32, #tpu.memory_space<vmem>>, vector<64x32xf32>
    tpu.vector_store %arg21[%c0_9, %c0_10], %11 {strides = array<i32>} : memref<64x32xf32, #tpu.memory_space<vmem>>, vector<64x32xf32>,
    %13 = vector.extract_strided_slice %2 {offsets = [0, 64], sizes = [64, 32], strides = [1, 1]} : vector<64x96xf32> to vector<64x32xf32>
    %c0_11 = arith.constant 0 : index
    %c0_12 = arith.constant 0 : index
    %14 = vector.load %arg7[%c0_11, %c0_12] : memref<1x32xf32, #tpu.memory_space<vmem>>, vector<1x32xf32>
    %15 = vector.broadcast %14 : vector<1x32xf32> to vector<64x32xf32>
    %16 = arith.addf %13, %15 : vector<64x32xf32>
    %c0_13 = arith.constant 0 : index
    %c0_14 = arith.constant 0 : index
    %17 = vector.load %arg22[%c0_13, %c0_14] : memref<64x32xf32, #tpu.memory_space<vmem>>, vector<64x32xf32>
    tpu.vector_store %arg22[%c0_13, %c0_14], %16 {strides = array<i32>} : memref<64x32xf32, #tpu.memory_space<vmem>>, vector<64x32xf32>,
    %c0_15 = arith.constant 0 : index
    %c0_16 = arith.constant 0 : index
    %18 = vector.load %arg2[%c0_15, %c0_16] : memref<32x32xbf16, #tpu.memory_space<vmem>>, vector<32x32xbf16>
    %c0_17 = arith.constant 0 : index
    %c0_18 = arith.constant 0 : index
    %19 = vector.load %arg3[%c0_17, %c0_18] : memref<32x32xbf16, #tpu.memory_space<vmem>>, vector<32x32xbf16>
    %c0_19 = arith.constant 0 : index
    %c0_20 = arith.constant 0 : index
    %20 = vector.load %arg4[%c0_19, %c0_20] : memref<32x32xbf16, #tpu.memory_space<vmem>>, vector<32x32xbf16>
    %c0_21 = arith.constant 0 : index
    %c0_22 = arith.constant 0 : index
    %21 = vector.load %arg8[%c0_21, %c0_22] : memref<1x32xf32, #tpu.memory_space<vmem>>, vector<1x32xf32>
    %cst_23 = arith.constant 0.000000e+00 : f32
    %22 = vector.broadcast %cst_23 : f32 to vector<8x32xf32>
    %c0_i32 = arith.constant 0 : i32
    %c8_i32 = arith.constant 8 : i32
    %23 = arith.muli %c0_i32, %c8_i32 : i32
    %24 = tpu.assume_multiple %23, 8 : i32
    %25 = arith.truncf %22 : vector<8x32xf32> to vector<8x32xbf16>
    %cst_24 = arith.constant dense<0.000000e+00> : vector<8x32xf32>
    %26 = tpu.matmul %25, %18, %cst_24 {dimension_numbers = #tpu.dot_dimension_numbers<[1], [0], [0], [1], [0, 0, 1, 1], [], []>} : vector<8x32xbf16>, vector<32x32xbf16>, vector<8x32xf32> -> vector<8x32xf32>
    %cst_25 = arith.constant dense<0.000000e+00> : vector<8x32xf32>
    %27 = tpu.matmul %25, %19, %cst_25 {dimension_numbers = #tpu.dot_dimension_numbers<[1], [0], [0], [1], [0, 0, 1, 1], [], []>} : vector<8x32xbf16>, vector<32x32xbf16>, vector<8x32xf32> -> vector<8x32xf32>
    %cst_26 = arith.constant dense<0.000000e+00> : vector<8x32xf32>
    %28 = tpu.matmul %25, %20, %cst_26 {dimension_numbers = #tpu.dot_dimension_numbers<[1], [0], [0], [1], [0, 0, 1, 1], [], []>} : vector<8x32xbf16>, vector<32x32xbf16>, vector<8x32xf32> -> vector<8x32xf32>
    %29 = arith.index_cast %24 : i32 to index
    %c0_27 = arith.constant 0 : index
    %30 = vector.load %arg20[%29, %c0_27] : memref<64x32xf32, #tpu.memory_space<vmem>>, vector<8x32xf32>
    %31 = arith.addf %30, %26 : vector<8x32xf32>
    %32 = arith.negf %31 : vector<8x32xf32>
    %33 = math.exp %32 : vector<8x32xf32>
    %cst_28 = arith.constant 1.000000e+00 : f32
    %34 = vector.broadcast %cst_28 : f32 to vector<8x32xf32>
    %35 = arith.addf %34, %33 : vector<8x32xf32>
    %36 = arith.divf %34, %35 : vector<8x32xf32>
    %37 = arith.index_cast %24 : i32 to index
    %c0_29 = arith.constant 0 : index
    %38 = vector.load %arg21[%37, %c0_29] : memref<64x32xf32, #tpu.memory_space<vmem>>, vector<8x32xf32>
    %39 = arith.addf %38, %27 : vector<8x32xf32>
    %40 = arith.negf %39 : vector<8x32xf32>
    %41 = math.exp %40 : vector<8x32xf32>
    %cst_30 = arith.constant 1.000000e+00 : f32
    %42 = vector.broadcast %cst_30 : f32 to vector<8x32xf32>
    %43 = arith.addf %42, %41 : vector<8x32xf32>
    %44 = arith.divf %42, %43 : vector<8x32xf32>
    %45 = arith.index_cast %24 : i32 to index
    %c0_31 = arith.constant 0 : index
    %46 = vector.load %arg22[%45, %c0_31] : memref<64x32xf32, #tpu.memory_space<vmem>>, vector<8x32xf32>
    %47 = vector.broadcast %21 : vector<1x32xf32> to vector<8x32xf32>
    %48 = arith.addf %28, %47 : vector<8x32xf32>
    %49 = arith.mulf %36, %48 : vector<8x32xf32>
    %50 = arith.addf %46, %49 : vector<8x32xf32>
    %51 = math.tanh %50 : vector<8x32xf32>
    %cst_32 = arith.constant 1.000000e+00 : f32
    %52 = vector.broadcast %cst_32 : f32 to vector<8x32xf32>
    %53 = arith.subf %52, %44 : vector<8x32xf32>
    %54 = arith.mulf %53, %51 : vector<8x32xf32>
    %55 = arith.mulf %44, %22 : vector<8x32xf32>
    %56 = arith.addf %54, %55 : vector<8x32xf32>
    %57 = arith.index_cast %24 : i32 to index
    %c0_33 = arith.constant 0 : index
    %58 = vector.load %arg23[%57, %c0_33] : memref<64x32xf32, #tpu.memory_space<vmem>>, vector<8x32xf32>
    tpu.vector_store %arg23[%57, %c0_33], %56 {strides = array<i32>} : memref<64x32xf32, #tpu.memory_space<vmem>>, vector<8x32xf32>,
    %c1_i32 = arith.constant 1 : i32
    %c8_i32_34 = arith.constant 8 : i32
    %59 = arith.muli %c1_i32, %c8_i32_34 : i32
    %60 = tpu.assume_multiple %59, 8 : i32
    %61 = arith.truncf %56 : vector<8x32xf32> to vector<8x32xbf16>
    %cst_35 = arith.constant dense<0.000000e+00> : vector<8x32xf32>
    %62 = tpu.matmul %61, %18, %cst_35 {dimension_numbers = #tpu.dot_dimension_numbers<[1], [0], [0], [1], [0, 0, 1, 1], [], []>} : vector<8x32xbf16>, vector<32x32xbf16>, vector<8x32xf32> -> vector<8x32xf32>
    %cst_36 = arith.constant dense<0.000000e+00> : vector<8x32xf32>
    %63 = tpu.matmul %61, %19, %cst_36 {dimension_numbers = #tpu.dot_dimension_numbers<[1], [0], [0], [1], [0, 0, 1, 1], [], []>} : vector<8x32xbf16>, vector<32x32xbf16>, vector<8x32xf32> -> vector<8x32xf32>
    %cst_37 = arith.constant dense<0.000000e+00> : vector<8x32xf32>
    %64 = tpu.matmul %61, %20, %cst_37 {dimension_numbers = #tpu.dot_dimension_numbers<[1], [0], [0], [1], [0, 0, 1, 1], [], []>} : vector<8x32xbf16>, vector<32x32xbf16>, vector<8x32xf32> -> vector<8x32xf32>
    %65 = arith.index_cast %60 : i32 to index
    %c0_38 = arith.constant 0 : index
    %66 = vector.load %arg20[%65, %c0_38] : memref<64x32xf32, #tpu.memory_space<vmem>>, vector<8x32xf32>
    %67 = arith.addf %66, %62 : vector<8x32xf32>
    %68 = arith.negf %67 : vector<8x32xf32>
    %69 = math.exp %68 : vector<8x32xf32>
    %cst_39 = arith.constant 1.000000e+00 : f32
    %70 = vector.broadcast %cst_39 : f32 to vector<8x32xf32>
    %71 = arith.addf %70, %69 : vector<8x32xf32>
    %72 = arith.divf %70, %71 : vector<8x32xf32>
    %73 = arith.index_cast %60 : i32 to index
    %c0_40 = arith.constant 0 : index
    %74 = vector.load %arg21[%73, %c0_40] : memref<64x32xf32, #tpu.memory_space<vmem>>, vector<8x32xf32>
    %75 = arith.addf %74, %63 : vector<8x32xf32>
    %76 = arith.negf %75 : vector<8x32xf32>
    %77 = math.exp %76 : vector<8x32xf32>
    %cst_41 = arith.constant 1.000000e+00 : f32
    %78 = vector.broadcast %cst_41 : f32 to vector<8x32xf32>
    %79 = arith.addf %78, %77 : vector<8x32xf32>
    %80 = arith.divf %78, %79 : vector<8x32xf32>
    %81 = arith.index_cast %60 : i32 to index
    %c0_42 = arith.constant 0 : index
    %82 = vector.load %arg22[%81, %c0_42] : memref<64x32xf32, #tpu.memory_space<vmem>>, vector<8x32xf32>
    %83 = vector.broadcast %21 : vector<1x32xf32> to vector<8x32xf32>
    %84 = arith.addf %64, %83 : vector<8x32xf32>
    %85 = arith.mulf %72, %84 : vector<8x32xf32>
    %86 = arith.addf %82, %85 : vector<8x32xf32>
    %87 = math.tanh %86 : vector<8x32xf32>
    %cst_43 = arith.constant 1.000000e+00 : f32
    %88 = vector.broadcast %cst_43 : f32 to vector<8x32xf32>
    %89 = arith.subf %88, %80 : vector<8x32xf32>
    %90 = arith.mulf %89, %87 : vector<8x32xf32>
    %91 = arith.mulf %80, %56 : vector<8x32xf32>
    %92 = arith.addf %90, %91 : vector<8x32xf32>
    %93 = arith.index_cast %60 : i32 to index
    %c0_44 = arith.constant 0 : index
    %94 = vector.load %arg23[%93, %c0_44] : memref<64x32xf32, #tpu.memory_space<vmem>>, vector<8x32xf32>
    tpu.vector_store %arg23[%93, %c0_44], %92 {strides = array<i32>} : memref<64x32xf32, #tpu.memory_space<vmem>>, vector<8x32xf32>,
    %c2_i32 = arith.constant 2 : i32
    %c8_i32_45 = arith.constant 8 : i32
    %95 = arith.muli %c2_i32, %c8_i32_45 : i32
    %96 = tpu.assume_multiple %95, 8 : i32
    %97 = arith.truncf %92 : vector<8x32xf32> to vector<8x32xbf16>
    %cst_46 = arith.constant dense<0.000000e+00> : vector<8x32xf32>
    %98 = tpu.matmul %97, %18, %cst_46 {dimension_numbers = #tpu.dot_dimension_numbers<[1], [0], [0], [1], [0, 0, 1, 1], [], []>} : vector<8x32xbf16>, vector<32x32xbf16>, vector<8x32xf32> -> vector<8x32xf32>
    %cst_47 = arith.constant dense<0.000000e+00> : vector<8x32xf32>
    %99 = tpu.matmul %97, %19, %cst_47 {dimension_numbers = #tpu.dot_dimension_numbers<[1], [0], [0], [1], [0, 0, 1, 1], [], []>} : vector<8x32xbf16>, vector<32x32xbf16>, vector<8x32xf32> -> vector<8x32xf32>
    %cst_48 = arith.constant dense<0.000000e+00> : vector<8x32xf32>
    %100 = tpu.matmul %97, %20, %cst_48 {dimension_numbers = #tpu.dot_dimension_numbers<[1], [0], [0], [1], [0, 0, 1, 1], [], []>} : vector<8x32xbf16>, vector<32x32xbf16>, vector<8x32xf32> -> vector<8x32xf32>
    %101 = arith.index_cast %96 : i32 to index
    %c0_49 = arith.constant 0 : index
    %102 = vector.load %arg20[%101, %c0_49] : memref<64x32xf32, #tpu.memory_space<vmem>>, vector<8x32xf32>
    %103 = arith.addf %102, %98 : vector<8x32xf32>
    %104 = arith.negf %103 : vector<8x32xf32>
    %105 = math.exp %104 : vector<8x32xf32>
    %cst_50 = arith.constant 1.000000e+00 : f32
    %106 = vector.broadcast %cst_50 : f32 to vector<8x32xf32>
    %107 = arith.addf %106, %105 : vector<8x32xf32>
    %108 = arith.divf %106, %107 : vector<8x32xf32>
    %109 = arith.index_cast %96 : i32 to index
    %c0_51 = arith.constant 0 : index
    %110 = vector.load %arg21[%109, %c0_51] : memref<64x32xf32, #tpu.memory_space<vmem>>, vector<8x32xf32>
    %111 = arith.addf %110, %99 : vector<8x32xf32>
    %112 = arith.negf %111 : vector<8x32xf32>
    %113 = math.exp %112 : vector<8x32xf32>
    %cst_52 = arith.constant 1.000000e+00 : f32
    %114 = vector.broadcast %cst_52 : f32 to vector<8x32xf32>
    %115 = arith.addf %114, %113 : vector<8x32xf32>
    %116 = arith.divf %114, %115 : vector<8x32xf32>
    %117 = arith.index_cast %96 : i32 to index
    %c0_53 = arith.constant 0 : index
    %118 = vector.load %arg22[%117, %c0_53] : memref<64x32xf32, #tpu.memory_space<vmem>>, vector<8x32xf32>
    %119 = vector.broadcast %21 : vector<1x32xf32> to vector<8x32xf32>
    %120 = arith.addf %100, %119 : vector<8x32xf32>
    %121 = arith.mulf %108, %120 : vector<8x32xf32>
    %122 = arith.addf %118, %121 : vector<8x32xf32>
    %123 = math.tanh %122 : vector<8x32xf32>
    %cst_54 = arith.constant 1.000000e+00 : f32
    %124 = vector.broadcast %cst_54 : f32 to vector<8x32xf32>
    %125 = arith.subf %124, %116 : vector<8x32xf32>
    %126 = arith.mulf %125, %123 : vector<8x32xf32>
    %127 = arith.mulf %116, %92 : vector<8x32xf32>
    %128 = arith.addf %126, %127 : vector<8x32xf32>
    %129 = arith.index_cast %96 : i32 to index
    %c0_55 = arith.constant 0 : index
    %130 = vector.load %arg23[%129, %c0_55] : memref<64x32xf32, #tpu.memory_space<vmem>>, vector<8x32xf32>
    tpu.vector_store %arg23[%129, %c0_55], %128 {strides = array<i32>} : memref<64x32xf32, #tpu.memory_space<vmem>>, vector<8x32xf32>,
    %c3_i32 = arith.constant 3 : i32
    %c8_i32_56 = arith.constant 8 : i32
    %131 = arith.muli %c3_i32, %c8_i32_56 : i32
    %132 = tpu.assume_multiple %131, 8 : i32
    %133 = arith.truncf %128 : vector<8x32xf32> to vector<8x32xbf16>
    %cst_57 = arith.constant dense<0.000000e+00> : vector<8x32xf32>
    %134 = tpu.matmul %133, %18, %cst_57 {dimension_numbers = #tpu.dot_dimension_numbers<[1], [0], [0], [1], [0, 0, 1, 1], [], []>} : vector<8x32xbf16>, vector<32x32xbf16>, vector<8x32xf32> -> vector<8x32xf32>
    %cst_58 = arith.constant dense<0.000000e+00> : vector<8x32xf32>
    %135 = tpu.matmul %133, %19, %cst_58 {dimension_numbers = #tpu.dot_dimension_numbers<[1], [0], [0], [1], [0, 0, 1, 1], [], []>} : vector<8x32xbf16>, vector<32x32xbf16>, vector<8x32xf32> -> vector<8x32xf32>
    %cst_59 = arith.constant dense<0.000000e+00> : vector<8x32xf32>
    %136 = tpu.matmul %133, %20, %cst_59 {dimension_numbers = #tpu.dot_dimension_numbers<[1], [0], [0], [1], [0, 0, 1, 1], [], []>} : vector<8x32xbf16>, vector<32x32xbf16>, vector<8x32xf32> -> vector<8x32xf32>
    %137 = arith.index_cast %132 : i32 to index
    %c0_60 = arith.constant 0 : index
    %138 = vector.load %arg20[%137, %c0_60] : memref<64x32xf32, #tpu.memory_space<vmem>>, vector<8x32xf32>
    %139 = arith.addf %138, %134 : vector<8x32xf32>
    %140 = arith.negf %139 : vector<8x32xf32>
    %141 = math.exp %140 : vector<8x32xf32>
    %cst_61 = arith.constant 1.000000e+00 : f32
    %142 = vector.broadcast %cst_61 : f32 to vector<8x32xf32>
    %143 = arith.addf %142, %141 : vector<8x32xf32>
    %144 = arith.divf %142, %143 : vector<8x32xf32>
    %145 = arith.index_cast %132 : i32 to index
    %c0_62 = arith.constant 0 : index
    %146 = vector.load %arg21[%145, %c0_62] : memref<64x32xf32, #tpu.memory_space<vmem>>, vector<8x32xf32>
    %147 = arith.addf %146, %135 : vector<8x32xf32>
    %148 = arith.negf %147 : vector<8x32xf32>
    %149 = math.exp %148 : vector<8x32xf32>
    %cst_63 = arith.constant 1.000000e+00 : f32
    %150 = vector.broadcast %cst_63 : f32 to vector<8x32xf32>
    %151 = arith.addf %150, %149 : vector<8x32xf32>
    %152 = arith.divf %150, %151 : vector<8x32xf32>
    %153 = arith.index_cast %132 : i32 to index
    %c0_64 = arith.constant 0 : index
    %154 = vector.load %arg22[%153, %c0_64] : memref<64x32xf32, #tpu.memory_space<vmem>>, vector<8x32xf32>
    %155 = vector.broadcast %21 : vector<1x32xf32> to vector<8x32xf32>
    %156 = arith.addf %136, %155 : vector<8x32xf32>
    %157 = arith.mulf %144, %156 : vector<8x32xf32>
    %158 = arith.addf %154, %157 : vector<8x32xf32>
    %159 = math.tanh %158 : vector<8x32xf32>
    %cst_65 = arith.constant 1.000000e+00 : f32
    %160 = vector.broadcast %cst_65 : f32 to vector<8x32xf32>
    %161 = arith.subf %160, %152 : vector<8x32xf32>
    %162 = arith.mulf %161, %159 : vector<8x32xf32>
    %163 = arith.mulf %152, %128 : vector<8x32xf32>
    %164 = arith.addf %162, %163 : vector<8x32xf32>
    %165 = arith.index_cast %132 : i32 to index
    %c0_66 = arith.constant 0 : index
    %166 = vector.load %arg23[%165, %c0_66] : memref<64x32xf32, #tpu.memory_space<vmem>>, vector<8x32xf32>
    tpu.vector_store %arg23[%165, %c0_66], %164 {strides = array<i32>} : memref<64x32xf32, #tpu.memory_space<vmem>>, vector<8x32xf32>,
    %c4_i32 = arith.constant 4 : i32
    %c8_i32_67 = arith.constant 8 : i32
    %167 = arith.muli %c4_i32, %c8_i32_67 : i32
    %168 = tpu.assume_multiple %167, 8 : i32
    %169 = arith.truncf %164 : vector<8x32xf32> to vector<8x32xbf16>
    %cst_68 = arith.constant dense<0.000000e+00> : vector<8x32xf32>
    %170 = tpu.matmul %169, %18, %cst_68 {dimension_numbers = #tpu.dot_dimension_numbers<[1], [0], [0], [1], [0, 0, 1, 1], [], []>} : vector<8x32xbf16>, vector<32x32xbf16>, vector<8x32xf32> -> vector<8x32xf32>
    %cst_69 = arith.constant dense<0.000000e+00> : vector<8x32xf32>
    %171 = tpu.matmul %169, %19, %cst_69 {dimension_numbers = #tpu.dot_dimension_numbers<[1], [0], [0], [1], [0, 0, 1, 1], [], []>} : vector<8x32xbf16>, vector<32x32xbf16>, vector<8x32xf32> -> vector<8x32xf32>
    %cst_70 = arith.constant dense<0.000000e+00> : vector<8x32xf32>
    %172 = tpu.matmul %169, %20, %cst_70 {dimension_numbers = #tpu.dot_dimension_numbers<[1], [0], [0], [1], [0, 0, 1, 1], [], []>} : vector<8x32xbf16>, vector<32x32xbf16>, vector<8x32xf32> -> vector<8x32xf32>
    %173 = arith.index_cast %168 : i32 to index
    %c0_71 = arith.constant 0 : index
    %174 = vector.load %arg20[%173, %c0_71] : memref<64x32xf32, #tpu.memory_space<vmem>>, vector<8x32xf32>
    %175 = arith.addf %174, %170 : vector<8x32xf32>
    %176 = arith.negf %175 : vector<8x32xf32>
    %177 = math.exp %176 : vector<8x32xf32>
    %cst_72 = arith.constant 1.000000e+00 : f32
    %178 = vector.broadcast %cst_72 : f32 to vector<8x32xf32>
    %179 = arith.addf %178, %177 : vector<8x32xf32>
    %180 = arith.divf %178, %179 : vector<8x32xf32>
    %181 = arith.index_cast %168 : i32 to index
    %c0_73 = arith.constant 0 : index
    %182 = vector.load %arg21[%181, %c0_73] : memref<64x32xf32, #tpu.memory_space<vmem>>, vector<8x32xf32>
    %183 = arith.addf %182, %171 : vector<8x32xf32>
    %184 = arith.negf %183 : vector<8x32xf32>
    %185 = math.exp %184 : vector<8x32xf32>
    %cst_74 = arith.constant 1.000000e+00 : f32
    %186 = vector.broadcast %cst_74 : f32 to vector<8x32xf32>
    %187 = arith.addf %186, %185 : vector<8x32xf32>
    %188 = arith.divf %186, %187 : vector<8x32xf32>
    %189 = arith.index_cast %168 : i32 to index
    %c0_75 = arith.constant 0 : index
    %190 = vector.load %arg22[%189, %c0_75] : memref<64x32xf32, #tpu.memory_space<vmem>>, vector<8x32xf32>
    %191 = vector.broadcast %21 : vector<1x32xf32> to vector<8x32xf32>
    %192 = arith.addf %172, %191 : vector<8x32xf32>
    %193 = arith.mulf %180, %192 : vector<8x32xf32>
    %194 = arith.addf %190, %193 : vector<8x32xf32>
    %195 = math.tanh %194 : vector<8x32xf32>
    %cst_76 = arith.constant 1.000000e+00 : f32
    %196 = vector.broadcast %cst_76 : f32 to vector<8x32xf32>
    %197 = arith.subf %196, %188 : vector<8x32xf32>
    %198 = arith.mulf %197, %195 : vector<8x32xf32>
    %199 = arith.mulf %188, %164 : vector<8x32xf32>
    %200 = arith.addf %198, %199 : vector<8x32xf32>
    %201 = arith.index_cast %168 : i32 to index
    %c0_77 = arith.constant 0 : index
    %202 = vector.load %arg23[%201, %c0_77] : memref<64x32xf32, #tpu.memory_space<vmem>>, vector<8x32xf32>
    tpu.vector_store %arg23[%201, %c0_77], %200 {strides = array<i32>} : memref<64x32xf32, #tpu.memory_space<vmem>>, vector<8x32xf32>,
    %c5_i32 = arith.constant 5 : i32
    %c8_i32_78 = arith.constant 8 : i32
    %203 = arith.muli %c5_i32, %c8_i32_78 : i32
    %204 = tpu.assume_multiple %203, 8 : i32
    %205 = arith.truncf %200 : vector<8x32xf32> to vector<8x32xbf16>
    %cst_79 = arith.constant dense<0.000000e+00> : vector<8x32xf32>
    %206 = tpu.matmul %205, %18, %cst_79 {dimension_numbers = #tpu.dot_dimension_numbers<[1], [0], [0], [1], [0, 0, 1, 1], [], []>} : vector<8x32xbf16>, vector<32x32xbf16>, vector<8x32xf32> -> vector<8x32xf32>
    %cst_80 = arith.constant dense<0.000000e+00> : vector<8x32xf32>
    %207 = tpu.matmul %205, %19, %cst_80 {dimension_numbers = #tpu.dot_dimension_numbers<[1], [0], [0], [1], [0, 0, 1, 1], [], []>} : vector<8x32xbf16>, vector<32x32xbf16>, vector<8x32xf32> -> vector<8x32xf32>
    %cst_81 = arith.constant dense<0.000000e+00> : vector<8x32xf32>
    %208 = tpu.matmul %205, %20, %cst_81 {dimension_numbers = #tpu.dot_dimension_numbers<[1], [0], [0], [1], [0, 0, 1, 1], [], []>} : vector<8x32xbf16>, vector<32x32xbf16>, vector<8x32xf32> -> vector<8x32xf32>
    %209 = arith.index_cast %204 : i32 to index
    %c0_82 = arith.constant 0 : index
    %210 = vector.load %arg20[%209, %c0_82] : memref<64x32xf32, #tpu.memory_space<vmem>>, vector<8x32xf32>
    %211 = arith.addf %210, %206 : vector<8x32xf32>
    %212 = arith.negf %211 : vector<8x32xf32>
    %213 = math.exp %212 : vector<8x32xf32>
    %cst_83 = arith.constant 1.000000e+00 : f32
    %214 = vector.broadcast %cst_83 : f32 to vector<8x32xf32>
    %215 = arith.addf %214, %213 : vector<8x32xf32>
    %216 = arith.divf %214, %215 : vector<8x32xf32>
    %217 = arith.index_cast %204 : i32 to index
    %c0_84 = arith.constant 0 : index
    %218 = vector.load %arg21[%217, %c0_84] : memref<64x32xf32, #tpu.memory_space<vmem>>, vector<8x32xf32>
    %219 = arith.addf %218, %207 : vector<8x32xf32>
    %220 = arith.negf %219 : vector<8x32xf32>
    %221 = math.exp %220 : vector<8x32xf32>
    %cst_85 = arith.constant 1.000000e+00 : f32
    %222 = vector.broadcast %cst_85 : f32 to vector<8x32xf32>
    %223 = arith.addf %222, %221 : vector<8x32xf32>
    %224 = arith.divf %222, %223 : vector<8x32xf32>
    %225 = arith.index_cast %204 : i32 to index
    %c0_86 = arith.constant 0 : index
    %226 = vector.load %arg22[%225, %c0_86] : memref<64x32xf32, #tpu.memory_space<vmem>>, vector<8x32xf32>
    %227 = vector.broadcast %21 : vector<1x32xf32> to vector<8x32xf32>
    %228 = arith.addf %208, %227 : vector<8x32xf32>
    %229 = arith.mulf %216, %228 : vector<8x32xf32>
    %230 = arith.addf %226, %229 : vector<8x32xf32>
    %231 = math.tanh %230 : vector<8x32xf32>
    %cst_87 = arith.constant 1.000000e+00 : f32
    %232 = vector.broadcast %cst_87 : f32 to vector<8x32xf32>
    %233 = arith.subf %232, %224 : vector<8x32xf32>
    %234 = arith.mulf %233, %231 : vector<8x32xf32>
    %235 = arith.mulf %224, %200 : vector<8x32xf32>
    %236 = arith.addf %234, %235 : vector<8x32xf32>
    %237 = arith.index_cast %204 : i32 to index
    %c0_88 = arith.constant 0 : index
    %238 = vector.load %arg23[%237, %c0_88] : memref<64x32xf32, #tpu.memory_space<vmem>>, vector<8x32xf32>
    tpu.vector_store %arg23[%237, %c0_88], %236 {strides = array<i32>} : memref<64x32xf32, #tpu.memory_space<vmem>>, vector<8x32xf32>,
    %c6_i32 = arith.constant 6 : i32
    %c8_i32_89 = arith.constant 8 : i32
    %239 = arith.muli %c6_i32, %c8_i32_89 : i32
    %240 = tpu.assume_multiple %239, 8 : i32
    %241 = arith.truncf %236 : vector<8x32xf32> to vector<8x32xbf16>
    %cst_90 = arith.constant dense<0.000000e+00> : vector<8x32xf32>
    %242 = tpu.matmul %241, %18, %cst_90 {dimension_numbers = #tpu.dot_dimension_numbers<[1], [0], [0], [1], [0, 0, 1, 1], [], []>} : vector<8x32xbf16>, vector<32x32xbf16>, vector<8x32xf32> -> vector<8x32xf32>
    %cst_91 = arith.constant dense<0.000000e+00> : vector<8x32xf32>
    %243 = tpu.matmul %241, %19, %cst_91 {dimension_numbers = #tpu.dot_dimension_numbers<[1], [0], [0], [1], [0, 0, 1, 1], [], []>} : vector<8x32xbf16>, vector<32x32xbf16>, vector<8x32xf32> -> vector<8x32xf32>
    %cst_92 = arith.constant dense<0.000000e+00> : vector<8x32xf32>
    %244 = tpu.matmul %241, %20, %cst_92 {dimension_numbers = #tpu.dot_dimension_numbers<[1], [0], [0], [1], [0, 0, 1, 1], [], []>} : vector<8x32xbf16>, vector<32x32xbf16>, vector<8x32xf32> -> vector<8x32xf32>
    %245 = arith.index_cast %240 : i32 to index
    %c0_93 = arith.constant 0 : index
    %246 = vector.load %arg20[%245, %c0_93] : memref<64x32xf32, #tpu.memory_space<vmem>>, vector<8x32xf32>
    %247 = arith.addf %246, %242 : vector<8x32xf32>
    %248 = arith.negf %247 : vector<8x32xf32>
    %249 = math.exp %248 : vector<8x32xf32>
    %cst_94 = arith.constant 1.000000e+00 : f32
    %250 = vector.broadcast %cst_94 : f32 to vector<8x32xf32>
    %251 = arith.addf %250, %249 : vector<8x32xf32>
    %252 = arith.divf %250, %251 : vector<8x32xf32>
    %253 = arith.index_cast %240 : i32 to index
    %c0_95 = arith.constant 0 : index
    %254 = vector.load %arg21[%253, %c0_95] : memref<64x32xf32, #tpu.memory_space<vmem>>, vector<8x32xf32>
    %255 = arith.addf %254, %243 : vector<8x32xf32>
    %256 = arith.negf %255 : vector<8x32xf32>
    %257 = math.exp %256 : vector<8x32xf32>
    %cst_96 = arith.constant 1.000000e+00 : f32
    %258 = vector.broadcast %cst_96 : f32 to vector<8x32xf32>
    %259 = arith.addf %258, %257 : vector<8x32xf32>
    %260 = arith.divf %258, %259 : vector<8x32xf32>
    %261 = arith.index_cast %240 : i32 to index
    %c0_97 = arith.constant 0 : index
    %262 = vector.load %arg22[%261, %c0_97] : memref<64x32xf32, #tpu.memory_space<vmem>>, vector<8x32xf32>
    %263 = vector.broadcast %21 : vector<1x32xf32> to vector<8x32xf32>
    %264 = arith.addf %244, %263 : vector<8x32xf32>
    %265 = arith.mulf %252, %264 : vector<8x32xf32>
    %266 = arith.addf %262, %265 : vector<8x32xf32>
    %267 = math.tanh %266 : vector<8x32xf32>
    %cst_98 = arith.constant 1.000000e+00 : f32
    %268 = vector.broadcast %cst_98 : f32 to vector<8x32xf32>
    %269 = arith.subf %268, %260 : vector<8x32xf32>
    %270 = arith.mulf %269, %267 : vector<8x32xf32>
    %271 = arith.mulf %260, %236 : vector<8x32xf32>
    %272 = arith.addf %270, %271 : vector<8x32xf32>
    %273 = arith.index_cast %240 : i32 to index
    %c0_99 = arith.constant 0 : index
    %274 = vector.load %arg23[%273, %c0_99] : memref<64x32xf32, #tpu.memory_space<vmem>>, vector<8x32xf32>
    tpu.vector_store %arg23[%273, %c0_99], %272 {strides = array<i32>} : memref<64x32xf32, #tpu.memory_space<vmem>>, vector<8x32xf32>,
    %c7_i32 = arith.constant 7 : i32
    %c8_i32_100 = arith.constant 8 : i32
    %275 = arith.muli %c7_i32, %c8_i32_100 : i32
    %276 = tpu.assume_multiple %275, 8 : i32
    %277 = arith.truncf %272 : vector<8x32xf32> to vector<8x32xbf16>
    %cst_101 = arith.constant dense<0.000000e+00> : vector<8x32xf32>
    %278 = tpu.matmul %277, %18, %cst_101 {dimension_numbers = #tpu.dot_dimension_numbers<[1], [0], [0], [1], [0, 0, 1, 1], [], []>} : vector<8x32xbf16>, vector<32x32xbf16>, vector<8x32xf32> -> vector<8x32xf32>
    %cst_102 = arith.constant dense<0.000000e+00> : vector<8x32xf32>
    %279 = tpu.matmul %277, %19, %cst_102 {dimension_numbers = #tpu.dot_dimension_numbers<[1], [0], [0], [1], [0, 0, 1, 1], [], []>} : vector<8x32xbf16>, vector<32x32xbf16>, vector<8x32xf32> -> vector<8x32xf32>
    %cst_103 = arith.constant dense<0.000000e+00> : vector<8x32xf32>
    %280 = tpu.matmul %277, %20, %cst_103 {dimension_numbers = #tpu.dot_dimension_numbers<[1], [0], [0], [1], [0, 0, 1, 1], [], []>} : vector<8x32xbf16>, vector<32x32xbf16>, vector<8x32xf32> -> vector<8x32xf32>
    %281 = arith.index_cast %276 : i32 to index
    %c0_104 = arith.constant 0 : index
    %282 = vector.load %arg20[%281, %c0_104] : memref<64x32xf32, #tpu.memory_space<vmem>>, vector<8x32xf32>
    %283 = arith.addf %282, %278 : vector<8x32xf32>
    %284 = arith.negf %283 : vector<8x32xf32>
    %285 = math.exp %284 : vector<8x32xf32>
    %cst_105 = arith.constant 1.000000e+00 : f32
    %286 = vector.broadcast %cst_105 : f32 to vector<8x32xf32>
    %287 = arith.addf %286, %285 : vector<8x32xf32>
    %288 = arith.divf %286, %287 : vector<8x32xf32>
    %289 = arith.index_cast %276 : i32 to index
    %c0_106 = arith.constant 0 : index
    %290 = vector.load %arg21[%289, %c0_106] : memref<64x32xf32, #tpu.memory_space<vmem>>, vector<8x32xf32>
    %291 = arith.addf %290, %279 : vector<8x32xf32>
    %292 = arith.negf %291 : vector<8x32xf32>
    %293 = math.exp %292 : vector<8x32xf32>
    %cst_107 = arith.constant 1.000000e+00 : f32
    %294 = vector.broadcast %cst_107 : f32 to vector<8x32xf32>
    %295 = arith.addf %294, %293 : vector<8x32xf32>
    %296 = arith.divf %294, %295 : vector<8x32xf32>
    %297 = arith.index_cast %276 : i32 to index
    %c0_108 = arith.constant 0 : index
    %298 = vector.load %arg22[%297, %c0_108] : memref<64x32xf32, #tpu.memory_space<vmem>>, vector<8x32xf32>
    %299 = vector.broadcast %21 : vector<1x32xf32> to vector<8x32xf32>
    %300 = arith.addf %280, %299 : vector<8x32xf32>
    %301 = arith.mulf %288, %300 : vector<8x32xf32>
    %302 = arith.addf %298, %301 : vector<8x32xf32>
    %303 = math.tanh %302 : vector<8x32xf32>
    %cst_109 = arith.constant 1.000000e+00 : f32
    %304 = vector.broadcast %cst_109 : f32 to vector<8x32xf32>
    %305 = arith.subf %304, %296 : vector<8x32xf32>
    %306 = arith.mulf %305, %303 : vector<8x32xf32>
    %307 = arith.mulf %296, %272 : vector<8x32xf32>
    %308 = arith.addf %306, %307 : vector<8x32xf32>
    %309 = arith.index_cast %276 : i32 to index
    %c0_110 = arith.constant 0 : index
    %310 = vector.load %arg23[%309, %c0_110] : memref<64x32xf32, #tpu.memory_space<vmem>>, vector<8x32xf32>
    tpu.vector_store %arg23[%309, %c0_110], %308 {strides = array<i32>} : memref<64x32xf32, #tpu.memory_space<vmem>>, vector<8x32xf32>,
    %c8_i32_111 = arith.constant 8 : i32
    %c0_112 = arith.constant 0 : index
    %c0_113 = arith.constant 0 : index
    %311 = vector.load %arg23[%c0_112, %c0_113] : memref<64x32xf32, #tpu.memory_space<vmem>>, vector<64x32xf32>
    %312 = arith.truncf %311 : vector<64x32xf32> to vector<64x32xbf16>
    %c0_114 = arith.constant 0 : index
    %c0_115 = arith.constant 0 : index
    %313 = vector.load %arg9[%c0_114, %c0_115] : memref<32x96xbf16, #tpu.memory_space<vmem>>, vector<32x96xbf16>
    %cst_116 = arith.constant dense<0.000000e+00> : vector<64x96xf32>
    %314 = tpu.matmul %312, %313, %cst_116 {dimension_numbers = #tpu.dot_dimension_numbers<[1], [0], [0], [1], [0, 0, 1, 1], [], []>} : vector<64x32xbf16>, vector<32x96xbf16>, vector<64x96xf32> -> vector<64x96xf32>
    %315 = vector.extract_strided_slice %314 {offsets = [0, 0], sizes = [64, 32], strides = [1, 1]} : vector<64x96xf32> to vector<64x32xf32>
    %c0_117 = arith.constant 0 : index
    %c0_118 = arith.constant 0 : index
    %316 = vector.load %arg13[%c0_117, %c0_118] : memref<1x32xf32, #tpu.memory_space<vmem>>, vector<1x32xf32>
    %317 = vector.broadcast %316 : vector<1x32xf32> to vector<64x32xf32>
    %318 = arith.addf %315, %317 : vector<64x32xf32>
    %c0_119 = arith.constant 0 : index
    %c0_120 = arith.constant 0 : index
    %319 = vector.load %arg20[%c0_119, %c0_120] : memref<64x32xf32, #tpu.memory_space<vmem>>, vector<64x32xf32>
    tpu.vector_store %arg20[%c0_119, %c0_120], %318 {strides = array<i32>} : memref<64x32xf32, #tpu.memory_space<vmem>>, vector<64x32xf32>,
    %320 = vector.extract_strided_slice %314 {offsets = [0, 32], sizes = [64, 32], strides = [1, 1]} : vector<64x96xf32> to vector<64x32xf32>
    %c0_121 = arith.constant 0 : index
    %c0_122 = arith.constant 0 : index
    %321 = vector.load %arg14[%c0_121, %c0_122] : memref<1x32xf32, #tpu.memory_space<vmem>>, vector<1x32xf32>
    %322 = vector.broadcast %321 : vector<1x32xf32> to vector<64x32xf32>
    %323 = arith.addf %320, %322 : vector<64x32xf32>
    %c0_123 = arith.constant 0 : index
    %c0_124 = arith.constant 0 : index
    %324 = vector.load %arg21[%c0_123, %c0_124] : memref<64x32xf32, #tpu.memory_space<vmem>>, vector<64x32xf32>
    tpu.vector_store %arg21[%c0_123, %c0_124], %323 {strides = array<i32>} : memref<64x32xf32, #tpu.memory_space<vmem>>, vector<64x32xf32>,
    %325 = vector.extract_strided_slice %314 {offsets = [0, 64], sizes = [64, 32], strides = [1, 1]} : vector<64x96xf32> to vector<64x32xf32>
    %c0_125 = arith.constant 0 : index
    %c0_126 = arith.constant 0 : index
    %326 = vector.load %arg15[%c0_125, %c0_126] : memref<1x32xf32, #tpu.memory_space<vmem>>, vector<1x32xf32>
    %327 = vector.broadcast %326 : vector<1x32xf32> to vector<64x32xf32>
    %328 = arith.addf %325, %327 : vector<64x32xf32>
    %c0_127 = arith.constant 0 : index
    %c0_128 = arith.constant 0 : index
    %329 = vector.load %arg22[%c0_127, %c0_128] : memref<64x32xf32, #tpu.memory_space<vmem>>, vector<64x32xf32>
    tpu.vector_store %arg22[%c0_127, %c0_128], %328 {strides = array<i32>} : memref<64x32xf32, #tpu.memory_space<vmem>>, vector<64x32xf32>,
    %c0_129 = arith.constant 0 : index
    %c0_130 = arith.constant 0 : index
    %330 = vector.load %arg10[%c0_129, %c0_130] : memref<32x32xbf16, #tpu.memory_space<vmem>>, vector<32x32xbf16>
    %c0_131 = arith.constant 0 : index
    %c0_132 = arith.constant 0 : index
    %331 = vector.load %arg11[%c0_131, %c0_132] : memref<32x32xbf16, #tpu.memory_space<vmem>>, vector<32x32xbf16>
    %c0_133 = arith.constant 0 : index
    %c0_134 = arith.constant 0 : index
    %332 = vector.load %arg12[%c0_133, %c0_134] : memref<32x32xbf16, #tpu.memory_space<vmem>>, vector<32x32xbf16>
    %c0_135 = arith.constant 0 : index
    %c0_136 = arith.constant 0 : index
    %333 = vector.load %arg16[%c0_135, %c0_136] : memref<1x32xf32, #tpu.memory_space<vmem>>, vector<1x32xf32>
    %cst_137 = arith.constant 0.000000e+00 : f32
    %334 = vector.broadcast %cst_137 : f32 to vector<8x32xf32>
    %c0_i32_138 = arith.constant 0 : i32
    %c8_i32_139 = arith.constant 8 : i32
    %335 = arith.muli %c0_i32_138, %c8_i32_139 : i32
    %336 = tpu.assume_multiple %335, 8 : i32
    %337 = arith.truncf %334 : vector<8x32xf32> to vector<8x32xbf16>
    %cst_140 = arith.constant dense<0.000000e+00> : vector<8x32xf32>
    %338 = tpu.matmul %337, %330, %cst_140 {dimension_numbers = #tpu.dot_dimension_numbers<[1], [0], [0], [1], [0, 0, 1, 1], [], []>} : vector<8x32xbf16>, vector<32x32xbf16>, vector<8x32xf32> -> vector<8x32xf32>
    %cst_141 = arith.constant dense<0.000000e+00> : vector<8x32xf32>
    %339 = tpu.matmul %337, %331, %cst_141 {dimension_numbers = #tpu.dot_dimension_numbers<[1], [0], [0], [1], [0, 0, 1, 1], [], []>} : vector<8x32xbf16>, vector<32x32xbf16>, vector<8x32xf32> -> vector<8x32xf32>
    %cst_142 = arith.constant dense<0.000000e+00> : vector<8x32xf32>
    %340 = tpu.matmul %337, %332, %cst_142 {dimension_numbers = #tpu.dot_dimension_numbers<[1], [0], [0], [1], [0, 0, 1, 1], [], []>} : vector<8x32xbf16>, vector<32x32xbf16>, vector<8x32xf32> -> vector<8x32xf32>
    %341 = arith.index_cast %336 : i32 to index
    %c0_143 = arith.constant 0 : index
    %342 = vector.load %arg20[%341, %c0_143] : memref<64x32xf32, #tpu.memory_space<vmem>>, vector<8x32xf32>
    %343 = arith.addf %342, %338 : vector<8x32xf32>
    %344 = arith.negf %343 : vector<8x32xf32>
    %345 = math.exp %344 : vector<8x32xf32>
    %cst_144 = arith.constant 1.000000e+00 : f32
    %346 = vector.broadcast %cst_144 : f32 to vector<8x32xf32>
    %347 = arith.addf %346, %345 : vector<8x32xf32>
    %348 = arith.divf %346, %347 : vector<8x32xf32>
    %349 = arith.index_cast %336 : i32 to index
    %c0_145 = arith.constant 0 : index
    %350 = vector.load %arg21[%349, %c0_145] : memref<64x32xf32, #tpu.memory_space<vmem>>, vector<8x32xf32>
    %351 = arith.addf %350, %339 : vector<8x32xf32>
    %352 = arith.negf %351 : vector<8x32xf32>
    %353 = math.exp %352 : vector<8x32xf32>
    %cst_146 = arith.constant 1.000000e+00 : f32
    %354 = vector.broadcast %cst_146 : f32 to vector<8x32xf32>
    %355 = arith.addf %354, %353 : vector<8x32xf32>
    %356 = arith.divf %354, %355 : vector<8x32xf32>
    %357 = arith.index_cast %336 : i32 to index
    %c0_147 = arith.constant 0 : index
    %358 = vector.load %arg22[%357, %c0_147] : memref<64x32xf32, #tpu.memory_space<vmem>>, vector<8x32xf32>
    %359 = vector.broadcast %333 : vector<1x32xf32> to vector<8x32xf32>
    %360 = arith.addf %340, %359 : vector<8x32xf32>
    %361 = arith.mulf %348, %360 : vector<8x32xf32>
    %362 = arith.addf %358, %361 : vector<8x32xf32>
    %363 = math.tanh %362 : vector<8x32xf32>
    %cst_148 = arith.constant 1.000000e+00 : f32
    %364 = vector.broadcast %cst_148 : f32 to vector<8x32xf32>
    %365 = arith.subf %364, %356 : vector<8x32xf32>
    %366 = arith.mulf %365, %363 : vector<8x32xf32>
    %367 = arith.mulf %356, %334 : vector<8x32xf32>
    %368 = arith.addf %366, %367 : vector<8x32xf32>
    %c1_i32_149 = arith.constant 1 : i32
    %c8_i32_150 = arith.constant 8 : i32
    %369 = arith.muli %c1_i32_149, %c8_i32_150 : i32
    %370 = tpu.assume_multiple %369, 8 : i32
    %371 = arith.truncf %368 : vector<8x32xf32> to vector<8x32xbf16>
    %cst_151 = arith.constant dense<0.000000e+00> : vector<8x32xf32>
    %372 = tpu.matmul %371, %330, %cst_151 {dimension_numbers = #tpu.dot_dimension_numbers<[1], [0], [0], [1], [0, 0, 1, 1], [], []>} : vector<8x32xbf16>, vector<32x32xbf16>, vector<8x32xf32> -> vector<8x32xf32>
    %cst_152 = arith.constant dense<0.000000e+00> : vector<8x32xf32>
    %373 = tpu.matmul %371, %331, %cst_152 {dimension_numbers = #tpu.dot_dimension_numbers<[1], [0], [0], [1], [0, 0, 1, 1], [], []>} : vector<8x32xbf16>, vector<32x32xbf16>, vector<8x32xf32> -> vector<8x32xf32>
    %cst_153 = arith.constant dense<0.000000e+00> : vector<8x32xf32>
    %374 = tpu.matmul %371, %332, %cst_153 {dimension_numbers = #tpu.dot_dimension_numbers<[1], [0], [0], [1], [0, 0, 1, 1], [], []>} : vector<8x32xbf16>, vector<32x32xbf16>, vector<8x32xf32> -> vector<8x32xf32>
    %375 = arith.index_cast %370 : i32 to index
    %c0_154 = arith.constant 0 : index
    %376 = vector.load %arg20[%375, %c0_154] : memref<64x32xf32, #tpu.memory_space<vmem>>, vector<8x32xf32>
    %377 = arith.addf %376, %372 : vector<8x32xf32>
    %378 = arith.negf %377 : vector<8x32xf32>
    %379 = math.exp %378 : vector<8x32xf32>
    %cst_155 = arith.constant 1.000000e+00 : f32
    %380 = vector.broadcast %cst_155 : f32 to vector<8x32xf32>
    %381 = arith.addf %380, %379 : vector<8x32xf32>
    %382 = arith.divf %380, %381 : vector<8x32xf32>
    %383 = arith.index_cast %370 : i32 to index
    %c0_156 = arith.constant 0 : index
    %384 = vector.load %arg21[%383, %c0_156] : memref<64x32xf32, #tpu.memory_space<vmem>>, vector<8x32xf32>
    %385 = arith.addf %384, %373 : vector<8x32xf32>
    %386 = arith.negf %385 : vector<8x32xf32>
    %387 = math.exp %386 : vector<8x32xf32>
    %cst_157 = arith.constant 1.000000e+00 : f32
    %388 = vector.broadcast %cst_157 : f32 to vector<8x32xf32>
    %389 = arith.addf %388, %387 : vector<8x32xf32>
    %390 = arith.divf %388, %389 : vector<8x32xf32>
    %391 = arith.index_cast %370 : i32 to index
    %c0_158 = arith.constant 0 : index
    %392 = vector.load %arg22[%391, %c0_158] : memref<64x32xf32, #tpu.memory_space<vmem>>, vector<8x32xf32>
    %393 = vector.broadcast %333 : vector<1x32xf32> to vector<8x32xf32>
    %394 = arith.addf %374, %393 : vector<8x32xf32>
    %395 = arith.mulf %382, %394 : vector<8x32xf32>
    %396 = arith.addf %392, %395 : vector<8x32xf32>
    %397 = math.tanh %396 : vector<8x32xf32>
    %cst_159 = arith.constant 1.000000e+00 : f32
    %398 = vector.broadcast %cst_159 : f32 to vector<8x32xf32>
    %399 = arith.subf %398, %390 : vector<8x32xf32>
    %400 = arith.mulf %399, %397 : vector<8x32xf32>
    %401 = arith.mulf %390, %368 : vector<8x32xf32>
    %402 = arith.addf %400, %401 : vector<8x32xf32>
    %c2_i32_160 = arith.constant 2 : i32
    %c8_i32_161 = arith.constant 8 : i32
    %403 = arith.muli %c2_i32_160, %c8_i32_161 : i32
    %404 = tpu.assume_multiple %403, 8 : i32
    %405 = arith.truncf %402 : vector<8x32xf32> to vector<8x32xbf16>
    %cst_162 = arith.constant dense<0.000000e+00> : vector<8x32xf32>
    %406 = tpu.matmul %405, %330, %cst_162 {dimension_numbers = #tpu.dot_dimension_numbers<[1], [0], [0], [1], [0, 0, 1, 1], [], []>} : vector<8x32xbf16>, vector<32x32xbf16>, vector<8x32xf32> -> vector<8x32xf32>
    %cst_163 = arith.constant dense<0.000000e+00> : vector<8x32xf32>
    %407 = tpu.matmul %405, %331, %cst_163 {dimension_numbers = #tpu.dot_dimension_numbers<[1], [0], [0], [1], [0, 0, 1, 1], [], []>} : vector<8x32xbf16>, vector<32x32xbf16>, vector<8x32xf32> -> vector<8x32xf32>
    %cst_164 = arith.constant dense<0.000000e+00> : vector<8x32xf32>
    %408 = tpu.matmul %405, %332, %cst_164 {dimension_numbers = #tpu.dot_dimension_numbers<[1], [0], [0], [1], [0, 0, 1, 1], [], []>} : vector<8x32xbf16>, vector<32x32xbf16>, vector<8x32xf32> -> vector<8x32xf32>
    %409 = arith.index_cast %404 : i32 to index
    %c0_165 = arith.constant 0 : index
    %410 = vector.load %arg20[%409, %c0_165] : memref<64x32xf32, #tpu.memory_space<vmem>>, vector<8x32xf32>
    %411 = arith.addf %410, %406 : vector<8x32xf32>
    %412 = arith.negf %411 : vector<8x32xf32>
    %413 = math.exp %412 : vector<8x32xf32>
    %cst_166 = arith.constant 1.000000e+00 : f32
    %414 = vector.broadcast %cst_166 : f32 to vector<8x32xf32>
    %415 = arith.addf %414, %413 : vector<8x32xf32>
    %416 = arith.divf %414, %415 : vector<8x32xf32>
    %417 = arith.index_cast %404 : i32 to index
    %c0_167 = arith.constant 0 : index
    %418 = vector.load %arg21[%417, %c0_167] : memref<64x32xf32, #tpu.memory_space<vmem>>, vector<8x32xf32>
    %419 = arith.addf %418, %407 : vector<8x32xf32>
    %420 = arith.negf %419 : vector<8x32xf32>
    %421 = math.exp %420 : vector<8x32xf32>
    %cst_168 = arith.constant 1.000000e+00 : f32
    %422 = vector.broadcast %cst_168 : f32 to vector<8x32xf32>
    %423 = arith.addf %422, %421 : vector<8x32xf32>
    %424 = arith.divf %422, %423 : vector<8x32xf32>
    %425 = arith.index_cast %404 : i32 to index
    %c0_169 = arith.constant 0 : index
    %426 = vector.load %arg22[%425, %c0_169] : memref<64x32xf32, #tpu.memory_space<vmem>>, vector<8x32xf32>
    %427 = vector.broadcast %333 : vector<1x32xf32> to vector<8x32xf32>
    %428 = arith.addf %408, %427 : vector<8x32xf32>
    %429 = arith.mulf %416, %428 : vector<8x32xf32>
    %430 = arith.addf %426, %429 : vector<8x32xf32>
    %431 = math.tanh %430 : vector<8x32xf32>
    %cst_170 = arith.constant 1.000000e+00 : f32
    %432 = vector.broadcast %cst_170 : f32 to vector<8x32xf32>
    %433 = arith.subf %432, %424 : vector<8x32xf32>
    %434 = arith.mulf %433, %431 : vector<8x32xf32>
    %435 = arith.mulf %424, %402 : vector<8x32xf32>
    %436 = arith.addf %434, %435 : vector<8x32xf32>
    %c3_i32_171 = arith.constant 3 : i32
    %c8_i32_172 = arith.constant 8 : i32
    %437 = arith.muli %c3_i32_171, %c8_i32_172 : i32
    %438 = tpu.assume_multiple %437, 8 : i32
    %439 = arith.truncf %436 : vector<8x32xf32> to vector<8x32xbf16>
    %cst_173 = arith.constant dense<0.000000e+00> : vector<8x32xf32>
    %440 = tpu.matmul %439, %330, %cst_173 {dimension_numbers = #tpu.dot_dimension_numbers<[1], [0], [0], [1], [0, 0, 1, 1], [], []>} : vector<8x32xbf16>, vector<32x32xbf16>, vector<8x32xf32> -> vector<8x32xf32>
    %cst_174 = arith.constant dense<0.000000e+00> : vector<8x32xf32>
    %441 = tpu.matmul %439, %331, %cst_174 {dimension_numbers = #tpu.dot_dimension_numbers<[1], [0], [0], [1], [0, 0, 1, 1], [], []>} : vector<8x32xbf16>, vector<32x32xbf16>, vector<8x32xf32> -> vector<8x32xf32>
    %cst_175 = arith.constant dense<0.000000e+00> : vector<8x32xf32>
    %442 = tpu.matmul %439, %332, %cst_175 {dimension_numbers = #tpu.dot_dimension_numbers<[1], [0], [0], [1], [0, 0, 1, 1], [], []>} : vector<8x32xbf16>, vector<32x32xbf16>, vector<8x32xf32> -> vector<8x32xf32>
    %443 = arith.index_cast %438 : i32 to index
    %c0_176 = arith.constant 0 : index
    %444 = vector.load %arg20[%443, %c0_176] : memref<64x32xf32, #tpu.memory_space<vmem>>, vector<8x32xf32>
    %445 = arith.addf %444, %440 : vector<8x32xf32>
    %446 = arith.negf %445 : vector<8x32xf32>
    %447 = math.exp %446 : vector<8x32xf32>
    %cst_177 = arith.constant 1.000000e+00 : f32
    %448 = vector.broadcast %cst_177 : f32 to vector<8x32xf32>
    %449 = arith.addf %448, %447 : vector<8x32xf32>
    %450 = arith.divf %448, %449 : vector<8x32xf32>
    %451 = arith.index_cast %438 : i32 to index
    %c0_178 = arith.constant 0 : index
    %452 = vector.load %arg21[%451, %c0_178] : memref<64x32xf32, #tpu.memory_space<vmem>>, vector<8x32xf32>
    %453 = arith.addf %452, %441 : vector<8x32xf32>
    %454 = arith.negf %453 : vector<8x32xf32>
    %455 = math.exp %454 : vector<8x32xf32>
    %cst_179 = arith.constant 1.000000e+00 : f32
    %456 = vector.broadcast %cst_179 : f32 to vector<8x32xf32>
    %457 = arith.addf %456, %455 : vector<8x32xf32>
    %458 = arith.divf %456, %457 : vector<8x32xf32>
    %459 = arith.index_cast %438 : i32 to index
    %c0_180 = arith.constant 0 : index
    %460 = vector.load %arg22[%459, %c0_180] : memref<64x32xf32, #tpu.memory_space<vmem>>, vector<8x32xf32>
    %461 = vector.broadcast %333 : vector<1x32xf32> to vector<8x32xf32>
    %462 = arith.addf %442, %461 : vector<8x32xf32>
    %463 = arith.mulf %450, %462 : vector<8x32xf32>
    %464 = arith.addf %460, %463 : vector<8x32xf32>
    %465 = math.tanh %464 : vector<8x32xf32>
    %cst_181 = arith.constant 1.000000e+00 : f32
    %466 = vector.broadcast %cst_181 : f32 to vector<8x32xf32>
    %467 = arith.subf %466, %458 : vector<8x32xf32>
    %468 = arith.mulf %467, %465 : vector<8x32xf32>
    %469 = arith.mulf %458, %436 : vector<8x32xf32>
    %470 = arith.addf %468, %469 : vector<8x32xf32>
    %c4_i32_182 = arith.constant 4 : i32
    %c8_i32_183 = arith.constant 8 : i32
    %471 = arith.muli %c4_i32_182, %c8_i32_183 : i32
    %472 = tpu.assume_multiple %471, 8 : i32
    %473 = arith.truncf %470 : vector<8x32xf32> to vector<8x32xbf16>
    %cst_184 = arith.constant dense<0.000000e+00> : vector<8x32xf32>
    %474 = tpu.matmul %473, %330, %cst_184 {dimension_numbers = #tpu.dot_dimension_numbers<[1], [0], [0], [1], [0, 0, 1, 1], [], []>} : vector<8x32xbf16>, vector<32x32xbf16>, vector<8x32xf32> -> vector<8x32xf32>
    %cst_185 = arith.constant dense<0.000000e+00> : vector<8x32xf32>
    %475 = tpu.matmul %473, %331, %cst_185 {dimension_numbers = #tpu.dot_dimension_numbers<[1], [0], [0], [1], [0, 0, 1, 1], [], []>} : vector<8x32xbf16>, vector<32x32xbf16>, vector<8x32xf32> -> vector<8x32xf32>
    %cst_186 = arith.constant dense<0.000000e+00> : vector<8x32xf32>
    %476 = tpu.matmul %473, %332, %cst_186 {dimension_numbers = #tpu.dot_dimension_numbers<[1], [0], [0], [1], [0, 0, 1, 1], [], []>} : vector<8x32xbf16>, vector<32x32xbf16>, vector<8x32xf32> -> vector<8x32xf32>
    %477 = arith.index_cast %472 : i32 to index
    %c0_187 = arith.constant 0 : index
    %478 = vector.load %arg20[%477, %c0_187] : memref<64x32xf32, #tpu.memory_space<vmem>>, vector<8x32xf32>
    %479 = arith.addf %478, %474 : vector<8x32xf32>
    %480 = arith.negf %479 : vector<8x32xf32>
    %481 = math.exp %480 : vector<8x32xf32>
    %cst_188 = arith.constant 1.000000e+00 : f32
    %482 = vector.broadcast %cst_188 : f32 to vector<8x32xf32>
    %483 = arith.addf %482, %481 : vector<8x32xf32>
    %484 = arith.divf %482, %483 : vector<8x32xf32>
    %485 = arith.index_cast %472 : i32 to index
    %c0_189 = arith.constant 0 : index
    %486 = vector.load %arg21[%485, %c0_189] : memref<64x32xf32, #tpu.memory_space<vmem>>, vector<8x32xf32>
    %487 = arith.addf %486, %475 : vector<8x32xf32>
    %488 = arith.negf %487 : vector<8x32xf32>
    %489 = math.exp %488 : vector<8x32xf32>
    %cst_190 = arith.constant 1.000000e+00 : f32
    %490 = vector.broadcast %cst_190 : f32 to vector<8x32xf32>
    %491 = arith.addf %490, %489 : vector<8x32xf32>
    %492 = arith.divf %490, %491 : vector<8x32xf32>
    %493 = arith.index_cast %472 : i32 to index
    %c0_191 = arith.constant 0 : index
    %494 = vector.load %arg22[%493, %c0_191] : memref<64x32xf32, #tpu.memory_space<vmem>>, vector<8x32xf32>
    %495 = vector.broadcast %333 : vector<1x32xf32> to vector<8x32xf32>
    %496 = arith.addf %476, %495 : vector<8x32xf32>
    %497 = arith.mulf %484, %496 : vector<8x32xf32>
    %498 = arith.addf %494, %497 : vector<8x32xf32>
    %499 = math.tanh %498 : vector<8x32xf32>
    %cst_192 = arith.constant 1.000000e+00 : f32
    %500 = vector.broadcast %cst_192 : f32 to vector<8x32xf32>
    %501 = arith.subf %500, %492 : vector<8x32xf32>
    %502 = arith.mulf %501, %499 : vector<8x32xf32>
    %503 = arith.mulf %492, %470 : vector<8x32xf32>
    %504 = arith.addf %502, %503 : vector<8x32xf32>
    %c5_i32_193 = arith.constant 5 : i32
    %c8_i32_194 = arith.constant 8 : i32
    %505 = arith.muli %c5_i32_193, %c8_i32_194 : i32
    %506 = tpu.assume_multiple %505, 8 : i32
    %507 = arith.truncf %504 : vector<8x32xf32> to vector<8x32xbf16>
    %cst_195 = arith.constant dense<0.000000e+00> : vector<8x32xf32>
    %508 = tpu.matmul %507, %330, %cst_195 {dimension_numbers = #tpu.dot_dimension_numbers<[1], [0], [0], [1], [0, 0, 1, 1], [], []>} : vector<8x32xbf16>, vector<32x32xbf16>, vector<8x32xf32> -> vector<8x32xf32>
    %cst_196 = arith.constant dense<0.000000e+00> : vector<8x32xf32>
    %509 = tpu.matmul %507, %331, %cst_196 {dimension_numbers = #tpu.dot_dimension_numbers<[1], [0], [0], [1], [0, 0, 1, 1], [], []>} : vector<8x32xbf16>, vector<32x32xbf16>, vector<8x32xf32> -> vector<8x32xf32>
    %cst_197 = arith.constant dense<0.000000e+00> : vector<8x32xf32>
    %510 = tpu.matmul %507, %332, %cst_197 {dimension_numbers = #tpu.dot_dimension_numbers<[1], [0], [0], [1], [0, 0, 1, 1], [], []>} : vector<8x32xbf16>, vector<32x32xbf16>, vector<8x32xf32> -> vector<8x32xf32>
    %511 = arith.index_cast %506 : i32 to index
    %c0_198 = arith.constant 0 : index
    %512 = vector.load %arg20[%511, %c0_198] : memref<64x32xf32, #tpu.memory_space<vmem>>, vector<8x32xf32>
    %513 = arith.addf %512, %508 : vector<8x32xf32>
    %514 = arith.negf %513 : vector<8x32xf32>
    %515 = math.exp %514 : vector<8x32xf32>
    %cst_199 = arith.constant 1.000000e+00 : f32
    %516 = vector.broadcast %cst_199 : f32 to vector<8x32xf32>
    %517 = arith.addf %516, %515 : vector<8x32xf32>
    %518 = arith.divf %516, %517 : vector<8x32xf32>
    %519 = arith.index_cast %506 : i32 to index
    %c0_200 = arith.constant 0 : index
    %520 = vector.load %arg21[%519, %c0_200] : memref<64x32xf32, #tpu.memory_space<vmem>>, vector<8x32xf32>
    %521 = arith.addf %520, %509 : vector<8x32xf32>
    %522 = arith.negf %521 : vector<8x32xf32>
    %523 = math.exp %522 : vector<8x32xf32>
    %cst_201 = arith.constant 1.000000e+00 : f32
    %524 = vector.broadcast %cst_201 : f32 to vector<8x32xf32>
    %525 = arith.addf %524, %523 : vector<8x32xf32>
    %526 = arith.divf %524, %525 : vector<8x32xf32>
    %527 = arith.index_cast %506 : i32 to index
    %c0_202 = arith.constant 0 : index
    %528 = vector.load %arg22[%527, %c0_202] : memref<64x32xf32, #tpu.memory_space<vmem>>, vector<8x32xf32>
    %529 = vector.broadcast %333 : vector<1x32xf32> to vector<8x32xf32>
    %530 = arith.addf %510, %529 : vector<8x32xf32>
    %531 = arith.mulf %518, %530 : vector<8x32xf32>
    %532 = arith.addf %528, %531 : vector<8x32xf32>
    %533 = math.tanh %532 : vector<8x32xf32>
    %cst_203 = arith.constant 1.000000e+00 : f32
    %534 = vector.broadcast %cst_203 : f32 to vector<8x32xf32>
    %535 = arith.subf %534, %526 : vector<8x32xf32>
    %536 = arith.mulf %535, %533 : vector<8x32xf32>
    %537 = arith.mulf %526, %504 : vector<8x32xf32>
    %538 = arith.addf %536, %537 : vector<8x32xf32>
    %c6_i32_204 = arith.constant 6 : i32
    %c8_i32_205 = arith.constant 8 : i32
    %539 = arith.muli %c6_i32_204, %c8_i32_205 : i32
    %540 = tpu.assume_multiple %539, 8 : i32
    %541 = arith.truncf %538 : vector<8x32xf32> to vector<8x32xbf16>
    %cst_206 = arith.constant dense<0.000000e+00> : vector<8x32xf32>
    %542 = tpu.matmul %541, %330, %cst_206 {dimension_numbers = #tpu.dot_dimension_numbers<[1], [0], [0], [1], [0, 0, 1, 1], [], []>} : vector<8x32xbf16>, vector<32x32xbf16>, vector<8x32xf32> -> vector<8x32xf32>
    %cst_207 = arith.constant dense<0.000000e+00> : vector<8x32xf32>
    %543 = tpu.matmul %541, %331, %cst_207 {dimension_numbers = #tpu.dot_dimension_numbers<[1], [0], [0], [1], [0, 0, 1, 1], [], []>} : vector<8x32xbf16>, vector<32x32xbf16>, vector<8x32xf32> -> vector<8x32xf32>
    %cst_208 = arith.constant dense<0.000000e+00> : vector<8x32xf32>
    %544 = tpu.matmul %541, %332, %cst_208 {dimension_numbers = #tpu.dot_dimension_numbers<[1], [0], [0], [1], [0, 0, 1, 1], [], []>} : vector<8x32xbf16>, vector<32x32xbf16>, vector<8x32xf32> -> vector<8x32xf32>
    %545 = arith.index_cast %540 : i32 to index
    %c0_209 = arith.constant 0 : index
    %546 = vector.load %arg20[%545, %c0_209] : memref<64x32xf32, #tpu.memory_space<vmem>>, vector<8x32xf32>
    %547 = arith.addf %546, %542 : vector<8x32xf32>
    %548 = arith.negf %547 : vector<8x32xf32>
    %549 = math.exp %548 : vector<8x32xf32>
    %cst_210 = arith.constant 1.000000e+00 : f32
    %550 = vector.broadcast %cst_210 : f32 to vector<8x32xf32>
    %551 = arith.addf %550, %549 : vector<8x32xf32>
    %552 = arith.divf %550, %551 : vector<8x32xf32>
    %553 = arith.index_cast %540 : i32 to index
    %c0_211 = arith.constant 0 : index
    %554 = vector.load %arg21[%553, %c0_211] : memref<64x32xf32, #tpu.memory_space<vmem>>, vector<8x32xf32>
    %555 = arith.addf %554, %543 : vector<8x32xf32>
    %556 = arith.negf %555 : vector<8x32xf32>
    %557 = math.exp %556 : vector<8x32xf32>
    %cst_212 = arith.constant 1.000000e+00 : f32
    %558 = vector.broadcast %cst_212 : f32 to vector<8x32xf32>
    %559 = arith.addf %558, %557 : vector<8x32xf32>
    %560 = arith.divf %558, %559 : vector<8x32xf32>
    %561 = arith.index_cast %540 : i32 to index
    %c0_213 = arith.constant 0 : index
    %562 = vector.load %arg22[%561, %c0_213] : memref<64x32xf32, #tpu.memory_space<vmem>>, vector<8x32xf32>
    %563 = vector.broadcast %333 : vector<1x32xf32> to vector<8x32xf32>
    %564 = arith.addf %544, %563 : vector<8x32xf32>
    %565 = arith.mulf %552, %564 : vector<8x32xf32>
    %566 = arith.addf %562, %565 : vector<8x32xf32>
    %567 = math.tanh %566 : vector<8x32xf32>
    %cst_214 = arith.constant 1.000000e+00 : f32
    %568 = vector.broadcast %cst_214 : f32 to vector<8x32xf32>
    %569 = arith.subf %568, %560 : vector<8x32xf32>
    %570 = arith.mulf %569, %567 : vector<8x32xf32>
    %571 = arith.mulf %560, %538 : vector<8x32xf32>
    %572 = arith.addf %570, %571 : vector<8x32xf32>
    %c7_i32_215 = arith.constant 7 : i32
    %c8_i32_216 = arith.constant 8 : i32
    %573 = arith.muli %c7_i32_215, %c8_i32_216 : i32
    %574 = tpu.assume_multiple %573, 8 : i32
    %575 = arith.truncf %572 : vector<8x32xf32> to vector<8x32xbf16>
    %cst_217 = arith.constant dense<0.000000e+00> : vector<8x32xf32>
    %576 = tpu.matmul %575, %330, %cst_217 {dimension_numbers = #tpu.dot_dimension_numbers<[1], [0], [0], [1], [0, 0, 1, 1], [], []>} : vector<8x32xbf16>, vector<32x32xbf16>, vector<8x32xf32> -> vector<8x32xf32>
    %cst_218 = arith.constant dense<0.000000e+00> : vector<8x32xf32>
    %577 = tpu.matmul %575, %331, %cst_218 {dimension_numbers = #tpu.dot_dimension_numbers<[1], [0], [0], [1], [0, 0, 1, 1], [], []>} : vector<8x32xbf16>, vector<32x32xbf16>, vector<8x32xf32> -> vector<8x32xf32>
    %cst_219 = arith.constant dense<0.000000e+00> : vector<8x32xf32>
    %578 = tpu.matmul %575, %332, %cst_219 {dimension_numbers = #tpu.dot_dimension_numbers<[1], [0], [0], [1], [0, 0, 1, 1], [], []>} : vector<8x32xbf16>, vector<32x32xbf16>, vector<8x32xf32> -> vector<8x32xf32>
    %579 = arith.index_cast %574 : i32 to index
    %c0_220 = arith.constant 0 : index
    %580 = vector.load %arg20[%579, %c0_220] : memref<64x32xf32, #tpu.memory_space<vmem>>, vector<8x32xf32>
    %581 = arith.addf %580, %576 : vector<8x32xf32>
    %582 = arith.negf %581 : vector<8x32xf32>
    %583 = math.exp %582 : vector<8x32xf32>
    %cst_221 = arith.constant 1.000000e+00 : f32
    %584 = vector.broadcast %cst_221 : f32 to vector<8x32xf32>
    %585 = arith.addf %584, %583 : vector<8x32xf32>
    %586 = arith.divf %584, %585 : vector<8x32xf32>
    %587 = arith.index_cast %574 : i32 to index
    %c0_222 = arith.constant 0 : index
    %588 = vector.load %arg21[%587, %c0_222] : memref<64x32xf32, #tpu.memory_space<vmem>>, vector<8x32xf32>
    %589 = arith.addf %588, %577 : vector<8x32xf32>
    %590 = arith.negf %589 : vector<8x32xf32>
    %591 = math.exp %590 : vector<8x32xf32>
    %cst_223 = arith.constant 1.000000e+00 : f32
    %592 = vector.broadcast %cst_223 : f32 to vector<8x32xf32>
    %593 = arith.addf %592, %591 : vector<8x32xf32>
    %594 = arith.divf %592, %593 : vector<8x32xf32>
    %595 = arith.index_cast %574 : i32 to index
    %c0_224 = arith.constant 0 : index
    %596 = vector.load %arg22[%595, %c0_224] : memref<64x32xf32, #tpu.memory_space<vmem>>, vector<8x32xf32>
    %597 = vector.broadcast %333 : vector<1x32xf32> to vector<8x32xf32>
    %598 = arith.addf %578, %597 : vector<8x32xf32>
    %599 = arith.mulf %586, %598 : vector<8x32xf32>
    %600 = arith.addf %596, %599 : vector<8x32xf32>
    %601 = math.tanh %600 : vector<8x32xf32>
    %cst_225 = arith.constant 1.000000e+00 : f32
    %602 = vector.broadcast %cst_225 : f32 to vector<8x32xf32>
    %603 = arith.subf %602, %594 : vector<8x32xf32>
    %604 = arith.mulf %603, %601 : vector<8x32xf32>
    %605 = arith.mulf %594, %572 : vector<8x32xf32>
    %606 = arith.addf %604, %605 : vector<8x32xf32>
    %c8_i32_226 = arith.constant 8 : i32
    %607 = arith.truncf %606 : vector<8x32xf32> to vector<8x32xbf16>
    %c0_227 = arith.constant 0 : index
    %c0_228 = arith.constant 0 : index
    %608 = vector.load %arg17[%c0_227, %c0_228] : memref<32x4xbf16, #tpu.memory_space<vmem>>, vector<32x4xbf16>
    %cst_229 = arith.constant dense<0.000000e+00> : vector<8x4xf32>
    %609 = tpu.matmul %607, %608, %cst_229 {dimension_numbers = #tpu.dot_dimension_numbers<[1], [0], [0], [1], [0, 0, 1, 1], [], []>} : vector<8x32xbf16>, vector<32x4xbf16>, vector<8x4xf32> -> vector<8x4xf32>
    %c0_230 = arith.constant 0 : index
    %c0_231 = arith.constant 0 : index
    %610 = vector.load %arg18[%c0_230, %c0_231] : memref<1x4xf32, #tpu.memory_space<vmem>>, vector<1x4xf32>
    %611 = vector.broadcast %610 : vector<1x4xf32> to vector<8x4xf32>
    %612 = arith.addf %609, %611 : vector<8x4xf32>
    %c0_232 = arith.constant 0 : index
    %c0_233 = arith.constant 0 : index
    %613 = vector.load %arg19[%c0_232, %c0_233] : memref<8x4xf32, #tpu.memory_space<vmem>>, vector<8x4xf32>
    tpu.vector_store %arg19[%c0_232, %c0_233], %612 {strides = array<i32>} : memref<8x4xf32, #tpu.memory_space<vmem>>, vector<8x4xf32>,
    return
  }
}

</mosaic_0001>

<llo_original>
// kernel: tpu_custom_call.1
$region0: #{tpu_custom_call.1}
  #allocation0 [shape = 'u32[]', space=smem, size = 0x4, offset = 0x4, fixed_abs, tag = 'smem constant byte address 0x4 - core index']
  #allocation1 [shape = 'u32[144,128]{1,0:T(1,128)}', space=vmem, size = 0x12000, scoped, tag = 'internal scratch']
  #allocation2 [shape = 'f32[64,32]{1,0:T(8,128)}', space=vmem, size = 0x8000, scoped, tag = 'scratch operand']
  #allocation3 [shape = 'f32[64,32]{1,0:T(8,128)}', space=vmem, size = 0x8000, scoped, tag = 'scratch operand']
  #allocation4 [shape = 'f32[64,32]{1,0:T(8,128)}', space=vmem, size = 0x8000, scoped, tag = 'scratch operand']
  #allocation5 [shape = 'f32[64,32]{1,0:T(8,128)}', space=vmem, size = 0x8000, scoped, tag = 'scratch operand']
  %s0 = inlined_call_operand.vmem [shape: bf16[64,4], index: 0, kind: input, shape index: {}]
  %s1 = inlined_call_operand.hbm [shape: bf16[4,96], index: 1, kind: input, shape index: {}]
  %s2 = inlined_call_operand.vmem [shape: bf16[32,32], index: 2, kind: input, shape index: {}]
  %s3 = inlined_call_operand.vmem [shape: bf16[32,32], index: 3, kind: input, shape index: {}]
  %s4 = inlined_call_operand.vmem [shape: bf16[32,32], index: 4, kind: input, shape index: {}]
  %s5 = inlined_call_operand.vmem [shape: f32[1,32], index: 5, kind: input, shape index: {}]
  %s6 = inlined_call_operand.hbm [shape: f32[1,32], index: 6, kind: input, shape index: {}]
  %s7 = inlined_call_operand.hbm [shape: f32[1,32], index: 7, kind: input, shape index: {}]
  %s8 = inlined_call_operand.hbm [shape: f32[1,32], index: 8, kind: input, shape index: {}]
  %s9 = inlined_call_operand.vmem [shape: bf16[32,96], index: 9, kind: input, shape index: {}]
  %s10 = inlined_call_operand.vmem [shape: bf16[32,32], index: 10, kind: input, shape index: {}]
  %s11 = inlined_call_operand.hbm [shape: bf16[32,32], index: 11, kind: input, shape index: {}]
  %s12 = inlined_call_operand.vmem [shape: bf16[32,32], index: 12, kind: input, shape index: {}]
  %s13 = inlined_call_operand.vmem [shape: f32[1,32], index: 13, kind: input, shape index: {}]
  %s14 = inlined_call_operand.vmem [shape: f32[1,32], index: 14, kind: input, shape index: {}]
  %s15 = inlined_call_operand.vmem [shape: f32[1,32], index: 15, kind: input, shape index: {}]
  %s16 = inlined_call_operand.vmem [shape: f32[1,32], index: 16, kind: input, shape index: {}]
  %s17 = inlined_call_operand.vmem [shape: bf16[32,4], index: 17, kind: input, shape index: {}]
  %s18 = inlined_call_operand.vmem [shape: f32[1,4], index: 18, kind: input, shape index: {}]
  %s19 = inlined_call_operand.vmem [shape: f32[8,4], index: 19, kind: output, shape index: {}]
  %s20 = sld [smem:[#allocation0]]
  $region106: #{tpu_custom_call.1} parent=0
    _
  %s22 = ssub.s32 1, %s20
  %s23 = scalar_select 0, %s22, %s20
  $region1: #{tpu_custom_call.1} parent=0
    #allocation6 [shape = 'u8[1024]{0}', space=vmem, size = 0x400, scoped, tag = 'input window, operand 1, single buffered']
    #allocation7 [shape = 's32[1]{0}', space=sflag, size = 0x4, scoped, tag = 'scoped memory for tpu_custom_call.1']
    #allocation8 [shape = 'u8[512]{0}', space=vmem, size = 0x400, scoped, tag = 'input window, operand 6, single buffered']
    #allocation9 [shape = 's32[1]{0}', space=sflag, size = 0x4, scoped, tag = 'scoped memory for tpu_custom_call.1']
    #allocation10 [shape = 'u8[512]{0}', space=vmem, size = 0x400, scoped, tag = 'input window, operand 7, single buffered']
    #allocation11 [shape = 'u8[512]{0}', space=vmem, size = 0x400, scoped, tag = 'input window, operand 8, single buffered']
    #allocation12 [shape = 's32[1]{0}', space=sflag, size = 0x4, scoped, tag = 'scoped memory for tpu_custom_call.1']
    #allocation13 [shape = 'u8[8192]{0}', space=vmem, size = 0x2000, scoped, tag = 'input window, operand 11, single buffered']
    %24 = vsyncpa [#allocation7], 0
    %25 = vsyncpa [#allocation9], 0
    %26 = vsyncpa [#allocation12], 0
    // Predicated region
    $region2: #{tpu_custom_call.1} parent=1 // pred_check
      _
    $region3: #{tpu_custom_call.1} parent=1 // pred_check_branch
      %28 = sbr.rel (0) target = $region5
    $region4: #{tpu_custom_call.1} parent=1 // pred_region
      _
    $region5: #{tpu_custom_call.1} parent=1 // pred_fallthru
      _
    // Predicated region
    $region6: #{tpu_custom_call.1} parent=1 // pred_check
      _
    $region7: #{tpu_custom_call.1} parent=1 // pred_check_branch
      %30 = sbr.rel (0) target = $region9
    $region8: #{tpu_custom_call.1} parent=1 // pred_region
      %s32 = ssub.s32 32, 32
      %33 = vsyncadd [#allocation7], %s32
      %s35 = sshll.u32 [#allocation6], 4
      %s36 = int_to_ptr.vmem [resolvable:$true] %s35
      %38 = dma.hbm_to_vmem [thread:$0]  %s1, 32, %s36, [#allocation7]
    $region9: #{tpu_custom_call.1} parent=1 // pred_fallthru
      _
    // Predicated region
    $region10: #{tpu_custom_call.1} parent=1 // pred_check
      _
    $region11: #{tpu_custom_call.1} parent=1 // pred_check_branch
      %40 = sbr.rel (0) target = $region13
    $region12: #{tpu_custom_call.1} parent=1 // pred_region
      _
    $region13: #{tpu_custom_call.1} parent=1 // pred_fallthru
      _
    // Predicated region
    $region14: #{tpu_custom_call.1} parent=1 // pred_check
      _
    $region15: #{tpu_custom_call.1} parent=1 // pred_check_branch
      %42 = sbr.rel (0) target = $region17
    $region16: #{tpu_custom_call.1} parent=1 // pred_region
      _
    $region17: #{tpu_custom_call.1} parent=1 // pred_fallthru
      _
    // Predicated region
    $region18: #{tpu_custom_call.1} parent=1 // pred_check
      _
    $region19: #{tpu_custom_call.1} parent=1 // pred_check_branch
      %44 = sbr.rel (0) target = $region21
    $region20: #{tpu_custom_call.1} parent=1 // pred_region
      _
    $region21: #{tpu_custom_call.1} parent=1 // pred_fallthru
      _
    // Predicated region
    $region22: #{tpu_custom_call.1} parent=1 // pred_check
      _
    $region23: #{tpu_custom_call.1} parent=1 // pred_check_branch
      %46 = sbr.rel (0) target = $region25
    $region24: #{tpu_custom_call.1} parent=1 // pred_region
      _
    $region25: #{tpu_custom_call.1} parent=1 // pred_fallthru
      _
    // Predicated region
    $region26: #{tpu_custom_call.1} parent=1 // pred_check
      _
    $region27: #{tpu_custom_call.1} parent=1 // pred_check_branch
      %48 = sbr.rel (0) target = $region29
    $region28: #{tpu_custom_call.1} parent=1 // pred_region
      %s50 = ssub.s32 16, 16
      %51 = vsyncadd [#allocation9], %s50
      %s53 = sshll.u32 [#allocation8], 4
      %s54 = int_to_ptr.vmem [resolvable:$true] %s53
      %56 = dma.hbm_to_vmem [thread:$0]  %s6, 16, %s54, [#allocation9]
    $region29: #{tpu_custom_call.1} parent=1 // pred_fallthru
      _
    // Predicated region
    $region30: #{tpu_custom_call.1} parent=1 // pred_check
      _
    $region31: #{tpu_custom_call.1} parent=1 // pred_check_branch
      %58 = sbr.rel (0) target = $region33
    $region32: #{tpu_custom_call.1} parent=1 // pred_region
      %s60 = ssub.s32 16, 16
      %61 = vsyncadd [#allocation9], %s60
      %s63 = sshll.u32 [#allocation10], 4
      %s64 = int_to_ptr.vmem [resolvable:$true] %s63
      %66 = dma.hbm_to_vmem [thread:$0]  %s7, 16, %s64, [#allocation9]
    $region33: #{tpu_custom_call.1} parent=1 // pred_fallthru
      _
    // Predicated region
    $region34: #{tpu_custom_call.1} parent=1 // pred_check
      _
    $region35: #{tpu_custom_call.1} parent=1 // pred_check_branch
      %68 = sbr.rel (0) target = $region37
    $region36: #{tpu_custom_call.1} parent=1 // pred_region
      %s70 = ssub.s32 16, 16
      %71 = vsyncadd [#allocation12], %s70
      %s73 = sshll.u32 [#allocation11], 4
      %s74 = int_to_ptr.vmem [resolvable:$true] %s73
      %76 = dma.hbm_to_vmem [thread:$0]  %s8, 16, %s74, [#allocation12]
    $region37: #{tpu_custom_call.1} parent=1 // pred_fallthru
      _
    // Predicated region
    $region38: #{tpu_custom_call.1} parent=1 // pred_check
      _
    $region39: #{tpu_custom_call.1} parent=1 // pred_check_branch
      %78 = sbr.rel (0) target = $region41
    $region40: #{tpu_custom_call.1} parent=1 // pred_region
      _
    $region41: #{tpu_custom_call.1} parent=1 // pred_fallthru
      _
    // Predicated region
    $region42: #{tpu_custom_call.1} parent=1 // pred_check
      _
    $region43: #{tpu_custom_call.1} parent=1 // pred_check_branch
      %80 = sbr.rel (0) target = $region45
    $region44: #{tpu_custom_call.1} parent=1 // pred_region
      _
    $region45: #{tpu_custom_call.1} parent=1 // pred_fallthru
      _
    // Predicated region
    $region46: #{tpu_custom_call.1} parent=1 // pred_check
      _
    $region47: #{tpu_custom_call.1} parent=1 // pred_check_branch
      %82 = sbr.rel (0) target = $region49
    $region48: #{tpu_custom_call.1} parent=1 // pred_region
      %s84 = ssub.s32 256, 256
      %85 = vsyncadd [#allocation12], %s84
      %s86 = sshll.u32 [#allocation13], 4
      %s87 = int_to_ptr.vmem [resolvable:$true] %s86
      %92 = dma.hbm_to_vmem [thread:$0]  %s11, 256, %s87, [#allocation12], 64, 64, 4
    $region49: #{tpu_custom_call.1} parent=1 // pred_fallthru
      _
    // Predicated region
    $region50: #{tpu_custom_call.1} parent=1 // pred_check
      _
    $region51: #{tpu_custom_call.1} parent=1 // pred_check_branch
      %94 = sbr.rel (0) target = $region53
    $region52: #{tpu_custom_call.1} parent=1 // pred_region
      _
    $region53: #{tpu_custom_call.1} parent=1 // pred_fallthru
      _
    // Predicated region
    $region54: #{tpu_custom_call.1} parent=1 // pred_check
      _
    $region55: #{tpu_custom_call.1} parent=1 // pred_check_branch
      %96 = sbr.rel (0) target = $region57
    $region56: #{tpu_custom_call.1} parent=1 // pred_region
      _
    $region57: #{tpu_custom_call.1} parent=1 // pred_fallthru
      _
    // Predicated region
    $region58: #{tpu_custom_call.1} parent=1 // pred_check
      _
    $region59: #{tpu_custom_call.1} parent=1 // pred_check_branch
      %98 = sbr.rel (0) target = $region61
    $region60: #{tpu_custom_call.1} parent=1 // pred_region
      _
    $region61: #{tpu_custom_call.1} parent=1 // pred_fallthru
      _
    // Predicated region
    $region62: #{tpu_custom_call.1} parent=1 // pred_check
      _
    $region63: #{tpu_custom_call.1} parent=1 // pred_check_branch
      %100 = sbr.rel (0) target = $region65
    $region64: #{tpu_custom_call.1} parent=1 // pred_region
      _
    $region65: #{tpu_custom_call.1} parent=1 // pred_fallthru
      _
    // Predicated region
    $region66: #{tpu_custom_call.1} parent=1 // pred_check
      _
    $region67: #{tpu_custom_call.1} parent=1 // pred_check_branch
      %102 = sbr.rel (0) target = $region69
    $region68: #{tpu_custom_call.1} parent=1 // pred_region
      _
    $region69: #{tpu_custom_call.1} parent=1 // pred_fallthru
      _
    // Predicated region
    $region70: #{tpu_custom_call.1} parent=1 // pred_check
      _
    $region71: #{tpu_custom_call.1} parent=1 // pred_check_branch
      %104 = sbr.rel (0) target = $region73
    $region72: #{tpu_custom_call.1} parent=1 // pred_region
      _
    $region73: #{tpu_custom_call.1} parent=1 // pred_fallthru
      _
    // Predicated region
    $region74: #{tpu_custom_call.1} parent=1 // pred_check
      _
    $region75: #{tpu_custom_call.1} parent=1 // pred_check_branch
      %106 = sbr.rel (0) target = $region77
    $region76: #{tpu_custom_call.1} parent=1 // pred_region
      _
    $region77: #{tpu_custom_call.1} parent=1 // pred_fallthru
      _
    // Predicated region
    $region78: #{tpu_custom_call.1} parent=1 // pred_check
      _
    $region79: #{tpu_custom_call.1} parent=1 // pred_check_branch
      %108 = sbr.rel (0) target = $region81
    $region80: #{tpu_custom_call.1} parent=1 // pred_region
      %109 = dma.done [#allocation7], 32
    $region81: #{tpu_custom_call.1} parent=1 // pred_fallthru
      _
    // Predicated region
    $region82: #{tpu_custom_call.1} parent=1 // pred_check
      _
    $region83: #{tpu_custom_call.1} parent=1 // pred_check_branch
      %111 = sbr.rel (0) target = $region85
    $region84: #{tpu_custom_call.1} parent=1 // pred_region
      %112 = dma.done [#allocation9], 16
    $region85: #{tpu_custom_call.1} parent=1 // pred_fallthru
      _
    // Predicated region
    $region86: #{tpu_custom_call.1} parent=1 // pred_check
      _
    $region87: #{tpu_custom_call.1} parent=1 // pred_check_branch
      %114 = sbr.rel (0) target = $region89
    $region88: #{tpu_custom_call.1} parent=1 // pred_region
      %115 = dma.done [#allocation9], 16
    $region89: #{tpu_custom_call.1} parent=1 // pred_fallthru
      _
    // Predicated region
    $region90: #{tpu_custom_call.1} parent=1 // pred_check
      _
    $region91: #{tpu_custom_call.1} parent=1 // pred_check_branch
      %117 = sbr.rel (0) target = $region93
    $region92: #{tpu_custom_call.1} parent=1 // pred_region
      %118 = dma.done [#allocation12], 16
    $region93: #{tpu_custom_call.1} parent=1 // pred_fallthru
      _
    // Predicated region
    $region94: #{tpu_custom_call.1} parent=1 // pred_check
      _
    $region95: #{tpu_custom_call.1} parent=1 // pred_check_branch
      %120 = sbr.rel (0) target = $region97
    $region96: #{tpu_custom_call.1} parent=1 // pred_region
      %121 = dma.done [#allocation12], 256
    $region97: #{tpu_custom_call.1} parent=1 // pred_fallthru
      _
    %v123 = vld [vmem:[%s0] sm:$0xf]
    %v124 = vld [vmem:[%s0 + $0x4] sm:$0xf]
    %v125 = vld [vmem:[%s0 + $0x8] sm:$0xf]
    %v126 = vld [vmem:[%s0 + $0xc] sm:$0xf]
    %v127 = vld [vmem:[%s0 + $0x10] sm:$0xf]
    %v128 = vld [vmem:[%s0 + $0x14] sm:$0xf]
    %v129 = vld [vmem:[%s0 + $0x18] sm:$0xf]
    %v130 = vld [vmem:[%s0 + $0x1c] sm:$0xf]
    %v131 = vld [vmem:[#allocation6] sm:$0x3]
    %v140 = vunpack.c.l.b16 %v123
    %v141 = vunpack.c.l.b16 %v124
    %v142 = vunpack.c.l.b16 %v125
    %v143 = vunpack.c.l.b16 %v126
    %v144 = vunpack.c.l.b16 %v127
    %v145 = vunpack.c.l.b16 %v128
    %v146 = vunpack.c.l.b16 %v129
    %v147 = vunpack.c.l.b16 %v130
    %v148 = vpack.c.b16 %v141, %v140
    %v149 = vpack.c.b16 %v143, %v142
    %v150 = vpack.c.b16 %v145, %v144
    %v151 = vpack.c.b16 %v147, %v146
    %vm152 = vcmask 31744
    %v154 = vsel %vm152, %v148, 0
    %v157 = vsel %vm152, %v149, 0
    %v160 = vsel %vm152, %v150, 0
    %v163 = vsel %vm152, %v151, 0
    %vm165 = vcmask 1041408
    %v167 = vsel %vm165, %v131, 0
    %169 = vmatprep.subr.bf16.mxu0 0
    %170 = vmatpush1.bf16.msra.mxu0 %v167
    %171 = vmatprep.subr.bf16.mxu0 0
    %172 = vmatpush1.bf16.msra.mxu0 0
    %173 = vmatprep.subr.bf16.mxu0 0
    %174 = vmatpush1.bf16.msra.mxu0 0
    %175 = vmatprep.subr.bf16.mxu0 0
    %176 = vmatpush1.bf16.msra.mxu0 0
    %177 = vmatprep.subr.bf16.mxu0 0
    %178 = vmatpush1.bf16.msra.mxu0 0
    %179 = vmatprep.subr.bf16.mxu0 0
    %180 = vmatpush1.bf16.msra.mxu0 0
    %181 = vmatprep.subr.bf16.mxu0 0
    %182 = vmatpush1.bf16.msra.mxu0 0
    %183 = vmatprep.subr.bf16.mxu0 0
    %184 = vmatpush1.bf16.msra.mxu0 0
    %185 = vmatprep.subr.bf16.mxu0 0
    %186 = vmatpush1.bf16.msra.mxu0 0
    %187 = vmatprep.subr.bf16.mxu0 0
    %188 = vmatpush1.bf16.msra.mxu0 0
    %189 = vmatprep.subr.bf16.mxu0 0
    %190 = vmatpush1.bf16.msra.mxu0 0
    %191 = vmatprep.subr.bf16.mxu0 0
    %192 = vmatpush1.bf16.msra.mxu0 0
    %193 = vmatprep.subr.bf16.mxu0 0
    %194 = vmatpush1.bf16.msra.mxu0 0
    %195 = vmatprep.subr.bf16.mxu0 0
    %196 = vmatpush1.bf16.msra.mxu0 0
    %197 = vmatprep.subr.bf16.mxu0 0
    %198 = vmatpush1.bf16.msra.mxu0 0
    %199 = vmatprep.subr.bf16.mxu0 0
    %200 = vmatpush1.bf16.msra.mxu0 0
    %201 = vmatprep.mubr.bf16.mxu0 0
    %202 = vmatmul.mubr.bf16.gmra.mrb[0].mxu0 %v154
    %v203 = vpop.f32.mrb[0].mxu0
    %v204 = vadd.f32 0.0, %v203
    %v205 = vpop.f32.mrb[0].mxu0
    %v206 = vpop.f32.mrb[0].mxu0
    %v207 = vadd.f32 0.0, %v206
    %v208 = vpop.f32.mrb[0].mxu0
    %209 = vmatprep.mubr.bf16.mxu0 0
    %210 = vmatmul.mubr.bf16.gmra.mrb[0].mxu0 %v157
    %v211 = vpop.f32.mrb[0].mxu0
    %v212 = vadd.f32 0.0, %v211
    %v213 = vpop.f32.mrb[0].mxu0
    %v214 = vpop.f32.mrb[0].mxu0
    %v215 = vadd.f32 0.0, %v214
    %v216 = vpop.f32.mrb[0].mxu0
    %217 = vmatprep.mubr.bf16.mxu0 0
    %218 = vmatmul.mubr.bf16.gmra.mrb[0].mxu0 %v160
    %v219 = vpop.f32.mrb[0].mxu0
    %v220 = vadd.f32 0.0, %v219
    %v221 = vpop.f32.mrb[0].mxu0
    %v222 = vpop.f32.mrb[0].mxu0
    %v223 = vadd.f32 0.0, %v222
    %v224 = vpop.f32.mrb[0].mxu0
    %225 = vmatprep.mubr.bf16.mxu0 0
    %226 = vmatmul.mubr.bf16.gmra.mrb[0].mxu0 %v163
    %v227 = vpop.f32.mrb[0].mxu0
    %v228 = vadd.f32 0.0, %v227
    %v229 = vpop.f32.mrb[0].mxu0
    %v230 = vpop.f32.mrb[0].mxu0
    %v231 = vadd.f32 0.0, %v230
    %v232 = vpop.f32.mrb[0].mxu0
    %233 = vdwg.mxu0
    %v234 = vld [vmem:[%s5] sm:$0x1]
    %v236 = vlaneseq
    %v237 = vshrl.u32 %v236, 7
    %v238 = vsub.s32 0, %v237
    %v239 = vrot.slane %v234, %v238
    %v241 = vadd.f32 %v204, %v239
    %v242 = vadd.f32 %v207, %v239
    %v243 = vadd.f32 %v212, %v239
    %v244 = vadd.f32 %v215, %v239
    %v245 = vadd.f32 %v220, %v239
    %v246 = vadd.f32 %v223, %v239
    %v247 = vadd.f32 %v228, %v239
    %v248 = vadd.f32 %v231, %v239
    %vm249 = vcmask 261120
    %250 = vst.msk [vmem:[#allocation2] sm:$0xff] %vm249, %v241
    %251 = vst.msk [vmem:[#allocation2 + $0x8] sm:$0xff] %vm249, %v242
    %252 = vst.msk [vmem:[#allocation2 + $0x10] sm:$0xff] %vm249, %v243
    %253 = vst.msk [vmem:[#allocation2 + $0x18] sm:$0xff] %vm249, %v244
    %254 = vst.msk [vmem:[#allocation2 + $0x20] sm:$0xff] %vm249, %v245
    %255 = vst.msk [vmem:[#allocation2 + $0x28] sm:$0xff] %vm249, %v246
    %256 = vst.msk [vmem:[#allocation2 + $0x30] sm:$0xff] %vm249, %v247
    %257 = vst.msk [vmem:[#allocation2 + $0x38] sm:$0xff] %vm249, %v248
    %v258 = vld [vmem:[#allocation8] sm:$0x1]
    %v260 = vlaneseq
    %v261 = vshrl.u32 %v260, 7
    %v262 = vsub.s32 0, %v261
    %v263 = vrot.slane %v258, %v262
    %264 = vrot.lane.b32.xlu0 %v263, 32
    %v265 = vpop.permute.xlu0 %264
    %v267 = vadd.f32 %v204, %v265
    %v268 = vadd.f32 %v207, %v265
    %v269 = vadd.f32 %v212, %v265
    %v270 = vadd.f32 %v215, %v265
    %v271 = vadd.f32 %v220, %v265
    %v272 = vadd.f32 %v223, %v265
    %v273 = vadd.f32 %v228, %v265
    %v274 = vadd.f32 %v231, %v265
    %283 = vrot.lane.b32.xlu0 %v267, 96
    %v284 = vpop.permute.xlu0 %283
    %285 = vrot.lane.b32.xlu0 %v268, 96
    %v286 = vpop.permute.xlu0 %285
    %287 = vrot.lane.b32.xlu0 %v269, 96
    %v288 = vpop.permute.xlu0 %287
    %289 = vrot.lane.b32.xlu0 %v270, 96
    %v290 = vpop.permute.xlu0 %289
    %291 = vrot.lane.b32.xlu0 %v271, 96
    %v292 = vpop.permute.xlu0 %291
    %293 = vrot.lane.b32.xlu0 %v272, 96
    %v294 = vpop.permute.xlu0 %293
    %295 = vrot.lane.b32.xlu0 %v273, 96
    %v296 = vpop.permute.xlu0 %295
    %297 = vrot.lane.b32.xlu0 %v274, 96
    %v298 = vpop.permute.xlu0 %297
    %307 = vst.msk [vmem:[#allocation3] sm:$0xff] %vm249, %v284
    %308 = vst.msk [vmem:[#allocation3 + $0x8] sm:$0xff] %vm249, %v286
    %309 = vst.msk [vmem:[#allocation3 + $0x10] sm:$0xff] %vm249, %v288
    %310 = vst.msk [vmem:[#allocation3 + $0x18] sm:$0xff] %vm249, %v290
    %311 = vst.msk [vmem:[#allocation3 + $0x20] sm:$0xff] %vm249, %v292
    %312 = vst.msk [vmem:[#allocation3 + $0x28] sm:$0xff] %vm249, %v294
    %313 = vst.msk [vmem:[#allocation3 + $0x30] sm:$0xff] %vm249, %v296
    %314 = vst.msk [vmem:[#allocation3 + $0x38] sm:$0xff] %vm249, %v298
    %v315 = vld [vmem:[#allocation10] sm:$0x1]
    %v317 = vlaneseq
    %v318 = vshrl.u32 %v317, 7
    %v319 = vsub.s32 0, %v318
    %v320 = vrot.slane %v315, %v319
    %321 = vrot.lane.b32.xlu0 %v320, 64
    %v322 = vpop.permute.xlu0 %321
    %v324 = vadd.f32 %v204, %v322
    %v325 = vadd.f32 %v207, %v322
    %v326 = vadd.f32 %v212, %v322
    %v327 = vadd.f32 %v215, %v322
    %v328 = vadd.f32 %v220, %v322
    %v329 = vadd.f32 %v223, %v322
    %v330 = vadd.f32 %v228, %v322
    %v331 = vadd.f32 %v231, %v322
    %340 = vrot.lane.b32.xlu0 %v324, 64
    %v341 = vpop.permute.xlu0 %340
    %342 = vrot.lane.b32.xlu0 %v325, 64
    %v343 = vpop.permute.xlu0 %342
    %344 = vrot.lane.b32.xlu0 %v326, 64
    %v345 = vpop.permute.xlu0 %344
    %346 = vrot.lane.b32.xlu0 %v327, 64
    %v347 = vpop.permute.xlu0 %346
    %348 = vrot.lane.b32.xlu0 %v328, 64
    %v349 = vpop.permute.xlu0 %348
    %350 = vrot.lane.b32.xlu0 %v329, 64
    %v351 = vpop.permute.xlu0 %350
    %352 = vrot.lane.b32.xlu0 %v330, 64
    %v353 = vpop.permute.xlu0 %352
    %354 = vrot.lane.b32.xlu0 %v331, 64
    %v355 = vpop.permute.xlu0 %354
    %364 = vst.msk [vmem:[#allocation4] sm:$0xff] %vm249, %v341
    %365 = vst.msk [vmem:[#allocation4 + $0x8] sm:$0xff] %vm249, %v343
    %366 = vst.msk [vmem:[#allocation4 + $0x10] sm:$0xff] %vm249, %v345
    %367 = vst.msk [vmem:[#allocation4 + $0x18] sm:$0xff] %vm249, %v347
    %368 = vst.msk [vmem:[#allocation4 + $0x20] sm:$0xff] %vm249, %v349
    %369 = vst.msk [vmem:[#allocation4 + $0x28] sm:$0xff] %vm249, %v351
    %370 = vst.msk [vmem:[#allocation4 + $0x30] sm:$0xff] %vm249, %v353
    %371 = vst.msk [vmem:[#allocation4 + $0x38] sm:$0xff] %vm249, %v355
    %v372 = vld [vmem:[%s2] sm:$0xf]
    %v373 = vld [vmem:[%s2 + $0x4] sm:$0xf]
    %v374 = vld [vmem:[%s2 + $0x8] sm:$0xf]
    %v375 = vld [vmem:[%s2 + $0xc] sm:$0xf]
    %v376 = vld [vmem:[%s3] sm:$0xf]
    %v377 = vld [vmem:[%s3 + $0x4] sm:$0xf]
    %v378 = vld [vmem:[%s3 + $0x8] sm:$0xf]
    %v379 = vld [vmem:[%s3 + $0xc] sm:$0xf]
    %v380 = vld [vmem:[%s4] sm:$0xf]
    %v381 = vld [vmem:[%s4 + $0x4] sm:$0xf]
    %v382 = vld [vmem:[%s4 + $0x8] sm:$0xf]
    %v383 = vld [vmem:[%s4 + $0xc] sm:$0xf]
    %v384 = vld [vmem:[#allocation11] sm:$0x1]
    %v389 = vunpack.c.l.b16 %v372
    %v390 = vunpack.c.l.b16 %v373
    %v391 = vunpack.c.l.b16 %v374
    %v392 = vunpack.c.l.b16 %v375
    %v393 = vpack.c.b16 %v390, %v389
    %v394 = vpack.c.b16 %v392, %v391
    %v398 = vsel %vm249, 0, 0
    %400 = vmatprep.subr.bf16.mxu0 0
    %401 = vmatpush1.bf16.msra.mxu0 %v393
    %402 = vmatprep.subr.bf16.mxu0 0
    %403 = vmatpush1.bf16.msra.mxu0 %v394
    %404 = vmatprep.subr.bf16.mxu0 0
    %405 = vmatpush1.bf16.msra.mxu0 0
    %406 = vmatprep.subr.bf16.mxu0 0
    %407 = vmatpush1.bf16.msra.mxu0 0
    %408 = vmatprep.subr.bf16.mxu0 0
    %409 = vmatpush1.bf16.msra.mxu0 0
    %410 = vmatprep.subr.bf16.mxu0 0
    %411 = vmatpush1.bf16.msra.mxu0 0
    %412 = vmatprep.subr.bf16.mxu0 0
    %413 = vmatpush1.bf16.msra.mxu0 0
    %414 = vmatprep.subr.bf16.mxu0 0
    %415 = vmatpush1.bf16.msra.mxu0 0
    %416 = vmatprep.subr.bf16.mxu0 0
    %417 = vmatpush1.bf16.msra.mxu0 0
    %418 = vmatprep.subr.bf16.mxu0 0
    %419 = vmatpush1.bf16.msra.mxu0 0
    %420 = vmatprep.subr.bf16.mxu0 0
    %421 = vmatpush1.bf16.msra.mxu0 0
    %422 = vmatprep.subr.bf16.mxu0 0
    %423 = vmatpush1.bf16.msra.mxu0 0
    %424 = vmatprep.subr.bf16.mxu0 0
    %425 = vmatpush1.bf16.msra.mxu0 0
    %426 = vmatprep.subr.bf16.mxu0 0
    %427 = vmatpush1.bf16.msra.mxu0 0
    %428 = vmatprep.subr.bf16.mxu0 0
    %429 = vmatpush1.bf16.msra.mxu0 0
    %430 = vmatprep.subr.bf16.mxu0 0
    %431 = vmatpush1.bf16.msra.mxu0 0
    %432 = vmatprep.mubr.bf16.mxu0 0
    %433 = vmatmul.mubr.bf16.gmra.mrb[0].mxu0 %v398
    %v434 = vpop.f32.mrb[0].mxu0
    %v435 = vadd.f32 0.0, %v434
    %v436 = vpop.f32.mrb[0].mxu0
    %v437 = vpop.f32.mrb[0].mxu0
    %v438 = vpop.f32.mrb[0].mxu0
    %439 = vdwg.mxu0
    %v444 = vunpack.c.l.b16 %v376
    %v445 = vunpack.c.l.b16 %v377
    %v446 = vunpack.c.l.b16 %v378
    %v447 = vunpack.c.l.b16 %v379
    %v448 = vpack.c.b16 %v445, %v444
    %v449 = vpack.c.b16 %v447, %v446
    %452 = vmatprep.subr.bf16.mxu0 0
    %453 = vmatpush1.bf16.msra.mxu0 %v448
    %454 = vmatprep.subr.bf16.mxu0 0
    %455 = vmatpush1.bf16.msra.mxu0 %v449
    %456 = vmatprep.subr.bf16.mxu0 0
    %457 = vmatpush1.bf16.msra.mxu0 0
    %458 = vmatprep.subr.bf16.mxu0 0
    %459 = vmatpush1.bf16.msra.mxu0 0
    %460 = vmatprep.subr.bf16.mxu0 0
    %461 = vmatpush1.bf16.msra.mxu0 0
    %462 = vmatprep.subr.bf16.mxu0 0
    %463 = vmatpush1.bf16.msra.mxu0 0
    %464 = vmatprep.subr.bf16.mxu0 0
    %465 = vmatpush1.bf16.msra.mxu0 0
    %466 = vmatprep.subr.bf16.mxu0 0
    %467 = vmatpush1.bf16.msra.mxu0 0
    %468 = vmatprep.subr.bf16.mxu0 0
    %469 = vmatpush1.bf16.msra.mxu0 0
    %470 = vmatprep.subr.bf16.mxu0 0
    %471 = vmatpush1.bf16.msra.mxu0 0
    %472 = vmatprep.subr.bf16.mxu0 0
    %473 = vmatpush1.bf16.msra.mxu0 0
    %474 = vmatprep.subr.bf16.mxu0 0
    %475 = vmatpush1.bf16.msra.mxu0 0
    %476 = vmatprep.subr.bf16.mxu0 0
    %477 = vmatpush1.bf16.msra.mxu0 0
    %478 = vmatprep.subr.bf16.mxu0 0
    %479 = vmatpush1.bf16.msra.mxu0 0
    %480 = vmatprep.subr.bf16.mxu0 0
    %481 = vmatpush1.bf16.msra.mxu0 0
    %482 = vmatprep.subr.bf16.mxu0 0
    %483 = vmatpush1.bf16.msra.mxu0 0
    %484 = vmatprep.mubr.bf16.mxu0 0
    %485 = vmatmul.mubr.bf16.gmra.mrb[0].mxu0 %v398
    %v486 = vpop.f32.mrb[0].mxu0
    %v487 = vadd.f32 0.0, %v486
    %v488 = vpop.f32.mrb[0].mxu0
    %v489 = vpop.f32.mrb[0].mxu0
    %v490 = vpop.f32.mrb[0].mxu0
    %491 = vdwg.mxu0
    %v492 = vld [vmem:[#allocation2] sm:$0xff]
    %v493 = vadd.f32 %v492, %v435
    %v494 = vxor.u32 %v493, 2147483648
    %v495 = vmul.f32 %v494, 1.442695
    %v496 = vpow.pop %v495
    %v497 = vadd.f32 %v496, 1.0
    %v498 = vrcp.pop %v497
    %v499 = vmul.f32 1.0, %v498
    %v500 = vld [vmem:[#allocation3] sm:$0xff]
    %v501 = vadd.f32 %v500, %v487
    %v502 = vxor.u32 %v501, 2147483648
    %v503 = vmul.f32 %v502, 1.442695
    %v504 = vpow.pop %v503
    %v505 = vadd.f32 %v504, 1.0
    %v506 = vrcp.pop %v505
    %v507 = vmul.f32 1.0, %v506
    %v508 = vld [vmem:[#allocation4] sm:$0xff]
    %v510 = vlaneseq
    %v511 = vshrl.u32 %v510, 7
    %v512 = vsub.s32 0, %v511
    %v513 = vrot.slane %v384, %v512
    %v519 = vunpack.c.l.b16 %v380
    %v520 = vunpack.c.l.b16 %v381
    %v521 = vunpack.c.l.b16 %v382
    %v522 = vunpack.c.l.b16 %v383
    %v523 = vpack.c.b16 %v520, %v519
    %v524 = vpack.c.b16 %v522, %v521
    %527 = vmatprep.subr.bf16.mxu0 0
    %528 = vmatpush1.bf16.msra.mxu0 %v523
    %529 = vmatprep.subr.bf16.mxu0 0
    %530 = vmatpush1.bf16.msra.mxu0 %v524
    %531 = vmatprep.subr.bf16.mxu0 0
    %532 = vmatpush1.bf16.msra.mxu0 0
    %533 = vmatprep.subr.bf16.mxu0 0
    %534 = vmatpush1.bf16.msra.mxu0 0
    %535 = vmatprep.subr.bf16.mxu0 0
    %536 = vmatpush1.bf16.msra.mxu0 0
    %537 = vmatprep.subr.bf16.mxu0 0
    %538 = vmatpush1.bf16.msra.mxu0 0
    %539 = vmatprep.subr.bf16.mxu0 0
    %540 = vmatpush1.bf16.msra.mxu0 0
    %541 = vmatprep.subr.bf16.mxu0 0
    %542 = vmatpush1.bf16.msra.mxu0 0
    %543 = vmatprep.subr.bf16.mxu0 0
    %544 = vmatpush1.bf16.msra.mxu0 0
    %545 = vmatprep.subr.bf16.mxu0 0
    %546 = vmatpush1.bf16.msra.mxu0 0
    %547 = vmatprep.subr.bf16.mxu0 0
    %548 = vmatpush1.bf16.msra.mxu0 0
    %549 = vmatprep.subr.bf16.mxu0 0
    %550 = vmatpush1.bf16.msra.mxu0 0
    %551 = vmatprep.subr.bf16.mxu0 0
    %552 = vmatpush1.bf16.msra.mxu0 0
    %553 = vmatprep.subr.bf16.mxu0 0
    %554 = vmatpush1.bf16.msra.mxu0 0
    %555 = vmatprep.subr.bf16.mxu0 0
    %556 = vmatpush1.bf16.msra.mxu0 0
    %557 = vmatprep.subr.bf16.mxu0 0
    %558 = vmatpush1.bf16.msra.mxu0 0
    %559 = vmatprep.mubr.bf16.mxu0 0
    %560 = vmatmul.mubr.bf16.gmra.mrb[0].mxu0 %v398
    %v561 = vpop.f32.mrb[0].mxu0
    %v562 = vadd.f32 %v513, %v561
    %v563 = vpop.f32.mrb[0].mxu0
    %v564 = vpop.f32.mrb[0].mxu0
    %v565 = vpop.f32.mrb[0].mxu0
    %566 = vdwg.mxu0
    %v567 = vmul.f32 %v499, %v562
    %v568 = vadd.f32 %v508, %v567
    %v569 = vtanh.pop %v568
    %v570 = vsub.f32 1.0, %v507
    %v571 = vmul.f32 %v570, %v569
    %v572 = vmul.f32 %v507, 0.0
    %v573 = vadd.f32 %v571, %v572
    %574 = vst.msk [vmem:[#allocation5] sm:$0xff] %vm249, %v573
    %v575 = vpack.c.bf16 %v573, %v573
    %v577 = vsel %vm249, %v575, 0
    %579 = vmatprep.subr.bf16.mxu0 0
    %580 = vmatpush1.bf16.msra.mxu0 %v393
    %581 = vmatprep.subr.bf16.mxu0 0
    %582 = vmatpush1.bf16.msra.mxu0 %v394
    %583 = vmatprep.subr.bf16.mxu0 0
    %584 = vmatpush1.bf16.msra.mxu0 0
    %585 = vmatprep.subr.bf16.mxu0 0
    %586 = vmatpush1.bf16.msra.mxu0 0
    %587 = vmatprep.subr.bf16.mxu0 0
    %588 = vmatpush1.bf16.msra.mxu0 0
    %589 = vmatprep.subr.bf16.mxu0 0
    %590 = vmatpush1.bf16.msra.mxu0 0
    %591 = vmatprep.subr.bf16.mxu0 0
    %592 = vmatpush1.bf16.msra.mxu0 0
    %593 = vmatprep.subr.bf16.mxu0 0
    %594 = vmatpush1.bf16.msra.mxu0 0
    %595 = vmatprep.subr.bf16.mxu0 0
    %596 = vmatpush1.bf16.msra.mxu0 0
    %597 = vmatprep.subr.bf16.mxu0 0
    %598 = vmatpush1.bf16.msra.mxu0 0
    %599 = vmatprep.subr.bf16.mxu0 0
    %600 = vmatpush1.bf16.msra.mxu0 0
    %601 = vmatprep.subr.bf16.mxu0 0
    %602 = vmatpush1.bf16.msra.mxu0 0
    %603 = vmatprep.subr.bf16.mxu0 0
    %604 = vmatpush1.bf16.msra.mxu0 0
    %605 = vmatprep.subr.bf16.mxu0 0
    %606 = vmatpush1.bf16.msra.mxu0 0
    %607 = vmatprep.subr.bf16.mxu0 0
    %608 = vmatpush1.bf16.msra.mxu0 0
    %609 = vmatprep.subr.bf16.mxu0 0
    %610 = vmatpush1.bf16.msra.mxu0 0
    %611 = vmatprep.mubr.bf16.mxu0 0
    %612 = vmatmul.mubr.bf16.gmra.mrb[0].mxu0 %v577
    %v613 = vpop.f32.mrb[0].mxu0
    %v614 = vadd.f32 0.0, %v613
    %v615 = vpop.f32.mrb[0].mxu0
    %v616 = vpop.f32.mrb[0].mxu0
    %v617 = vpop.f32.mrb[0].mxu0
    %618 = vdwg.mxu0
    %619 = vmatprep.subr.bf16.mxu0 0
    %620 = vmatpush1.bf16.msra.mxu0 %v448
    %621 = vmatprep.subr.bf16.mxu0 0
    %622 = vmatpush1.bf16.msra.mxu0 %v449
    %623 = vmatprep.subr.bf16.mxu0 0
    %624 = vmatpush1.bf16.msra.mxu0 0
    %625 = vmatprep.subr.bf16.mxu0 0
    %626 = vmatpush1.bf16.msra.mxu0 0
    %627 = vmatprep.subr.bf16.mxu0 0
    %628 = vmatpush1.bf16.msra.mxu0 0
    %629 = vmatprep.subr.bf16.mxu0 0
    %630 = vmatpush1.bf16.msra.mxu0 0
    %631 = vmatprep.subr.bf16.mxu0 0
    %632 = vmatpush1.bf16.msra.mxu0 0
    %633 = vmatprep.subr.bf16.mxu0 0
    %634 = vmatpush1.bf16.msra.mxu0 0
    %635 = vmatprep.subr.bf16.mxu0 0
    %636 = vmatpush1.bf16.msra.mxu0 0
    %637 = vmatprep.subr.bf16.mxu0 0
    %638 = vmatpush1.bf16.msra.mxu0 0
    %639 = vmatprep.subr.bf16.mxu0 0
    %640 = vmatpush1.bf16.msra.mxu0 0
    %641 = vmatprep.subr.bf16.mxu0 0
    %642 = vmatpush1.bf16.msra.mxu0 0
    %643 = vmatprep.subr.bf16.mxu0 0
    %644 = vmatpush1.bf16.msra.mxu0 0
    %645 = vmatprep.subr.bf16.mxu0 0
    %646 = vmatpush1.bf16.msra.mxu0 0
    %647 = vmatprep.subr.bf16.mxu0 0
    %648 = vmatpush1.bf16.msra.mxu0 0
    %649 = vmatprep.subr.bf16.mxu0 0
    %650 = vmatpush1.bf16.msra.mxu0 0
    %651 = vmatprep.mubr.bf16.mxu0 0
    %652 = vmatmul.mubr.bf16.gmra.mrb[0].mxu0 %v577
    %v653 = vpop.f32.mrb[0].mxu0
    %v654 = vadd.f32 0.0, %v653
    %v655 = vpop.f32.mrb[0].mxu0
    %v656 = vpop.f32.mrb[0].mxu0
    %v657 = vpop.f32.mrb[0].mxu0
    %658 = vdwg.mxu0
    %s659 = scalar_lea.vmem [#allocation2], 8
    %v660 = vld [vmem:[%s659] sm:$0xff]
    %v661 = vadd.f32 %v660, %v614
    %v662 = vxor.u32 %v661, 2147483648
    %v663 = vmul.f32 %v662, 1.442695
    %v664 = vpow.pop %v663
    %v665 = vadd.f32 %v664, 1.0
    %v666 = vrcp.pop %v665
    %v667 = vmul.f32 1.0, %v666
    %s668 = scalar_lea.vmem [#allocation3], 8
    %v669 = vld [vmem:[%s668] sm:$0xff]
    %v670 = vadd.f32 %v669, %v654
    %v671 = vxor.u32 %v670, 2147483648
    %v672 = vmul.f32 %v671, 1.442695
    %v673 = vpow.pop %v672
    %v674 = vadd.f32 %v673, 1.0
    %v675 = vrcp.pop %v674
    %v676 = vmul.f32 1.0, %v675
    %s677 = scalar_lea.vmem [#allocation4], 8
    %v678 = vld [vmem:[%s677] sm:$0xff]
    %679 = vmatprep.subr.bf16.mxu0 0
    %680 = vmatpush1.bf16.msra.mxu0 %v523
    %681 = vmatprep.subr.bf16.mxu0 0
    %682 = vmatpush1.bf16.msra.mxu0 %v524
    %683 = vmatprep.subr.bf16.mxu0 0
    %684 = vmatpush1.bf16.msra.mxu0 0
    %685 = vmatprep.subr.bf16.mxu0 0
    %686 = vmatpush1.bf16.msra.mxu0 0
    %687 = vmatprep.subr.bf16.mxu0 0
    %688 = vmatpush1.bf16.msra.mxu0 0
    %689 = vmatprep.subr.bf16.mxu0 0
    %690 = vmatpush1.bf16.msra.mxu0 0
    %691 = vmatprep.subr.bf16.mxu0 0
    %692 = vmatpush1.bf16.msra.mxu0 0
    %693 = vmatprep.subr.bf16.mxu0 0
    %694 = vmatpush1.bf16.msra.mxu0 0
    %695 = vmatprep.subr.bf16.mxu0 0
    %696 = vmatpush1.bf16.msra.mxu0 0
    %697 = vmatprep.subr.bf16.mxu0 0
    %698 = vmatpush1.bf16.msra.mxu0 0
    %699 = vmatprep.subr.bf16.mxu0 0
    %700 = vmatpush1.bf16.msra.mxu0 0
    %701 = vmatprep.subr.bf16.mxu0 0
    %702 = vmatpush1.bf16.msra.mxu0 0
    %703 = vmatprep.subr.bf16.mxu0 0
    %704 = vmatpush1.bf16.msra.mxu0 0
    %705 = vmatprep.subr.bf16.mxu0 0
    %706 = vmatpush1.bf16.msra.mxu0 0
    %707 = vmatprep.subr.bf16.mxu0 0
    %708 = vmatpush1.bf16.msra.mxu0 0
    %709 = vmatprep.subr.bf16.mxu0 0
    %710 = vmatpush1.bf16.msra.mxu0 0
    %711 = vmatprep.mubr.bf16.mxu0 0
    %712 = vmatmul.mubr.bf16.gmra.mrb[0].mxu0 %v577
    %v713 = vpop.f32.mrb[0].mxu0
    %v714 = vadd.f32 %v513, %v713
    %v715 = vpop.f32.mrb[0].mxu0
    %v716 = vpop.f32.mrb[0].mxu0
    %v717 = vpop.f32.mrb[0].mxu0
    %718 = vdwg.mxu0
    %v719 = vmul.f32 %v667, %v714
    %v720 = vadd.f32 %v678, %v719
    %v721 = vtanh.pop %v720
    %v722 = vsub.f32 1.0, %v676
    %v723 = vmul.f32 %v722, %v721
    %v724 = vmul.f32 %v676, %v573
    %v725 = vadd.f32 %v723, %v724
    %s726 = scalar_lea.vmem [#allocation5], 8
    %727 = vst.msk [vmem:[%s726] sm:$0xff] %vm249, %v725
    %v728 = vpack.c.bf16 %v725, %v725
    %v730 = vsel %vm249, %v728, 0
    %732 = vmatprep.subr.bf16.mxu0 0
    %733 = vmatpush1.bf16.msra.mxu0 %v393
    %734 = vmatprep.subr.bf16.mxu0 0
    %735 = vmatpush1.bf16.msra.mxu0 %v394
    %736 = vmatprep.subr.bf16.mxu0 0
    %737 = vmatpush1.bf16.msra.mxu0 0
    %738 = vmatprep.subr.bf16.mxu0 0
    %739 = vmatpush1.bf16.msra.mxu0 0
    %740 = vmatprep.subr.bf16.mxu0 0
    %741 = vmatpush1.bf16.msra.mxu0 0
    %742 = vmatprep.subr.bf16.mxu0 0
    %743 = vmatpush1.bf16.msra.mxu0 0
    %744 = vmatprep.subr.bf16.mxu0 0
    %745 = vmatpush1.bf16.msra.mxu0 0
    %746 = vmatprep.subr.bf16.mxu0 0
    %747 = vmatpush1.bf16.msra.mxu0 0
    %748 = vmatprep.subr.bf16.mxu0 0
    %749 = vmatpush1.bf16.msra.mxu0 0
    %750 = vmatprep.subr.bf16.mxu0 0
    %751 = vmatpush1.bf16.msra.mxu0 0
    %752 = vmatprep.subr.bf16.mxu0 0
    %753 = vmatpush1.bf16.msra.mxu0 0
    %754 = vmatprep.subr.bf16.mxu0 0
    %755 = vmatpush1.bf16.msra.mxu0 0
    %756 = vmatprep.subr.bf16.mxu0 0
    %757 = vmatpush1.bf16.msra.mxu0 0
    %758 = vmatprep.subr.bf16.mxu0 0
    %759 = vmatpush1.bf16.msra.mxu0 0
    %760 = vmatprep.subr.bf16.mxu0 0
    %761 = vmatpush1.bf16.msra.mxu0 0
    %762 = vmatprep.subr.bf16.mxu0 0
    %763 = vmatpush1.bf16.msra.mxu0 0
    %764 = vmatprep.mubr.bf16.mxu0 0
    %765 = vmatmul.mubr.bf16.gmra.mrb[0].mxu0 %v730
    %v766 = vpop.f32.mrb[0].mxu0
    %v767 = vadd.f32 0.0, %v766
    %v768 = vpop.f32.mrb[0].mxu0
    %v769 = vpop.f32.mrb[0].mxu0
    %v770 = vpop.f32.mrb[0].mxu0
    %771 = vdwg.mxu0
    %772 = vmatprep.subr.bf16.mxu0 0
    %773 = vmatpush1.bf16.msra.mxu0 %v448
    %774 = vmatprep.subr.bf16.mxu0 0
    %775 = vmatpush1.bf16.msra.mxu0 %v449
    %776 = vmatprep.subr.bf16.mxu0 0
    %777 = vmatpush1.bf16.msra.mxu0 0
    %778 = vmatprep.subr.bf16.mxu0 0
    %779 = vmatpush1.bf16.msra.mxu0 0
    %780 = vmatprep.subr.bf16.mxu0 0
    %781 = vmatpush1.bf16.msra.mxu0 0
    %782 = vmatprep.subr.bf16.mxu0 0
    %783 = vmatpush1.bf16.msra.mxu0 0
    %784 = vmatprep.subr.bf16.mxu0 0
    %785 = vmatpush1.bf16.msra.mxu0 0
    %786 = vmatprep.subr.bf16.mxu0 0
    %787 = vmatpush1.bf16.msra.mxu0 0
    %788 = vmatprep.subr.bf16.mxu0 0
    %789 = vmatpush1.bf16.msra.mxu0 0
    %790 = vmatprep.subr.bf16.mxu0 0
    %791 = vmatpush1.bf16.msra.mxu0 0
    %792 = vmatprep.subr.bf16.mxu0 0
    %793 = vmatpush1.bf16.msra.mxu0 0
    %794 = vmatprep.subr.bf16.mxu0 0
    %795 = vmatpush1.bf16.msra.mxu0 0
    %796 = vmatprep.subr.bf16.mxu0 0
    %797 = vmatpush1.bf16.msra.mxu0 0
    %798 = vmatprep.subr.bf16.mxu0 0
    %799 = vmatpush1.bf16.msra.mxu0 0
    %800 = vmatprep.subr.bf16.mxu0 0
    %801 = vmatpush1.bf16.msra.mxu0 0
    %802 = vmatprep.subr.bf16.mxu0 0
    %803 = vmatpush1.bf16.msra.mxu0 0
    %804 = vmatprep.mubr.bf16.mxu0 0
    %805 = vmatmul.mubr.bf16.gmra.mrb[0].mxu0 %v730
    %v806 = vpop.f32.mrb[0].mxu0
    %v807 = vadd.f32 0.0, %v806
    %v808 = vpop.f32.mrb[0].mxu0
    %v809 = vpop.f32.mrb[0].mxu0
    %v810 = vpop.f32.mrb[0].mxu0
    %811 = vdwg.mxu0
    %s812 = scalar_lea.vmem [#allocation2], 16
    %v813 = vld [vmem:[%s812] sm:$0xff]
    %v814 = vadd.f32 %v813, %v767
    %v815 = vxor.u32 %v814, 2147483648
    %v816 = vmul.f32 %v815, 1.442695
    %v817 = vpow.pop %v816
    %v818 = vadd.f32 %v817, 1.0
    %v819 = vrcp.pop %v818
    %v820 = vmul.f32 1.0, %v819
    %s821 = scalar_lea.vmem [#allocation3], 16
    %v822 = vld [vmem:[%s821] sm:$0xff]
    %v823 = vadd.f32 %v822, %v807
    %v824 = vxor.u32 %v823, 2147483648
    %v825 = vmul.f32 %v824, 1.442695
    %v826 = vpow.pop %v825
    %v827 = vadd.f32 %v826, 1.0
    %v828 = vrcp.pop %v827
    %v829 = vmul.f32 1.0, %v828
    %s830 = scalar_lea.vmem [#allocation4], 16
    %v831 = vld [vmem:[%s830] sm:$0xff]
    %832 = vmatprep.subr.bf16.mxu0 0
    %833 = vmatpush1.bf16.msra.mxu0 %v523
    %834 = vmatprep.subr.bf16.mxu0 0
    %835 = vmatpush1.bf16.msra.mxu0 %v524
    %836 = vmatprep.subr.bf16.mxu0 0
    %837 = vmatpush1.bf16.msra.mxu0 0
    %838 = vmatprep.subr.bf16.mxu0 0
    %839 = vmatpush1.bf16.msra.mxu0 0
    %840 = vmatprep.subr.bf16.mxu0 0
    %841 = vmatpush1.bf16.msra.mxu0 0
    %842 = vmatprep.subr.bf16.mxu0 0
    %843 = vmatpush1.bf16.msra.mxu0 0
    %844 = vmatprep.subr.bf16.mxu0 0
    %845 = vmatpush1.bf16.msra.mxu0 0
    %846 = vmatprep.subr.bf16.mxu0 0
    %847 = vmatpush1.bf16.msra.mxu0 0
    %848 = vmatprep.subr.bf16.mxu0 0
    %849 = vmatpush1.bf16.msra.mxu0 0
    %850 = vmatprep.subr.bf16.mxu0 0
    %851 = vmatpush1.bf16.msra.mxu0 0
    %852 = vmatprep.subr.bf16.mxu0 0
    %853 = vmatpush1.bf16.msra.mxu0 0
    %854 = vmatprep.subr.bf16.mxu0 0
    %855 = vmatpush1.bf16.msra.mxu0 0
    %856 = vmatprep.subr.bf16.mxu0 0
    %857 = vmatpush1.bf16.msra.mxu0 0
    %858 = vmatprep.subr.bf16.mxu0 0
    %859 = vmatpush1.bf16.msra.mxu0 0
    %860 = vmatprep.subr.bf16.mxu0 0
    %861 = vmatpush1.bf16.msra.mxu0 0
    %862 = vmatprep.subr.bf16.mxu0 0
    %863 = vmatpush1.bf16.msra.mxu0 0
    %864 = vmatprep.mubr.bf16.mxu0 0
    %865 = vmatmul.mubr.bf16.gmra.mrb[0].mxu0 %v730
    %v866 = vpop.f32.mrb[0].mxu0
    %v867 = vadd.f32 %v513, %v866
    %v868 = vpop.f32.mrb[0].mxu0
    %v869 = vpop.f32.mrb[0].mxu0
    %v870 = vpop.f32.mrb[0].mxu0
    %871 = vdwg.mxu0
    %v872 = vmul.f32 %v820, %v867
    %v873 = vadd.f32 %v831, %v872
    %v874 = vtanh.pop %v873
    %v875 = vsub.f32 1.0, %v829
    %v876 = vmul.f32 %v875, %v874
    %v877 = vmul.f32 %v829, %v725
    %v878 = vadd.f32 %v876, %v877
    %s879 = scalar_lea.vmem [#allocation5], 16
    %880 = vst.msk [vmem:[%s879] sm:$0xff] %vm249, %v878
    %v881 = vpack.c.bf16 %v878, %v878
    %v883 = vsel %vm249, %v881, 0
    %885 = vmatprep.subr.bf16.mxu0 0
    %886 = vmatpush1.bf16.msra.mxu0 %v393
    %887 = vmatprep.subr.bf16.mxu0 0
    %888 = vmatpush1.bf16.msra.mxu0 %v394
    %889 = vmatprep.subr.bf16.mxu0 0
    %890 = vmatpush1.bf16.msra.mxu0 0
    %891 = vmatprep.subr.bf16.mxu0 0
    %892 = vmatpush1.bf16.msra.mxu0 0
    %893 = vmatprep.subr.bf16.mxu0 0
    %894 = vmatpush1.bf16.msra.mxu0 0
    %895 = vmatprep.subr.bf16.mxu0 0
    %896 = vmatpush1.bf16.msra.mxu0 0
    %897 = vmatprep.subr.bf16.mxu0 0
    %898 = vmatpush1.bf16.msra.mxu0 0
    %899 = vmatprep.subr.bf16.mxu0 0
    %900 = vmatpush1.bf16.msra.mxu0 0
    %901 = vmatprep.subr.bf16.mxu0 0
    %902 = vmatpush1.bf16.msra.mxu0 0
    %903 = vmatprep.subr.bf16.mxu0 0
    %904 = vmatpush1.bf16.msra.mxu0 0
    %905 = vmatprep.subr.bf16.mxu0 0
    %906 = vmatpush1.bf16.msra.mxu0 0
    %907 = vmatprep.subr.bf16.mxu0 0
    %908 = vmatpush1.bf16.msra.mxu0 0
    %909 = vmatprep.subr.bf16.mxu0 0
    %910 = vmatpush1.bf16.msra.mxu0 0
    %911 = vmatprep.subr.bf16.mxu0 0
    %912 = vmatpush1.bf16.msra.mxu0 0
    %913 = vmatprep.subr.bf16.mxu0 0
    %914 = vmatpush1.bf16.msra.mxu0 0
    %915 = vmatprep.subr.bf16.mxu0 0
    %916 = vmatpush1.bf16.msra.mxu0 0
    %917 = vmatprep.mubr.bf16.mxu0 0
    %918 = vmatmul.mubr.bf16.gmra.mrb[0].mxu0 %v883
    %v919 = vpop.f32.mrb[0].mxu0
    %v920 = vadd.f32 0.0, %v919
    %v921 = vpop.f32.mrb[0].mxu0
    %v922 = vpop.f32.mrb[0].mxu0
    %v923 = vpop.f32.mrb[0].mxu0
    %924 = vdwg.mxu0
    %925 = vmatprep.subr.bf16.mxu0 0
    %926 = vmatpush1.bf16.msra.mxu0 %v448
    %927 = vmatprep.subr.bf16.mxu0 0
    %928 = vmatpush1.bf16.msra.mxu0 %v449
    %929 = vmatprep.subr.bf16.mxu0 0
    %930 = vmatpush1.bf16.msra.mxu0 0
    %931 = vmatprep.subr.bf16.mxu0 0
    %932 = vmatpush1.bf16.msra.mxu0 0
    %933 = vmatprep.subr.bf16.mxu0 0
    %934 = vmatpush1.bf16.msra.mxu0 0
    %935 = vmatprep.subr.bf16.mxu0 0
    %936 = vmatpush1.bf16.msra.mxu0 0
    %937 = vmatprep.subr.bf16.mxu0 0
    %938 = vmatpush1.bf16.msra.mxu0 0
    %939 = vmatprep.subr.bf16.mxu0 0
    %940 = vmatpush1.bf16.msra.mxu0 0
    %941 = vmatprep.subr.bf16.mxu0 0
    %942 = vmatpush1.bf16.msra.mxu0 0
    %943 = vmatprep.subr.bf16.mxu0 0
    %944 = vmatpush1.bf16.msra.mxu0 0
    %945 = vmatprep.subr.bf16.mxu0 0
    %946 = vmatpush1.bf16.msra.mxu0 0
    %947 = vmatprep.subr.bf16.mxu0 0
    %948 = vmatpush1.bf16.msra.mxu0 0
    %949 = vmatprep.subr.bf16.mxu0 0
    %950 = vmatpush1.bf16.msra.mxu0 0
    %951 = vmatprep.subr.bf16.mxu0 0
    %952 = vmatpush1.bf16.msra.mxu0 0
    %953 = vmatprep.subr.bf16.mxu0 0
    %954 = vmatpush1.bf16.msra.mxu0 0
    %955 = vmatprep.subr.bf16.mxu0 0
    %956 = vmatpush1.bf16.msra.mxu0 0
    %957 = vmatprep.mubr.bf16.mxu0 0
    %958 = vmatmul.mubr.bf16.gmra.mrb[0].mxu0 %v883
    %v959 = vpop.f32.mrb[0].mxu0
    %v960 = vadd.f32 0.0, %v959
    %v961 = vpop.f32.mrb[0].mxu0
    %v962 = vpop.f32.mrb[0].mxu0
    %v963 = vpop.f32.mrb[0].mxu0
    %964 = vdwg.mxu0
    %s965 = scalar_lea.vmem [#allocation2], 24
    %v966 = vld [vmem:[%s965] sm:$0xff]
    %v967 = vadd.f32 %v966, %v920
    %v968 = vxor.u32 %v967, 2147483648
    %v969 = vmul.f32 %v968, 1.442695
    %v970 = vpow.pop %v969
    %v971 = vadd.f32 %v970, 1.0
    %v972 = vrcp.pop %v971
    %v973 = vmul.f32 1.0, %v972
    %s974 = scalar_lea.vmem [#allocation3], 24
    %v975 = vld [vmem:[%s974] sm:$0xff]
    %v976 = vadd.f32 %v975, %v960
    %v977 = vxor.u32 %v976, 2147483648
    %v978 = vmul.f32 %v977, 1.442695
    %v979 = vpow.pop %v978
    %v980 = vadd.f32 %v979, 1.0
    %v981 = vrcp.pop %v980
    %v982 = vmul.f32 1.0, %v981
    %s983 = scalar_lea.vmem [#allocation4], 24
    %v984 = vld [vmem:[%s983] sm:$0xff]
    %985 = vmatprep.subr.bf16.mxu0 0
    %986 = vmatpush1.bf16.msra.mxu0 %v523
    %987 = vmatprep.subr.bf16.mxu0 0
    %988 = vmatpush1.bf16.msra.mxu0 %v524
    %989 = vmatprep.subr.bf16.mxu0 0
    %990 = vmatpush1.bf16.msra.mxu0 0
    %991 = vmatprep.subr.bf16.mxu0 0
    %992 = vmatpush1.bf16.msra.mxu0 0
    %993 = vmatprep.subr.bf16.mxu0 0
    %994 = vmatpush1.bf16.msra.mxu0 0
    %995 = vmatprep.subr.bf16.mxu0 0
    %996 = vmatpush1.bf16.msra.mxu0 0
    %997 = vmatprep.subr.bf16.mxu0 0
    %998 = vmatpush1.bf16.msra.mxu0 0
    %999 = vmatprep.subr.bf16.mxu0 0
    %1000 = vmatpush1.bf16.msra.mxu0 0
    %1001 = vmatprep.subr.bf16.mxu0 0
    %1002 = vmatpush1.bf16.msra.mxu0 0
    %1003 = vmatprep.subr.bf16.mxu0 0
    %1004 = vmatpush1.bf16.msra.mxu0 0
    %1005 = vmatprep.subr.bf16.mxu0 0
    %1006 = vmatpush1.bf16.msra.mxu0 0
    %1007 = vmatprep.subr.bf16.mxu0 0
    %1008 = vmatpush1.bf16.msra.mxu0 0
    %1009 = vmatprep.subr.bf16.mxu0 0
    %1010 = vmatpush1.bf16.msra.mxu0 0
    %1011 = vmatprep.subr.bf16.mxu0 0
    %1012 = vmatpush1.bf16.msra.mxu0 0
    %1013 = vmatprep.subr.bf16.mxu0 0
    %1014 = vmatpush1.bf16.msra.mxu0 0
    %1015 = vmatprep.subr.bf16.mxu0 0
    %1016 = vmatpush1.bf16.msra.mxu0 0
    %1017 = vmatprep.mubr.bf16.mxu0 0
    %1018 = vmatmul.mubr.bf16.gmra.mrb[0].mxu0 %v883
    %v1019 = vpop.f32.mrb[0].mxu0
    %v1020 = vadd.f32 %v513, %v1019
    %v1021 = vpop.f32.mrb[0].mxu0
    %v1022 = vpop.f32.mrb[0].mxu0
    %v1023 = vpop.f32.mrb[0].mxu0
    %1024 = vdwg.mxu0
    %v1025 = vmul.f32 %v973, %v1020
    %v1026 = vadd.f32 %v984, %v1025
    %v1027 = vtanh.pop %v1026
    %v1028 = vsub.f32 1.0, %v982
    %v1029 = vmul.f32 %v1028, %v1027
    %v1030 = vmul.f32 %v982, %v878
    %v1031 = vadd.f32 %v1029, %v1030
    %s1032 = scalar_lea.vmem [#allocation5], 24
    %1033 = vst.msk [vmem:[%s1032] sm:$0xff] %vm249, %v1031
    %v1034 = vpack.c.bf16 %v1031, %v1031
    %v1036 = vsel %vm249, %v1034, 0
    %1038 = vmatprep.subr.bf16.mxu0 0
    %1039 = vmatpush1.bf16.msra.mxu0 %v393
    %1040 = vmatprep.subr.bf16.mxu0 0
    %1041 = vmatpush1.bf16.msra.mxu0 %v394
    %1042 = vmatprep.subr.bf16.mxu0 0
    %1043 = vmatpush1.bf16.msra.mxu0 0
    %1044 = vmatprep.subr.bf16.mxu0 0
    %1045 = vmatpush1.bf16.msra.mxu0 0
    %1046 = vmatprep.subr.bf16.mxu0 0
    %1047 = vmatpush1.bf16.msra.mxu0 0
    %1048 = vmatprep.subr.bf16.mxu0 0
    %1049 = vmatpush1.bf16.msra.mxu0 0
    %1050 = vmatprep.subr.bf16.mxu0 0
    %1051 = vmatpush1.bf16.msra.mxu0 0
    %1052 = vmatprep.subr.bf16.mxu0 0
    %1053 = vmatpush1.bf16.msra.mxu0 0
    %1054 = vmatprep.subr.bf16.mxu0 0
    %1055 = vmatpush1.bf16.msra.mxu0 0
    %1056 = vmatprep.subr.bf16.mxu0 0
    %1057 = vmatpush1.bf16.msra.mxu0 0
    %1058 = vmatprep.subr.bf16.mxu0 0
    %1059 = vmatpush1.bf16.msra.mxu0 0
    %1060 = vmatprep.subr.bf16.mxu0 0
    %1061 = vmatpush1.bf16.msra.mxu0 0
    %1062 = vmatprep.subr.bf16.mxu0 0
    %1063 = vmatpush1.bf16.msra.mxu0 0
    %1064 = vmatprep.subr.bf16.mxu0 0
    %1065 = vmatpush1.bf16.msra.mxu0 0
    %1066 = vmatprep.subr.bf16.mxu0 0
    %1067 = vmatpush1.bf16.msra.mxu0 0
    %1068 = vmatprep.subr.bf16.mxu0 0
    %1069 = vmatpush1.bf16.msra.mxu0 0
    %1070 = vmatprep.mubr.bf16.mxu0 0
    %1071 = vmatmul.mubr.bf16.gmra.mrb[0].mxu0 %v1036
    %v1072 = vpop.f32.mrb[0].mxu0
    %v1073 = vadd.f32 0.0, %v1072
    %v1074 = vpop.f32.mrb[0].mxu0
    %v1075 = vpop.f32.mrb[0].mxu0
    %v1076 = vpop.f32.mrb[0].mxu0
    %1077 = vdwg.mxu0
    %1078 = vmatprep.subr.bf16.mxu0 0
    %1079 = vmatpush1.bf16.msra.mxu0 %v448
    %1080 = vmatprep.subr.bf16.mxu0 0
    %1081 = vmatpush1.bf16.msra.mxu0 %v449
    %1082 = vmatprep.subr.bf16.mxu0 0
    %1083 = vmatpush1.bf16.msra.mxu0 0
    %1084 = vmatprep.subr.bf16.mxu0 0
    %1085 = vmatpush1.bf16.msra.mxu0 0
    %1086 = vmatprep.subr.bf16.mxu0 0
    %1087 = vmatpush1.bf16.msra.mxu0 0
    %1088 = vmatprep.subr.bf16.mxu0 0
    %1089 = vmatpush1.bf16.msra.mxu0 0
    %1090 = vmatprep.subr.bf16.mxu0 0
    %1091 = vmatpush1.bf16.msra.mxu0 0
    %1092 = vmatprep.subr.bf16.mxu0 0
    %1093 = vmatpush1.bf16.msra.mxu0 0
    %1094 = vmatprep.subr.bf16.mxu0 0
    %1095 = vmatpush1.bf16.msra.mxu0 0
    %1096 = vmatprep.subr.bf16.mxu0 0
    %1097 = vmatpush1.bf16.msra.mxu0 0
    %1098 = vmatprep.subr.bf16.mxu0 0
    %1099 = vmatpush1.bf16.msra.mxu0 0
    %1100 = vmatprep.subr.bf16.mxu0 0
    %1101 = vmatpush1.bf16.msra.mxu0 0
    %1102 = vmatprep.subr.bf16.mxu0 0
    %1103 = vmatpush1.bf16.msra.mxu0 0
    %1104 = vmatprep.subr.bf16.mxu0 0
    %1105 = vmatpush1.bf16.msra.mxu0 0
    %1106 = vmatprep.subr.bf16.mxu0 0
    %1107 = vmatpush1.bf16.msra.mxu0 0
    %1108 = vmatprep.subr.bf16.mxu0 0
    %1109 = vmatpush1.bf16.msra.mxu0 0
    %1110 = vmatprep.mubr.bf16.mxu0 0
    %1111 = vmatmul.mubr.bf16.gmra.mrb[0].mxu0 %v1036
    %v1112 = vpop.f32.mrb[0].mxu0
    %v1113 = vadd.f32 0.0, %v1112
    %v1114 = vpop.f32.mrb[0].mxu0
    %v1115 = vpop.f32.mrb[0].mxu0
    %v1116 = vpop.f32.mrb[0].mxu0
    %1117 = vdwg.mxu0
    %s1118 = scalar_lea.vmem [#allocation2], 32
    %v1119 = vld [vmem:[%s1118] sm:$0xff]
    %v1120 = vadd.f32 %v1119, %v1073
    %v1121 = vxor.u32 %v1120, 2147483648
    %v1122 = vmul.f32 %v1121, 1.442695
    %v1123 = vpow.pop %v1122
    %v1124 = vadd.f32 %v1123, 1.0
    %v1125 = vrcp.pop %v1124
    %v1126 = vmul.f32 1.0, %v1125
    %s1127 = scalar_lea.vmem [#allocation3], 32
    %v1128 = vld [vmem:[%s1127] sm:$0xff]
    %v1129 = vadd.f32 %v1128, %v1113
    %v1130 = vxor.u32 %v1129, 2147483648
    %v1131 = vmul.f32 %v1130, 1.442695
    %v1132 = vpow.pop %v1131
    %v1133 = vadd.f32 %v1132, 1.0
    %v1134 = vrcp.pop %v1133
    %v1135 = vmul.f32 1.0, %v1134
    %s1136 = scalar_lea.vmem [#allocation4], 32
    %v1137 = vld [vmem:[%s1136] sm:$0xff]
    %1138 = vmatprep.subr.bf16.mxu0 0
    %1139 = vmatpush1.bf16.msra.mxu0 %v523
    %1140 = vmatprep.subr.bf16.mxu0 0
    %1141 = vmatpush1.bf16.msra.mxu0 %v524
    %1142 = vmatprep.subr.bf16.mxu0 0
    %1143 = vmatpush1.bf16.msra.mxu0 0
    %1144 = vmatprep.subr.bf16.mxu0 0
    %1145 = vmatpush1.bf16.msra.mxu0 0
    %1146 = vmatprep.subr.bf16.mxu0 0
    %1147 = vmatpush1.bf16.msra.mxu0 0
    %1148 = vmatprep.subr.bf16.mxu0 0
    %1149 = vmatpush1.bf16.msra.mxu0 0
    %1150 = vmatprep.subr.bf16.mxu0 0
    %1151 = vmatpush1.bf16.msra.mxu0 0
    %1152 = vmatprep.subr.bf16.mxu0 0
    %1153 = vmatpush1.bf16.msra.mxu0 0
    %1154 = vmatprep.subr.bf16.mxu0 0
    %1155 = vmatpush1.bf16.msra.mxu0 0
    %1156 = vmatprep.subr.bf16.mxu0 0
    %1157 = vmatpush1.bf16.msra.mxu0 0
    %1158 = vmatprep.subr.bf16.mxu0 0
    %1159 = vmatpush1.bf16.msra.mxu0 0
    %1160 = vmatprep.subr.bf16.mxu0 0
    %1161 = vmatpush1.bf16.msra.mxu0 0
    %1162 = vmatprep.subr.bf16.mxu0 0
    %1163 = vmatpush1.bf16.msra.mxu0 0
    %1164 = vmatprep.subr.bf16.mxu0 0
    %1165 = vmatpush1.bf16.msra.mxu0 0
    %1166 = vmatprep.subr.bf16.mxu0 0
    %1167 = vmatpush1.bf16.msra.mxu0 0
    %1168 = vmatprep.subr.bf16.mxu0 0
    %1169 = vmatpush1.bf16.msra.mxu0 0
    %1170 = vmatprep.mubr.bf16.mxu0 0
    %1171 = vmatmul.mubr.bf16.gmra.mrb[0].mxu0 %v1036
    %v1172 = vpop.f32.mrb[0].mxu0
    %v1173 = vadd.f32 %v513, %v1172
    %v1174 = vpop.f32.mrb[0].mxu0
    %v1175 = vpop.f32.mrb[0].mxu0
    %v1176 = vpop.f32.mrb[0].mxu0
    %1177 = vdwg.mxu0
    %v1178 = vmul.f32 %v1126, %v1173
    %v1179 = vadd.f32 %v1137, %v1178
    %v1180 = vtanh.pop %v1179
    %v1181 = vsub.f32 1.0, %v1135
    %v1182 = vmul.f32 %v1181, %v1180
    %v1183 = vmul.f32 %v1135, %v1031
    %v1184 = vadd.f32 %v1182, %v1183
    %s1185 = scalar_lea.vmem [#allocation5], 32
    %1186 = vst.msk [vmem:[%s1185] sm:$0xff] %vm249, %v1184
    %v1187 = vpack.c.bf16 %v1184, %v1184
    %v1189 = vsel %vm249, %v1187, 0
    %1191 = vmatprep.subr.bf16.mxu0 0
    %1192 = vmatpush1.bf16.msra.mxu0 %v393
    %1193 = vmatprep.subr.bf16.mxu0 0
    %1194 = vmatpush1.bf16.msra.mxu0 %v394
    %1195 = vmatprep.subr.bf16.mxu0 0
    %1196 = vmatpush1.bf16.msra.mxu0 0
    %1197 = vmatprep.subr.bf16.mxu0 0
    %1198 = vmatpush1.bf16.msra.mxu0 0
    %1199 = vmatprep.subr.bf16.mxu0 0
    %1200 = vmatpush1.bf16.msra.mxu0 0
    %1201 = vmatprep.subr.bf16.mxu0 0
    %1202 = vmatpush1.bf16.msra.mxu0 0
    %1203 = vmatprep.subr.bf16.mxu0 0
    %1204 = vmatpush1.bf16.msra.mxu0 0
    %1205 = vmatprep.subr.bf16.mxu0 0
    %1206 = vmatpush1.bf16.msra.mxu0 0
    %1207 = vmatprep.subr.bf16.mxu0 0
    %1208 = vmatpush1.bf16.msra.mxu0 0
    %1209 = vmatprep.subr.bf16.mxu0 0
    %1210 = vmatpush1.bf16.msra.mxu0 0
    %1211 = vmatprep.subr.bf16.mxu0 0
    %1212 = vmatpush1.bf16.msra.mxu0 0
    %1213 = vmatprep.subr.bf16.mxu0 0
    %1214 = vmatpush1.bf16.msra.mxu0 0
    %1215 = vmatprep.subr.bf16.mxu0 0
    %1216 = vmatpush1.bf16.msra.mxu0 0
    %1217 = vmatprep.subr.bf16.mxu0 0
    %1218 = vmatpush1.bf16.msra.mxu0 0
    %1219 = vmatprep.subr.bf16.mxu0 0
    %1220 = vmatpush1.bf16.msra.mxu0 0
    %1221 = vmatprep.subr.bf16.mxu0 0
    %1222 = vmatpush1.bf16.msra.mxu0 0
    %1223 = vmatprep.mubr.bf16.mxu0 0
    %1224 = vmatmul.mubr.bf16.gmra.mrb[0].mxu0 %v1189
    %v1225 = vpop.f32.mrb[0].mxu0
    %v1226 = vadd.f32 0.0, %v1225
    %v1227 = vpop.f32.mrb[0].mxu0
    %v1228 = vpop.f32.mrb[0].mxu0
    %v1229 = vpop.f32.mrb[0].mxu0
    %1230 = vdwg.mxu0
    %1231 = vmatprep.subr.bf16.mxu0 0
    %1232 = vmatpush1.bf16.msra.mxu0 %v448
    %1233 = vmatprep.subr.bf16.mxu0 0
    %1234 = vmatpush1.bf16.msra.mxu0 %v449
    %1235 = vmatprep.subr.bf16.mxu0 0
    %1236 = vmatpush1.bf16.msra.mxu0 0
    %1237 = vmatprep.subr.bf16.mxu0 0
    %1238 = vmatpush1.bf16.msra.mxu0 0
    %1239 = vmatprep.subr.bf16.mxu0 0
    %1240 = vmatpush1.bf16.msra.mxu0 0
    %1241 = vmatprep.subr.bf16.mxu0 0
    %1242 = vmatpush1.bf16.msra.mxu0 0
    %1243 = vmatprep.subr.bf16.mxu0 0
    %1244 = vmatpush1.bf16.msra.mxu0 0
    %1245 = vmatprep.subr.bf16.mxu0 0
    %1246 = vmatpush1.bf16.msra.mxu0 0
    %1247 = vmatprep.subr.bf16.mxu0 0
    %1248 = vmatpush1.bf16.msra.mxu0 0
    %1249 = vmatprep.subr.bf16.mxu0 0
    %1250 = vmatpush1.bf16.msra.mxu0 0
    %1251 = vmatprep.subr.bf16.mxu0 0
    %1252 = vmatpush1.bf16.msra.mxu0 0
    %1253 = vmatprep.subr.bf16.mxu0 0
    %1254 = vmatpush1.bf16.msra.mxu0 0
    %1255 = vmatprep.subr.bf16.mxu0 0
    %1256 = vmatpush1.bf16.msra.mxu0 0
    %1257 = vmatprep.subr.bf16.mxu0 0
    %1258 = vmatpush1.bf16.msra.mxu0 0
    %1259 = vmatprep.subr.bf16.mxu0 0
    %1260 = vmatpush1.bf16.msra.mxu0 0
    %1261 = vmatprep.subr.bf16.mxu0 0
    %1262 = vmatpush1.bf16.msra.mxu0 0
    %1263 = vmatprep.mubr.bf16.mxu0 0
    %1264 = vmatmul.mubr.bf16.gmra.mrb[0].mxu0 %v1189
    %v1265 = vpop.f32.mrb[0].mxu0
    %v1266 = vadd.f32 0.0, %v1265
    %v1267 = vpop.f32.mrb[0].mxu0
    %v1268 = vpop.f32.mrb[0].mxu0
    %v1269 = vpop.f32.mrb[0].mxu0
    %1270 = vdwg.mxu0
    %s1271 = scalar_lea.vmem [#allocation2], 40
    %v1272 = vld [vmem:[%s1271] sm:$0xff]
    %v1273 = vadd.f32 %v1272, %v1226
    %v1274 = vxor.u32 %v1273, 2147483648
    %v1275 = vmul.f32 %v1274, 1.442695
    %v1276 = vpow.pop %v1275
    %v1277 = vadd.f32 %v1276, 1.0
    %v1278 = vrcp.pop %v1277
    %v1279 = vmul.f32 1.0, %v1278
    %s1280 = scalar_lea.vmem [#allocation3], 40
    %v1281 = vld [vmem:[%s1280] sm:$0xff]
    %v1282 = vadd.f32 %v1281, %v1266
    %v1283 = vxor.u32 %v1282, 2147483648
    %v1284 = vmul.f32 %v1283, 1.442695
    %v1285 = vpow.pop %v1284
    %v1286 = vadd.f32 %v1285, 1.0
    %v1287 = vrcp.pop %v1286
    %v1288 = vmul.f32 1.0, %v1287
    %s1289 = scalar_lea.vmem [#allocation4], 40
    %v1290 = vld [vmem:[%s1289] sm:$0xff]
    %1291 = vmatprep.subr.bf16.mxu0 0
    %1292 = vmatpush1.bf16.msra.mxu0 %v523
    %1293 = vmatprep.subr.bf16.mxu0 0
    %1294 = vmatpush1.bf16.msra.mxu0 %v524
    %1295 = vmatprep.subr.bf16.mxu0 0
    %1296 = vmatpush1.bf16.msra.mxu0 0
    %1297 = vmatprep.subr.bf16.mxu0 0
    %1298 = vmatpush1.bf16.msra.mxu0 0
    %1299 = vmatprep.subr.bf16.mxu0 0
    %1300 = vmatpush1.bf16.msra.mxu0 0
    %1301 = vmatprep.subr.bf16.mxu0 0
    %1302 = vmatpush1.bf16.msra.mxu0 0
    %1303 = vmatprep.subr.bf16.mxu0 0
    %1304 = vmatpush1.bf16.msra.mxu0 0
    %1305 = vmatprep.subr.bf16.mxu0 0
    %1306 = vmatpush1.bf16.msra.mxu0 0
    %1307 = vmatprep.subr.bf16.mxu0 0
    %1308 = vmatpush1.bf16.msra.mxu0 0
    %1309 = vmatprep.subr.bf16.mxu0 0
    %1310 = vmatpush1.bf16.msra.mxu0 0
    %1311 = vmatprep.subr.bf16.mxu0 0
    %1312 = vmatpush1.bf16.msra.mxu0 0
    %1313 = vmatprep.subr.bf16.mxu0 0
    %1314 = vmatpush1.bf16.msra.mxu0 0
    %1315 = vmatprep.subr.bf16.mxu0 0
    %1316 = vmatpush1.bf16.msra.mxu0 0
    %1317 = vmatprep.subr.bf16.mxu0 0
    %1318 = vmatpush1.bf16.msra.mxu0 0
    %1319 = vmatprep.subr.bf16.mxu0 0
    %1320 = vmatpush1.bf16.msra.mxu0 0
    %1321 = vmatprep.subr.bf16.mxu0 0
    %1322 = vmatpush1.bf16.msra.mxu0 0
    %1323 = vmatprep.mubr.bf16.mxu0 0
    %1324 = vmatmul.mubr.bf16.gmra.mrb[0].mxu0 %v1189
    %v1325 = vpop.f32.mrb[0].mxu0
    %v1326 = vadd.f32 %v513, %v1325
    %v1327 = vpop.f32.mrb[0].mxu0
    %v1328 = vpop.f32.mrb[0].mxu0
    %v1329 = vpop.f32.mrb[0].mxu0
    %1330 = vdwg.mxu0
    %v1331 = vmul.f32 %v1279, %v1326
    %v1332 = vadd.f32 %v1290, %v1331
    %v1333 = vtanh.pop %v1332
    %v1334 = vsub.f32 1.0, %v1288
    %v1335 = vmul.f32 %v1334, %v1333
    %v1336 = vmul.f32 %v1288, %v1184
    %v1337 = vadd.f32 %v1335, %v1336
    %s1338 = scalar_lea.vmem [#allocation5], 40
    %1339 = vst.msk [vmem:[%s1338] sm:$0xff] %vm249, %v1337
    %v1340 = vpack.c.bf16 %v1337, %v1337
    %v1342 = vsel %vm249, %v1340, 0
    %1344 = vmatprep.subr.bf16.mxu0 0
    %1345 = vmatpush1.bf16.msra.mxu0 %v393
    %1346 = vmatprep.subr.bf16.mxu0 0
    %1347 = vmatpush1.bf16.msra.mxu0 %v394
    %1348 = vmatprep.subr.bf16.mxu0 0
    %1349 = vmatpush1.bf16.msra.mxu0 0
    %1350 = vmatprep.subr.bf16.mxu0 0
    %1351 = vmatpush1.bf16.msra.mxu0 0
    %1352 = vmatprep.subr.bf16.mxu0 0
    %1353 = vmatpush1.bf16.msra.mxu0 0
    %1354 = vmatprep.subr.bf16.mxu0 0
    %1355 = vmatpush1.bf16.msra.mxu0 0
    %1356 = vmatprep.subr.bf16.mxu0 0
    %1357 = vmatpush1.bf16.msra.mxu0 0
    %1358 = vmatprep.subr.bf16.mxu0 0
    %1359 = vmatpush1.bf16.msra.mxu0 0
    %1360 = vmatprep.subr.bf16.mxu0 0
    %1361 = vmatpush1.bf16.msra.mxu0 0
    %1362 = vmatprep.subr.bf16.mxu0 0
    %1363 = vmatpush1.bf16.msra.mxu0 0
    %1364 = vmatprep.subr.bf16.mxu0 0
    %1365 = vmatpush1.bf16.msra.mxu0 0
    %1366 = vmatprep.subr.bf16.mxu0 0
    %1367 = vmatpush1.bf16.msra.mxu0 0
    %1368 = vmatprep.subr.bf16.mxu0 0
    %1369 = vmatpush1.bf16.msra.mxu0 0
    %1370 = vmatprep.subr.bf16.mxu0 0
    %1371 = vmatpush1.bf16.msra.mxu0 0
    %1372 = vmatprep.subr.bf16.mxu0 0
    %1373 = vmatpush1.bf16.msra.mxu0 0
    %1374 = vmatprep.subr.bf16.mxu0 0
    %1375 = vmatpush1.bf16.msra.mxu0 0
    %1376 = vmatprep.mubr.bf16.mxu0 0
    %1377 = vmatmul.mubr.bf16.gmra.mrb[0].mxu0 %v1342
    %v1378 = vpop.f32.mrb[0].mxu0
    %v1379 = vadd.f32 0.0, %v1378
    %v1380 = vpop.f32.mrb[0].mxu0
    %v1381 = vpop.f32.mrb[0].mxu0
    %v1382 = vpop.f32.mrb[0].mxu0
    %1383 = vdwg.mxu0
    %1384 = vmatprep.subr.bf16.mxu0 0
    %1385 = vmatpush1.bf16.msra.mxu0 %v448
    %1386 = vmatprep.subr.bf16.mxu0 0
    %1387 = vmatpush1.bf16.msra.mxu0 %v449
    %1388 = vmatprep.subr.bf16.mxu0 0
    %1389 = vmatpush1.bf16.msra.mxu0 0
    %1390 = vmatprep.subr.bf16.mxu0 0
    %1391 = vmatpush1.bf16.msra.mxu0 0
    %1392 = vmatprep.subr.bf16.mxu0 0
    %1393 = vmatpush1.bf16.msra.mxu0 0
    %1394 = vmatprep.subr.bf16.mxu0 0
    %1395 = vmatpush1.bf16.msra.mxu0 0
    %1396 = vmatprep.subr.bf16.mxu0 0
    %1397 = vmatpush1.bf16.msra.mxu0 0
    %1398 = vmatprep.subr.bf16.mxu0 0
    %1399 = vmatpush1.bf16.msra.mxu0 0
    %1400 = vmatprep.subr.bf16.mxu0 0
    %1401 = vmatpush1.bf16.msra.mxu0 0
    %1402 = vmatprep.subr.bf16.mxu0 0
    %1403 = vmatpush1.bf16.msra.mxu0 0
    %1404 = vmatprep.subr.bf16.mxu0 0
    %1405 = vmatpush1.bf16.msra.mxu0 0
    %1406 = vmatprep.subr.bf16.mxu0 0
    %1407 = vmatpush1.bf16.msra.mxu0 0
    %1408 = vmatprep.subr.bf16.mxu0 0
    %1409 = vmatpush1.bf16.msra.mxu0 0
    %1410 = vmatprep.subr.bf16.mxu0 0
    %1411 = vmatpush1.bf16.msra.mxu0 0
    %1412 = vmatprep.subr.bf16.mxu0 0
    %1413 = vmatpush1.bf16.msra.mxu0 0
    %1414 = vmatprep.subr.bf16.mxu0 0
    %1415 = vmatpush1.bf16.msra.mxu0 0
    %1416 = vmatprep.mubr.bf16.mxu0 0
    %1417 = vmatmul.mubr.bf16.gmra.mrb[0].mxu0 %v1342
    %v1418 = vpop.f32.mrb[0].mxu0
    %v1419 = vadd.f32 0.0, %v1418
    %v1420 = vpop.f32.mrb[0].mxu0
    %v1421 = vpop.f32.mrb[0].mxu0
    %v1422 = vpop.f32.mrb[0].mxu0
    %1423 = vdwg.mxu0
    %s1424 = scalar_lea.vmem [#allocation2], 48
    %v1425 = vld [vmem:[%s1424] sm:$0xff]
    %v1426 = vadd.f32 %v1425, %v1379
    %v1427 = vxor.u32 %v1426, 2147483648
    %v1428 = vmul.f32 %v1427, 1.442695
    %v1429 = vpow.pop %v1428
    %v1430 = vadd.f32 %v1429, 1.0
    %v1431 = vrcp.pop %v1430
    %v1432 = vmul.f32 1.0, %v1431
    %s1433 = scalar_lea.vmem [#allocation3], 48
    %v1434 = vld [vmem:[%s1433] sm:$0xff]
    %v1435 = vadd.f32 %v1434, %v1419
    %v1436 = vxor.u32 %v1435, 2147483648
    %v1437 = vmul.f32 %v1436, 1.442695
    %v1438 = vpow.pop %v1437
    %v1439 = vadd.f32 %v1438, 1.0
    %v1440 = vrcp.pop %v1439
    %v1441 = vmul.f32 1.0, %v1440
    %s1442 = scalar_lea.vmem [#allocation4], 48
    %v1443 = vld [vmem:[%s1442] sm:$0xff]
    %1444 = vmatprep.subr.bf16.mxu0 0
    %1445 = vmatpush1.bf16.msra.mxu0 %v523
    %1446 = vmatprep.subr.bf16.mxu0 0
    %1447 = vmatpush1.bf16.msra.mxu0 %v524
    %1448 = vmatprep.subr.bf16.mxu0 0
    %1449 = vmatpush1.bf16.msra.mxu0 0
    %1450 = vmatprep.subr.bf16.mxu0 0
    %1451 = vmatpush1.bf16.msra.mxu0 0
    %1452 = vmatprep.subr.bf16.mxu0 0
    %1453 = vmatpush1.bf16.msra.mxu0 0
    %1454 = vmatprep.subr.bf16.mxu0 0
    %1455 = vmatpush1.bf16.msra.mxu0 0
    %1456 = vmatprep.subr.bf16.mxu0 0
    %1457 = vmatpush1.bf16.msra.mxu0 0
    %1458 = vmatprep.subr.bf16.mxu0 0
    %1459 = vmatpush1.bf16.msra.mxu0 0
    %1460 = vmatprep.subr.bf16.mxu0 0
    %1461 = vmatpush1.bf16.msra.mxu0 0
    %1462 = vmatprep.subr.bf16.mxu0 0
    %1463 = vmatpush1.bf16.msra.mxu0 0
    %1464 = vmatprep.subr.bf16.mxu0 0
    %1465 = vmatpush1.bf16.msra.mxu0 0
    %1466 = vmatprep.subr.bf16.mxu0 0
    %1467 = vmatpush1.bf16.msra.mxu0 0
    %1468 = vmatprep.subr.bf16.mxu0 0
    %1469 = vmatpush1.bf16.msra.mxu0 0
    %1470 = vmatprep.subr.bf16.mxu0 0
    %1471 = vmatpush1.bf16.msra.mxu0 0
    %1472 = vmatprep.subr.bf16.mxu0 0
    %1473 = vmatpush1.bf16.msra.mxu0 0
    %1474 = vmatprep.subr.bf16.mxu0 0
    %1475 = vmatpush1.bf16.msra.mxu0 0
    %1476 = vmatprep.mubr.bf16.mxu0 0
    %1477 = vmatmul.mubr.bf16.gmra.mrb[0].mxu0 %v1342
    %v1478 = vpop.f32.mrb[0].mxu0
    %v1479 = vadd.f32 %v513, %v1478
    %v1480 = vpop.f32.mrb[0].mxu0
    %v1481 = vpop.f32.mrb[0].mxu0
    %v1482 = vpop.f32.mrb[0].mxu0
    %1483 = vdwg.mxu0
    %v1484 = vmul.f32 %v1432, %v1479
    %v1485 = vadd.f32 %v1443, %v1484
    %v1486 = vtanh.pop %v1485
    %v1487 = vsub.f32 1.0, %v1441
    %v1488 = vmul.f32 %v1487, %v1486
    %v1489 = vmul.f32 %v1441, %v1337
    %v1490 = vadd.f32 %v1488, %v1489
    %s1491 = scalar_lea.vmem [#allocation5], 48
    %1492 = vst.msk [vmem:[%s1491] sm:$0xff] %vm249, %v1490
    %v1493 = vpack.c.bf16 %v1490, %v1490
    %v1495 = vsel %vm249, %v1493, 0
    %1497 = vmatprep.subr.bf16.mxu0 0
    %1498 = vmatpush1.bf16.msra.mxu0 %v393
    %1499 = vmatprep.subr.bf16.mxu0 0
    %1500 = vmatpush1.bf16.msra.mxu0 %v394
    %1501 = vmatprep.subr.bf16.mxu0 0
    %1502 = vmatpush1.bf16.msra.mxu0 0
    %1503 = vmatprep.subr.bf16.mxu0 0
    %1504 = vmatpush1.bf16.msra.mxu0 0
    %1505 = vmatprep.subr.bf16.mxu0 0
    %1506 = vmatpush1.bf16.msra.mxu0 0
    %1507 = vmatprep.subr.bf16.mxu0 0
    %1508 = vmatpush1.bf16.msra.mxu0 0
    %1509 = vmatprep.subr.bf16.mxu0 0
    %1510 = vmatpush1.bf16.msra.mxu0 0
    %1511 = vmatprep.subr.bf16.mxu0 0
    %1512 = vmatpush1.bf16.msra.mxu0 0
    %1513 = vmatprep.subr.bf16.mxu0 0
    %1514 = vmatpush1.bf16.msra.mxu0 0
    %1515 = vmatprep.subr.bf16.mxu0 0
    %1516 = vmatpush1.bf16.msra.mxu0 0
    %1517 = vmatprep.subr.bf16.mxu0 0
    %1518 = vmatpush1.bf16.msra.mxu0 0
    %1519 = vmatprep.subr.bf16.mxu0 0
    %1520 = vmatpush1.bf16.msra.mxu0 0
    %1521 = vmatprep.subr.bf16.mxu0 0
    %1522 = vmatpush1.bf16.msra.mxu0 0
    %1523 = vmatprep.subr.bf16.mxu0 0
    %1524 = vmatpush1.bf16.msra.mxu0 0
    %1525 = vmatprep.subr.bf16.mxu0 0
    %1526 = vmatpush1.bf16.msra.mxu0 0
    %1527 = vmatprep.subr.bf16.mxu0 0
    %1528 = vmatpush1.bf16.msra.mxu0 0
    %1529 = vmatprep.mubr.bf16.mxu0 0
    %1530 = vmatmul.mubr.bf16.gmra.mrb[0].mxu0 %v1495
    %v1531 = vpop.f32.mrb[0].mxu0
    %v1532 = vadd.f32 0.0, %v1531
    %v1533 = vpop.f32.mrb[0].mxu0
    %v1534 = vpop.f32.mrb[0].mxu0
    %v1535 = vpop.f32.mrb[0].mxu0
    %1536 = vdwg.mxu0
    %1537 = vmatprep.subr.bf16.mxu0 0
    %1538 = vmatpush1.bf16.msra.mxu0 %v448
    %1539 = vmatprep.subr.bf16.mxu0 0
    %1540 = vmatpush1.bf16.msra.mxu0 %v449
    %1541 = vmatprep.subr.bf16.mxu0 0
    %1542 = vmatpush1.bf16.msra.mxu0 0
    %1543 = vmatprep.subr.bf16.mxu0 0
    %1544 = vmatpush1.bf16.msra.mxu0 0
    %1545 = vmatprep.subr.bf16.mxu0 0
    %1546 = vmatpush1.bf16.msra.mxu0 0
    %1547 = vmatprep.subr.bf16.mxu0 0
    %1548 = vmatpush1.bf16.msra.mxu0 0
    %1549 = vmatprep.subr.bf16.mxu0 0
    %1550 = vmatpush1.bf16.msra.mxu0 0
    %1551 = vmatprep.subr.bf16.mxu0 0
    %1552 = vmatpush1.bf16.msra.mxu0 0
    %1553 = vmatprep.subr.bf16.mxu0 0
    %1554 = vmatpush1.bf16.msra.mxu0 0
    %1555 = vmatprep.subr.bf16.mxu0 0
    %1556 = vmatpush1.bf16.msra.mxu0 0
    %1557 = vmatprep.subr.bf16.mxu0 0
    %1558 = vmatpush1.bf16.msra.mxu0 0
    %1559 = vmatprep.subr.bf16.mxu0 0
    %1560 = vmatpush1.bf16.msra.mxu0 0
    %1561 = vmatprep.subr.bf16.mxu0 0
    %1562 = vmatpush1.bf16.msra.mxu0 0
    %1563 = vmatprep.subr.bf16.mxu0 0
    %1564 = vmatpush1.bf16.msra.mxu0 0
    %1565 = vmatprep.subr.bf16.mxu0 0
    %1566 = vmatpush1.bf16.msra.mxu0 0
    %1567 = vmatprep.subr.bf16.mxu0 0
    %1568 = vmatpush1.bf16.msra.mxu0 0
    %1569 = vmatprep.mubr.bf16.mxu0 0
    %1570 = vmatmul.mubr.bf16.gmra.mrb[0].mxu0 %v1495
    %v1571 = vpop.f32.mrb[0].mxu0
    %v1572 = vadd.f32 0.0, %v1571
    %v1573 = vpop.f32.mrb[0].mxu0
    %v1574 = vpop.f32.mrb[0].mxu0
    %v1575 = vpop.f32.mrb[0].mxu0
    %1576 = vdwg.mxu0
    %s1577 = scalar_lea.vmem [#allocation2], 56
    %v1578 = vld [vmem:[%s1577] sm:$0xff]
    %v1579 = vadd.f32 %v1578, %v1532
    %v1580 = vxor.u32 %v1579, 2147483648
    %v1581 = vmul.f32 %v1580, 1.442695
    %v1582 = vpow.pop %v1581
    %v1583 = vadd.f32 %v1582, 1.0
    %v1584 = vrcp.pop %v1583
    %v1585 = vmul.f32 1.0, %v1584
    %s1586 = scalar_lea.vmem [#allocation3], 56
    %v1587 = vld [vmem:[%s1586] sm:$0xff]
    %v1588 = vadd.f32 %v1587, %v1572
    %v1589 = vxor.u32 %v1588, 2147483648
    %v1590 = vmul.f32 %v1589, 1.442695
    %v1591 = vpow.pop %v1590
    %v1592 = vadd.f32 %v1591, 1.0
    %v1593 = vrcp.pop %v1592
    %v1594 = vmul.f32 1.0, %v1593
    %s1595 = scalar_lea.vmem [#allocation4], 56
    %v1596 = vld [vmem:[%s1595] sm:$0xff]
    %1597 = vmatprep.subr.bf16.mxu0 0
    %1598 = vmatpush1.bf16.msra.mxu0 %v523
    %1599 = vmatprep.subr.bf16.mxu0 0
    %1600 = vmatpush1.bf16.msra.mxu0 %v524
    %1601 = vmatprep.subr.bf16.mxu0 0
    %1602 = vmatpush1.bf16.msra.mxu0 0
    %1603 = vmatprep.subr.bf16.mxu0 0
    %1604 = vmatpush1.bf16.msra.mxu0 0
    %1605 = vmatprep.subr.bf16.mxu0 0
    %1606 = vmatpush1.bf16.msra.mxu0 0
    %1607 = vmatprep.subr.bf16.mxu0 0
    %1608 = vmatpush1.bf16.msra.mxu0 0
    %1609 = vmatprep.subr.bf16.mxu0 0
    %1610 = vmatpush1.bf16.msra.mxu0 0
    %1611 = vmatprep.subr.bf16.mxu0 0
    %1612 = vmatpush1.bf16.msra.mxu0 0
    %1613 = vmatprep.subr.bf16.mxu0 0
    %1614 = vmatpush1.bf16.msra.mxu0 0
    %1615 = vmatprep.subr.bf16.mxu0 0
    %1616 = vmatpush1.bf16.msra.mxu0 0
    %1617 = vmatprep.subr.bf16.mxu0 0
    %1618 = vmatpush1.bf16.msra.mxu0 0
    %1619 = vmatprep.subr.bf16.mxu0 0
    %1620 = vmatpush1.bf16.msra.mxu0 0
    %1621 = vmatprep.subr.bf16.mxu0 0
    %1622 = vmatpush1.bf16.msra.mxu0 0
    %1623 = vmatprep.subr.bf16.mxu0 0
    %1624 = vmatpush1.bf16.msra.mxu0 0
    %1625 = vmatprep.subr.bf16.mxu0 0
    %1626 = vmatpush1.bf16.msra.mxu0 0
    %1627 = vmatprep.subr.bf16.mxu0 0
    %1628 = vmatpush1.bf16.msra.mxu0 0
    %1629 = vmatprep.mubr.bf16.mxu0 0
    %1630 = vmatmul.mubr.bf16.gmra.mrb[0].mxu0 %v1495
    %v1631 = vpop.f32.mrb[0].mxu0
    %v1632 = vadd.f32 %v513, %v1631
    %v1633 = vpop.f32.mrb[0].mxu0
    %v1634 = vpop.f32.mrb[0].mxu0
    %v1635 = vpop.f32.mrb[0].mxu0
    %1636 = vdwg.mxu0
    %v1637 = vmul.f32 %v1585, %v1632
    %v1638 = vadd.f32 %v1596, %v1637
    %v1639 = vtanh.pop %v1638
    %v1640 = vsub.f32 1.0, %v1594
    %v1641 = vmul.f32 %v1640, %v1639
    %v1642 = vmul.f32 %v1594, %v1490
    %v1643 = vadd.f32 %v1641, %v1642
    %s1644 = scalar_lea.vmem [#allocation5], 56
    %1645 = vst.msk [vmem:[%s1644] sm:$0xff] %vm249, %v1643
    %v1646 = vld [vmem:[#allocation5] sm:$0xff]
    %v1647 = vld [vmem:[#allocation5 + $0x8] sm:$0xff]
    %v1648 = vld [vmem:[#allocation5 + $0x10] sm:$0xff]
    %v1649 = vld [vmem:[#allocation5 + $0x18] sm:$0xff]
    %v1650 = vld [vmem:[#allocation5 + $0x20] sm:$0xff]
    %v1651 = vld [vmem:[#allocation5 + $0x28] sm:$0xff]
    %v1652 = vld [vmem:[#allocation5 + $0x30] sm:$0xff]
    %v1653 = vld [vmem:[#allocation5 + $0x38] sm:$0xff]
    %v1654 = vpack.c.bf16 %v1647, %v1646
    %v1655 = vpack.c.bf16 %v1649, %v1648
    %v1656 = vpack.c.bf16 %v1651, %v1650
    %v1657 = vpack.c.bf16 %v1653, %v1652
    %v1658 = vld [vmem:[%s9] sm:$0xf]
    %v1659 = vld [vmem:[%s9 + $0x4] sm:$0xf]
    %v1660 = vld [vmem:[%s9 + $0x8] sm:$0xf]
    %v1661 = vld [vmem:[%s9 + $0xc] sm:$0xf]
    %v1666 = vunpack.c.l.b16 %v1658
    %v1667 = vunpack.c.l.b16 %v1659
    %v1668 = vunpack.c.l.b16 %v1660
    %v1669 = vunpack.c.l.b16 %v1661
    %v1670 = vpack.c.b16 %v1667, %v1666
    %v1671 = vpack.c.b16 %v1669, %v1668
    %v1675 = vsel %vm249, %v1654, 0
    %v1678 = vsel %vm249, %v1655, 0
    %v1681 = vsel %vm249, %v1656, 0
    %v1684 = vsel %vm249, %v1657, 0
    %1686 = vmatprep.subr.bf16.mxu0 0
    %1687 = vmatpush1.bf16.msra.mxu0 %v1670
    %1688 = vmatprep.subr.bf16.mxu0 0
    %1689 = vmatpush1.bf16.msra.mxu0 %v1671
    %1690 = vmatprep.subr.bf16.mxu0 0
    %1691 = vmatpush1.bf16.msra.mxu0 0
    %1692 = vmatprep.subr.bf16.mxu0 0
    %1693 = vmatpush1.bf16.msra.mxu0 0
    %1694 = vmatprep.subr.bf16.mxu0 0
    %1695 = vmatpush1.bf16.msra.mxu0 0
    %1696 = vmatprep.subr.bf16.mxu0 0
    %1697 = vmatpush1.bf16.msra.mxu0 0
    %1698 = vmatprep.subr.bf16.mxu0 0
    %1699 = vmatpush1.bf16.msra.mxu0 0
    %1700 = vmatprep.subr.bf16.mxu0 0
    %1701 = vmatpush1.bf16.msra.mxu0 0
    %1702 = vmatprep.subr.bf16.mxu0 0
    %1703 = vmatpush1.bf16.msra.mxu0 0
    %1704 = vmatprep.subr.bf16.mxu0 0
    %1705 = vmatpush1.bf16.msra.mxu0 0
    %1706 = vmatprep.subr.bf16.mxu0 0
    %1707 = vmatpush1.bf16.msra.mxu0 0
    %1708 = vmatprep.subr.bf16.mxu0 0
    %1709 = vmatpush1.bf16.msra.mxu0 0
    %1710 = vmatprep.subr.bf16.mxu0 0
    %1711 = vmatpush1.bf16.msra.mxu0 0
    %1712 = vmatprep.subr.bf16.mxu0 0
    %1713 = vmatpush1.bf16.msra.mxu0 0
    %1714 = vmatprep.subr.bf16.mxu0 0
    %1715 = vmatpush1.bf16.msra.mxu0 0
    %1716 = vmatprep.subr.bf16.mxu0 0
    %1717 = vmatpush1.bf16.msra.mxu0 0
    %1718 = vmatprep.mubr.bf16.mxu0 0
    %1719 = vmatmul.mubr.bf16.gmra.mrb[0].mxu0 %v1675
    %v1720 = vpop.f32.mrb[0].mxu0
    %v1721 = vadd.f32 0.0, %v1720
    %v1722 = vpop.f32.mrb[0].mxu0
    %v1723 = vpop.f32.mrb[0].mxu0
    %v1724 = vadd.f32 0.0, %v1723
    %v1725 = vpop.f32.mrb[0].mxu0
    %1726 = vmatprep.mubr.bf16.mxu0 0
    %1727 = vmatmul.mubr.bf16.gmra.mrb[0].mxu0 %v1678
    %v1728 = vpop.f32.mrb[0].mxu0
    %v1729 = vadd.f32 0.0, %v1728
    %v1730 = vpop.f32.mrb[0].mxu0
    %v1731 = vpop.f32.mrb[0].mxu0
    %v1732 = vadd.f32 0.0, %v1731
    %v1733 = vpop.f32.mrb[0].mxu0
    %1734 = vmatprep.mubr.bf16.mxu0 0
    %1735 = vmatmul.mubr.bf16.gmra.mrb[0].mxu0 %v1681
    %v1736 = vpop.f32.mrb[0].mxu0
    %v1737 = vadd.f32 0.0, %v1736
    %v1738 = vpop.f32.mrb[0].mxu0
    %v1739 = vpop.f32.mrb[0].mxu0
    %v1740 = vadd.f32 0.0, %v1739
    %v1741 = vpop.f32.mrb[0].mxu0
    %1742 = vmatprep.mubr.bf16.mxu0 0
    %1743 = vmatmul.mubr.bf16.gmra.mrb[0].mxu0 %v1684
    %v1744 = vpop.f32.mrb[0].mxu0
    %v1745 = vadd.f32 0.0, %v1744
    %v1746 = vpop.f32.mrb[0].mxu0
    %v1747 = vpop.f32.mrb[0].mxu0
    %v1748 = vadd.f32 0.0, %v1747
    %v1749 = vpop.f32.mrb[0].mxu0
    %1750 = vdwg.mxu0
    %v1751 = vld [vmem:[%s13] sm:$0x1]
    %v1753 = vlaneseq
    %v1754 = vshrl.u32 %v1753, 7
    %v1755 = vsub.s32 0, %v1754
    %v1756 = vrot.slane %v1751, %v1755
    %v1758 = vadd.f32 %v1721, %v1756
    %v1759 = vadd.f32 %v1724, %v1756
    %v1760 = vadd.f32 %v1729, %v1756
    %v1761 = vadd.f32 %v1732, %v1756
    %v1762 = vadd.f32 %v1737, %v1756
    %v1763 = vadd.f32 %v1740, %v1756
    %v1764 = vadd.f32 %v1745, %v1756
    %v1765 = vadd.f32 %v1748, %v1756
    %1766 = vst.msk [vmem:[#allocation2] sm:$0xff] %vm249, %v1758
    %1767 = vst.msk [vmem:[#allocation2 + $0x8] sm:$0xff] %vm249, %v1759
    %1768 = vst.msk [vmem:[#allocation2 + $0x10] sm:$0xff] %vm249, %v1760
    %1769 = vst.msk [vmem:[#allocation2 + $0x18] sm:$0xff] %vm249, %v1761
    %1770 = vst.msk [vmem:[#allocation2 + $0x20] sm:$0xff] %vm249, %v1762
    %1771 = vst.msk [vmem:[#allocation2 + $0x28] sm:$0xff] %vm249, %v1763
    %1772 = vst.msk [vmem:[#allocation2 + $0x30] sm:$0xff] %vm249, %v1764
    %1773 = vst.msk [vmem:[#allocation2 + $0x38] sm:$0xff] %vm249, %v1765
    %v1774 = vld [vmem:[%s14] sm:$0x1]
    %v1776 = vlaneseq
    %v1777 = vshrl.u32 %v1776, 7
    %v1778 = vsub.s32 0, %v1777
    %v1779 = vrot.slane %v1774, %v1778
    %1780 = vrot.lane.b32.xlu0 %v1779, 32
    %v1781 = vpop.permute.xlu0 %1780
    %v1783 = vadd.f32 %v1721, %v1781
    %v1784 = vadd.f32 %v1724, %v1781
    %v1785 = vadd.f32 %v1729, %v1781
    %v1786 = vadd.f32 %v1732, %v1781
    %v1787 = vadd.f32 %v1737, %v1781
    %v1788 = vadd.f32 %v1740, %v1781
    %v1789 = vadd.f32 %v1745, %v1781
    %v1790 = vadd.f32 %v1748, %v1781
    %1799 = vrot.lane.b32.xlu0 %v1783, 96
    %v1800 = vpop.permute.xlu0 %1799
    %1801 = vrot.lane.b32.xlu0 %v1784, 96
    %v1802 = vpop.permute.xlu0 %1801
    %1803 = vrot.lane.b32.xlu0 %v1785, 96
    %v1804 = vpop.permute.xlu0 %1803
    %1805 = vrot.lane.b32.xlu0 %v1786, 96
    %v1806 = vpop.permute.xlu0 %1805
    %1807 = vrot.lane.b32.xlu0 %v1787, 96
    %v1808 = vpop.permute.xlu0 %1807
    %1809 = vrot.lane.b32.xlu0 %v1788, 96
    %v1810 = vpop.permute.xlu0 %1809
    %1811 = vrot.lane.b32.xlu0 %v1789, 96
    %v1812 = vpop.permute.xlu0 %1811
    %1813 = vrot.lane.b32.xlu0 %v1790, 96
    %v1814 = vpop.permute.xlu0 %1813
    %1823 = vst.msk [vmem:[#allocation3] sm:$0xff] %vm249, %v1800
    %1824 = vst.msk [vmem:[#allocation3 + $0x8] sm:$0xff] %vm249, %v1802
    %1825 = vst.msk [vmem:[#allocation3 + $0x10] sm:$0xff] %vm249, %v1804
    %1826 = vst.msk [vmem:[#allocation3 + $0x18] sm:$0xff] %vm249, %v1806
    %1827 = vst.msk [vmem:[#allocation3 + $0x20] sm:$0xff] %vm249, %v1808
    %1828 = vst.msk [vmem:[#allocation3 + $0x28] sm:$0xff] %vm249, %v1810
    %1829 = vst.msk [vmem:[#allocation3 + $0x30] sm:$0xff] %vm249, %v1812
    %1830 = vst.msk [vmem:[#allocation3 + $0x38] sm:$0xff] %vm249, %v1814
    %v1831 = vld [vmem:[%s15] sm:$0x1]
    %v1833 = vlaneseq
    %v1834 = vshrl.u32 %v1833, 7
    %v1835 = vsub.s32 0, %v1834
    %v1836 = vrot.slane %v1831, %v1835
    %1837 = vrot.lane.b32.xlu0 %v1836, 64
    %v1838 = vpop.permute.xlu0 %1837
    %v1840 = vadd.f32 %v1721, %v1838
    %v1841 = vadd.f32 %v1724, %v1838
    %v1842 = vadd.f32 %v1729, %v1838
    %v1843 = vadd.f32 %v1732, %v1838
    %v1844 = vadd.f32 %v1737, %v1838
    %v1845 = vadd.f32 %v1740, %v1838
    %v1846 = vadd.f32 %v1745, %v1838
    %v1847 = vadd.f32 %v1748, %v1838
    %1856 = vrot.lane.b32.xlu0 %v1840, 64
    %v1857 = vpop.permute.xlu0 %1856
    %1858 = vrot.lane.b32.xlu0 %v1841, 64
    %v1859 = vpop.permute.xlu0 %1858
    %1860 = vrot.lane.b32.xlu0 %v1842, 64
    %v1861 = vpop.permute.xlu0 %1860
    %1862 = vrot.lane.b32.xlu0 %v1843, 64
    %v1863 = vpop.permute.xlu0 %1862
    %1864 = vrot.lane.b32.xlu0 %v1844, 64
    %v1865 = vpop.permute.xlu0 %1864
    %1866 = vrot.lane.b32.xlu0 %v1845, 64
    %v1867 = vpop.permute.xlu0 %1866
    %1868 = vrot.lane.b32.xlu0 %v1846, 64
    %v1869 = vpop.permute.xlu0 %1868
    %1870 = vrot.lane.b32.xlu0 %v1847, 64
    %v1871 = vpop.permute.xlu0 %1870
    %1880 = vst.msk [vmem:[#allocation4] sm:$0xff] %vm249, %v1857
    %1881 = vst.msk [vmem:[#allocation4 + $0x8] sm:$0xff] %vm249, %v1859
    %1882 = vst.msk [vmem:[#allocation4 + $0x10] sm:$0xff] %vm249, %v1861
    %1883 = vst.msk [vmem:[#allocation4 + $0x18] sm:$0xff] %vm249, %v1863
    %1884 = vst.msk [vmem:[#allocation4 + $0x20] sm:$0xff] %vm249, %v1865
    %1885 = vst.msk [vmem:[#allocation4 + $0x28] sm:$0xff] %vm249, %v1867
    %1886 = vst.msk [vmem:[#allocation4 + $0x30] sm:$0xff] %vm249, %v1869
    %1887 = vst.msk [vmem:[#allocation4 + $0x38] sm:$0xff] %vm249, %v1871
    %v1888 = vld [vmem:[%s10] sm:$0xf]
    %v1889 = vld [vmem:[%s10 + $0x4] sm:$0xf]
    %v1890 = vld [vmem:[%s10 + $0x8] sm:$0xf]
    %v1891 = vld [vmem:[%s10 + $0xc] sm:$0xf]
    %v1892 = vld [vmem:[#allocation13] sm:$0xf]
    %v1893 = vld [vmem:[#allocation13 + $0x4] sm:$0xf]
    %v1894 = vld [vmem:[#allocation13 + $0x8] sm:$0xf]
    %v1895 = vld [vmem:[#allocation13 + $0xc] sm:$0xf]
    %v1896 = vld [vmem:[%s12] sm:$0xf]
    %v1897 = vld [vmem:[%s12 + $0x4] sm:$0xf]
    %v1898 = vld [vmem:[%s12 + $0x8] sm:$0xf]
    %v1899 = vld [vmem:[%s12 + $0xc] sm:$0xf]
    %v1900 = vld [vmem:[%s16] sm:$0x1]
    %v1905 = vunpack.c.l.b16 %v1888
    %v1906 = vunpack.c.l.b16 %v1889
    %v1907 = vunpack.c.l.b16 %v1890
    %v1908 = vunpack.c.l.b16 %v1891
    %v1909 = vpack.c.b16 %v1906, %v1905
    %v1910 = vpack.c.b16 %v1908, %v1907
    %1913 = vmatprep.subr.bf16.mxu0 0
    %1914 = vmatpush1.bf16.msra.mxu0 %v1909
    %1915 = vmatprep.subr.bf16.mxu0 0
    %1916 = vmatpush1.bf16.msra.mxu0 %v1910
    %1917 = vmatprep.subr.bf16.mxu0 0
    %1918 = vmatpush1.bf16.msra.mxu0 0
    %1919 = vmatprep.subr.bf16.mxu0 0
    %1920 = vmatpush1.bf16.msra.mxu0 0
    %1921 = vmatprep.subr.bf16.mxu0 0
    %1922 = vmatpush1.bf16.msra.mxu0 0
    %1923 = vmatprep.subr.bf16.mxu0 0
    %1924 = vmatpush1.bf16.msra.mxu0 0
    %1925 = vmatprep.subr.bf16.mxu0 0
    %1926 = vmatpush1.bf16.msra.mxu0 0
    %1927 = vmatprep.subr.bf16.mxu0 0
    %1928 = vmatpush1.bf16.msra.mxu0 0
    %1929 = vmatprep.subr.bf16.mxu0 0
    %1930 = vmatpush1.bf16.msra.mxu0 0
    %1931 = vmatprep.subr.bf16.mxu0 0
    %1932 = vmatpush1.bf16.msra.mxu0 0
    %1933 = vmatprep.subr.bf16.mxu0 0
    %1934 = vmatpush1.bf16.msra.mxu0 0
    %1935 = vmatprep.subr.bf16.mxu0 0
    %1936 = vmatpush1.bf16.msra.mxu0 0
    %1937 = vmatprep.subr.bf16.mxu0 0
    %1938 = vmatpush1.bf16.msra.mxu0 0
    %1939 = vmatprep.subr.bf16.mxu0 0
    %1940 = vmatpush1.bf16.msra.mxu0 0
    %1941 = vmatprep.subr.bf16.mxu0 0
    %1942 = vmatpush1.bf16.msra.mxu0 0
    %1943 = vmatprep.subr.bf16.mxu0 0
    %1944 = vmatpush1.bf16.msra.mxu0 0
    %1945 = vmatprep.mubr.bf16.mxu0 0
    %1946 = vmatmul.mubr.bf16.gmra.mrb[0].mxu0 %v398
    %v1947 = vpop.f32.mrb[0].mxu0
    %v1948 = vadd.f32 0.0, %v1947
    %v1949 = vpop.f32.mrb[0].mxu0
    %v1950 = vpop.f32.mrb[0].mxu0
    %v1951 = vpop.f32.mrb[0].mxu0
    %1952 = vdwg.mxu0
    %v1957 = vunpack.c.l.b16 %v1892
    %v1958 = vunpack.c.l.b16 %v1893
    %v1959 = vunpack.c.l.b16 %v1894
    %v1960 = vunpack.c.l.b16 %v1895
    %v1961 = vpack.c.b16 %v1958, %v1957
    %v1962 = vpack.c.b16 %v1960, %v1959
    %1965 = vmatprep.subr.bf16.mxu0 0
    %1966 = vmatpush1.bf16.msra.mxu0 %v1961
    %1967 = vmatprep.subr.bf16.mxu0 0
    %1968 = vmatpush1.bf16.msra.mxu0 %v1962
    %1969 = vmatprep.subr.bf16.mxu0 0
    %1970 = vmatpush1.bf16.msra.mxu0 0
    %1971 = vmatprep.subr.bf16.mxu0 0
    %1972 = vmatpush1.bf16.msra.mxu0 0
    %1973 = vmatprep.subr.bf16.mxu0 0
    %1974 = vmatpush1.bf16.msra.mxu0 0
    %1975 = vmatprep.subr.bf16.mxu0 0
    %1976 = vmatpush1.bf16.msra.mxu0 0
    %1977 = vmatprep.subr.bf16.mxu0 0
    %1978 = vmatpush1.bf16.msra.mxu0 0
    %1979 = vmatprep.subr.bf16.mxu0 0
    %1980 = vmatpush1.bf16.msra.mxu0 0
    %1981 = vmatprep.subr.bf16.mxu0 0
    %1982 = vmatpush1.bf16.msra.mxu0 0
    %1983 = vmatprep.subr.bf16.mxu0 0
    %1984 = vmatpush1.bf16.msra.mxu0 0
    %1985 = vmatprep.subr.bf16.mxu0 0
    %1986 = vmatpush1.bf16.msra.mxu0 0
    %1987 = vmatprep.subr.bf16.mxu0 0
    %1988 = vmatpush1.bf16.msra.mxu0 0
    %1989 = vmatprep.subr.bf16.mxu0 0
    %1990 = vmatpush1.bf16.msra.mxu0 0
    %1991 = vmatprep.subr.bf16.mxu0 0
    %1992 = vmatpush1.bf16.msra.mxu0 0
    %1993 = vmatprep.subr.bf16.mxu0 0
    %1994 = vmatpush1.bf16.msra.mxu0 0
    %1995 = vmatprep.subr.bf16.mxu0 0
    %1996 = vmatpush1.bf16.msra.mxu0 0
    %1997 = vmatprep.mubr.bf16.mxu0 0
    %1998 = vmatmul.mubr.bf16.gmra.mrb[0].mxu0 %v398
    %v1999 = vpop.f32.mrb[0].mxu0
    %v2000 = vadd.f32 0.0, %v1999
    %v2001 = vpop.f32.mrb[0].mxu0
    %v2002 = vpop.f32.mrb[0].mxu0
    %v2003 = vpop.f32.mrb[0].mxu0
    %2004 = vdwg.mxu0
    %v2005 = vld [vmem:[#allocation2] sm:$0xff]
    %v2006 = vadd.f32 %v2005, %v1948
    %v2007 = vxor.u32 %v2006, 2147483648
    %v2008 = vmul.f32 %v2007, 1.442695
    %v2009 = vpow.pop %v2008
    %v2010 = vadd.f32 %v2009, 1.0
    %v2011 = vrcp.pop %v2010
    %v2012 = vmul.f32 1.0, %v2011
    %v2013 = vld [vmem:[#allocation3] sm:$0xff]
    %v2014 = vadd.f32 %v2013, %v2000
    %v2015 = vxor.u32 %v2014, 2147483648
    %v2016 = vmul.f32 %v2015, 1.442695
    %v2017 = vpow.pop %v2016
    %v2018 = vadd.f32 %v2017, 1.0
    %v2019 = vrcp.pop %v2018
    %v2020 = vmul.f32 1.0, %v2019
    %v2021 = vld [vmem:[#allocation4] sm:$0xff]
    %v2023 = vlaneseq
    %v2024 = vshrl.u32 %v2023, 7
    %v2025 = vsub.s32 0, %v2024
    %v2026 = vrot.slane %v1900, %v2025
    %v2032 = vunpack.c.l.b16 %v1896
    %v2033 = vunpack.c.l.b16 %v1897
    %v2034 = vunpack.c.l.b16 %v1898
    %v2035 = vunpack.c.l.b16 %v1899
    %v2036 = vpack.c.b16 %v2033, %v2032
    %v2037 = vpack.c.b16 %v2035, %v2034
    %2040 = vmatprep.subr.bf16.mxu0 0
    %2041 = vmatpush1.bf16.msra.mxu0 %v2036
    %2042 = vmatprep.subr.bf16.mxu0 0
    %2043 = vmatpush1.bf16.msra.mxu0 %v2037
    %2044 = vmatprep.subr.bf16.mxu0 0
    %2045 = vmatpush1.bf16.msra.mxu0 0
    %2046 = vmatprep.subr.bf16.mxu0 0
    %2047 = vmatpush1.bf16.msra.mxu0 0
    %2048 = vmatprep.subr.bf16.mxu0 0
    %2049 = vmatpush1.bf16.msra.mxu0 0
    %2050 = vmatprep.subr.bf16.mxu0 0
    %2051 = vmatpush1.bf16.msra.mxu0 0
    %2052 = vmatprep.subr.bf16.mxu0 0
    %2053 = vmatpush1.bf16.msra.mxu0 0
    %2054 = vmatprep.subr.bf16.mxu0 0
    %2055 = vmatpush1.bf16.msra.mxu0 0
    %2056 = vmatprep.subr.bf16.mxu0 0
    %2057 = vmatpush1.bf16.msra.mxu0 0
    %2058 = vmatprep.subr.bf16.mxu0 0
    %2059 = vmatpush1.bf16.msra.mxu0 0
    %2060 = vmatprep.subr.bf16.mxu0 0
    %2061 = vmatpush1.bf16.msra.mxu0 0
    %2062 = vmatprep.subr.bf16.mxu0 0
    %2063 = vmatpush1.bf16.msra.mxu0 0
    %2064 = vmatprep.subr.bf16.mxu0 0
    %2065 = vmatpush1.bf16.msra.mxu0 0
    %2066 = vmatprep.subr.bf16.mxu0 0
    %2067 = vmatpush1.bf16.msra.mxu0 0
    %2068 = vmatprep.subr.bf16.mxu0 0
    %2069 = vmatpush1.bf16.msra.mxu0 0
    %2070 = vmatprep.subr.bf16.mxu0 0
    %2071 = vmatpush1.bf16.msra.mxu0 0
    %2072 = vmatprep.mubr.bf16.mxu0 0
    %2073 = vmatmul.mubr.bf16.gmra.mrb[0].mxu0 %v398
    %v2074 = vpop.f32.mrb[0].mxu0
    %v2075 = vadd.f32 %v2026, %v2074
    %v2076 = vpop.f32.mrb[0].mxu0
    %v2077 = vpop.f32.mrb[0].mxu0
    %v2078 = vpop.f32.mrb[0].mxu0
    %2079 = vdwg.mxu0
    %v2080 = vmul.f32 %v2012, %v2075
    %v2081 = vadd.f32 %v2021, %v2080
    %v2082 = vtanh.pop %v2081
    %v2083 = vsub.f32 1.0, %v2020
    %v2084 = vmul.f32 %v2083, %v2082
    %v2085 = vmul.f32 %v2020, 0.0
    %v2086 = vadd.f32 %v2084, %v2085
    %v2087 = vpack.c.bf16 %v2086, %v2086
    %v2089 = vsel %vm249, %v2087, 0
    %2091 = vmatprep.subr.bf16.mxu0 0
    %2092 = vmatpush1.bf16.msra.mxu0 %v1909
    %2093 = vmatprep.subr.bf16.mxu0 0
    %2094 = vmatpush1.bf16.msra.mxu0 %v1910
    %2095 = vmatprep.subr.bf16.mxu0 0
    %2096 = vmatpush1.bf16.msra.mxu0 0
    %2097 = vmatprep.subr.bf16.mxu0 0
    %2098 = vmatpush1.bf16.msra.mxu0 0
    %2099 = vmatprep.subr.bf16.mxu0 0
    %2100 = vmatpush1.bf16.msra.mxu0 0
    %2101 = vmatprep.subr.bf16.mxu0 0
    %2102 = vmatpush1.bf16.msra.mxu0 0
    %2103 = vmatprep.subr.bf16.mxu0 0
    %2104 = vmatpush1.bf16.msra.mxu0 0
    %2105 = vmatprep.subr.bf16.mxu0 0
    %2106 = vmatpush1.bf16.msra.mxu0 0
    %2107 = vmatprep.subr.bf16.mxu0 0
    %2108 = vmatpush1.bf16.msra.mxu0 0
    %2109 = vmatprep.subr.bf16.mxu0 0
    %2110 = vmatpush1.bf16.msra.mxu0 0
    %2111 = vmatprep.subr.bf16.mxu0 0
    %2112 = vmatpush1.bf16.msra.mxu0 0
    %2113 = vmatprep.subr.bf16.mxu0 0
    %2114 = vmatpush1.bf16.msra.mxu0 0
    %2115 = vmatprep.subr.bf16.mxu0 0
    %2116 = vmatpush1.bf16.msra.mxu0 0
    %2117 = vmatprep.subr.bf16.mxu0 0
    %2118 = vmatpush1.bf16.msra.mxu0 0
    %2119 = vmatprep.subr.bf16.mxu0 0
    %2120 = vmatpush1.bf16.msra.mxu0 0
    %2121 = vmatprep.subr.bf16.mxu0 0
    %2122 = vmatpush1.bf16.msra.mxu0 0
    %2123 = vmatprep.mubr.bf16.mxu0 0
    %2124 = vmatmul.mubr.bf16.gmra.mrb[0].mxu0 %v2089
    %v2125 = vpop.f32.mrb[0].mxu0
    %v2126 = vadd.f32 0.0, %v2125
    %v2127 = vpop.f32.mrb[0].mxu0
    %v2128 = vpop.f32.mrb[0].mxu0
    %v2129 = vpop.f32.mrb[0].mxu0
    %2130 = vdwg.mxu0
    %2131 = vmatprep.subr.bf16.mxu0 0
    %2132 = vmatpush1.bf16.msra.mxu0 %v1961
    %2133 = vmatprep.subr.bf16.mxu0 0
    %2134 = vmatpush1.bf16.msra.mxu0 %v1962
    %2135 = vmatprep.subr.bf16.mxu0 0
    %2136 = vmatpush1.bf16.msra.mxu0 0
    %2137 = vmatprep.subr.bf16.mxu0 0
    %2138 = vmatpush1.bf16.msra.mxu0 0
    %2139 = vmatprep.subr.bf16.mxu0 0
    %2140 = vmatpush1.bf16.msra.mxu0 0
    %2141 = vmatprep.subr.bf16.mxu0 0
    %2142 = vmatpush1.bf16.msra.mxu0 0
    %2143 = vmatprep.subr.bf16.mxu0 0
    %2144 = vmatpush1.bf16.msra.mxu0 0
    %2145 = vmatprep.subr.bf16.mxu0 0
    %2146 = vmatpush1.bf16.msra.mxu0 0
    %2147 = vmatprep.subr.bf16.mxu0 0
    %2148 = vmatpush1.bf16.msra.mxu0 0
    %2149 = vmatprep.subr.bf16.mxu0 0
    %2150 = vmatpush1.bf16.msra.mxu0 0
    %2151 = vmatprep.subr.bf16.mxu0 0
    %2152 = vmatpush1.bf16.msra.mxu0 0
    %2153 = vmatprep.subr.bf16.mxu0 0
    %2154 = vmatpush1.bf16.msra.mxu0 0
    %2155 = vmatprep.subr.bf16.mxu0 0
    %2156 = vmatpush1.bf16.msra.mxu0 0
    %2157 = vmatprep.subr.bf16.mxu0 0
    %2158 = vmatpush1.bf16.msra.mxu0 0
    %2159 = vmatprep.subr.bf16.mxu0 0
    %2160 = vmatpush1.bf16.msra.mxu0 0
    %2161 = vmatprep.subr.bf16.mxu0 0
    %2162 = vmatpush1.bf16.msra.mxu0 0
    %2163 = vmatprep.mubr.bf16.mxu0 0
    %2164 = vmatmul.mubr.bf16.gmra.mrb[0].mxu0 %v2089
    %v2165 = vpop.f32.mrb[0].mxu0
    %v2166 = vadd.f32 0.0, %v2165
    %v2167 = vpop.f32.mrb[0].mxu0
    %v2168 = vpop.f32.mrb[0].mxu0
    %v2169 = vpop.f32.mrb[0].mxu0
    %2170 = vdwg.mxu0
    %v2171 = vld [vmem:[%s659] sm:$0xff]
    %v2172 = vadd.f32 %v2171, %v2126
    %v2173 = vxor.u32 %v2172, 2147483648
    %v2174 = vmul.f32 %v2173, 1.442695
    %v2175 = vpow.pop %v2174
    %v2176 = vadd.f32 %v2175, 1.0
    %v2177 = vrcp.pop %v2176
    %v2178 = vmul.f32 1.0, %v2177
    %v2179 = vld [vmem:[%s668] sm:$0xff]
    %v2180 = vadd.f32 %v2179, %v2166
    %v2181 = vxor.u32 %v2180, 2147483648
    %v2182 = vmul.f32 %v2181, 1.442695
    %v2183 = vpow.pop %v2182
    %v2184 = vadd.f32 %v2183, 1.0
    %v2185 = vrcp.pop %v2184
    %v2186 = vmul.f32 1.0, %v2185
    %v2187 = vld [vmem:[%s677] sm:$0xff]
    %2188 = vmatprep.subr.bf16.mxu0 0
    %2189 = vmatpush1.bf16.msra.mxu0 %v2036
    %2190 = vmatprep.subr.bf16.mxu0 0
    %2191 = vmatpush1.bf16.msra.mxu0 %v2037
    %2192 = vmatprep.subr.bf16.mxu0 0
    %2193 = vmatpush1.bf16.msra.mxu0 0
    %2194 = vmatprep.subr.bf16.mxu0 0
    %2195 = vmatpush1.bf16.msra.mxu0 0
    %2196 = vmatprep.subr.bf16.mxu0 0
    %2197 = vmatpush1.bf16.msra.mxu0 0
    %2198 = vmatprep.subr.bf16.mxu0 0
    %2199 = vmatpush1.bf16.msra.mxu0 0
    %2200 = vmatprep.subr.bf16.mxu0 0
    %2201 = vmatpush1.bf16.msra.mxu0 0
    %2202 = vmatprep.subr.bf16.mxu0 0
    %2203 = vmatpush1.bf16.msra.mxu0 0
    %2204 = vmatprep.subr.bf16.mxu0 0
    %2205 = vmatpush1.bf16.msra.mxu0 0
    %2206 = vmatprep.subr.bf16.mxu0 0
    %2207 = vmatpush1.bf16.msra.mxu0 0
    %2208 = vmatprep.subr.bf16.mxu0 0
    %2209 = vmatpush1.bf16.msra.mxu0 0
    %2210 = vmatprep.subr.bf16.mxu0 0
    %2211 = vmatpush1.bf16.msra.mxu0 0
    %2212 = vmatprep.subr.bf16.mxu0 0
    %2213 = vmatpush1.bf16.msra.mxu0 0
    %2214 = vmatprep.subr.bf16.mxu0 0
    %2215 = vmatpush1.bf16.msra.mxu0 0
    %2216 = vmatprep.subr.bf16.mxu0 0
    %2217 = vmatpush1.bf16.msra.mxu0 0
    %2218 = vmatprep.subr.bf16.mxu0 0
    %2219 = vmatpush1.bf16.msra.mxu0 0
    %2220 = vmatprep.mubr.bf16.mxu0 0
    %2221 = vmatmul.mubr.bf16.gmra.mrb[0].mxu0 %v2089
    %v2222 = vpop.f32.mrb[0].mxu0
    %v2223 = vadd.f32 %v2026, %v2222
    %v2224 = vpop.f32.mrb[0].mxu0
    %v2225 = vpop.f32.mrb[0].mxu0
    %v2226 = vpop.f32.mrb[0].mxu0
    %2227 = vdwg.mxu0
    %v2228 = vmul.f32 %v2178, %v2223
    %v2229 = vadd.f32 %v2187, %v2228
    %v2230 = vtanh.pop %v2229
    %v2231 = vsub.f32 1.0, %v2186
    %v2232 = vmul.f32 %v2231, %v2230
    %v2233 = vmul.f32 %v2186, %v2086
    %v2234 = vadd.f32 %v2232, %v2233
    %v2235 = vpack.c.bf16 %v2234, %v2234
    %v2237 = vsel %vm249, %v2235, 0
    %2239 = vmatprep.subr.bf16.mxu0 0
    %2240 = vmatpush1.bf16.msra.mxu0 %v1909
    %2241 = vmatprep.subr.bf16.mxu0 0
    %2242 = vmatpush1.bf16.msra.mxu0 %v1910
    %2243 = vmatprep.subr.bf16.mxu0 0
    %2244 = vmatpush1.bf16.msra.mxu0 0
    %2245 = vmatprep.subr.bf16.mxu0 0
    %2246 = vmatpush1.bf16.msra.mxu0 0
    %2247 = vmatprep.subr.bf16.mxu0 0
    %2248 = vmatpush1.bf16.msra.mxu0 0
    %2249 = vmatprep.subr.bf16.mxu0 0
    %2250 = vmatpush1.bf16.msra.mxu0 0
    %2251 = vmatprep.subr.bf16.mxu0 0
    %2252 = vmatpush1.bf16.msra.mxu0 0
    %2253 = vmatprep.subr.bf16.mxu0 0
    %2254 = vmatpush1.bf16.msra.mxu0 0
    %2255 = vmatprep.subr.bf16.mxu0 0
    %2256 = vmatpush1.bf16.msra.mxu0 0
    %2257 = vmatprep.subr.bf16.mxu0 0
    %2258 = vmatpush1.bf16.msra.mxu0 0
    %2259 = vmatprep.subr.bf16.mxu0 0
    %2260 = vmatpush1.bf16.msra.mxu0 0
    %2261 = vmatprep.subr.bf16.mxu0 0
    %2262 = vmatpush1.bf16.msra.mxu0 0
    %2263 = vmatprep.subr.bf16.mxu0 0
    %2264 = vmatpush1.bf16.msra.mxu0 0
    %2265 = vmatprep.subr.bf16.mxu0 0
    %2266 = vmatpush1.bf16.msra.mxu0 0
    %2267 = vmatprep.subr.bf16.mxu0 0
    %2268 = vmatpush1.bf16.msra.mxu0 0
    %2269 = vmatprep.subr.bf16.mxu0 0
    %2270 = vmatpush1.bf16.msra.mxu0 0
    %2271 = vmatprep.mubr.bf16.mxu0 0
    %2272 = vmatmul.mubr.bf16.gmra.mrb[0].mxu0 %v2237
    %v2273 = vpop.f32.mrb[0].mxu0
    %v2274 = vadd.f32 0.0, %v2273
    %v2275 = vpop.f32.mrb[0].mxu0
    %v2276 = vpop.f32.mrb[0].mxu0
    %v2277 = vpop.f32.mrb[0].mxu0
    %2278 = vdwg.mxu0
    %2279 = vmatprep.subr.bf16.mxu0 0
    %2280 = vmatpush1.bf16.msra.mxu0 %v1961
    %2281 = vmatprep.subr.bf16.mxu0 0
    %2282 = vmatpush1.bf16.msra.mxu0 %v1962
    %2283 = vmatprep.subr.bf16.mxu0 0
    %2284 = vmatpush1.bf16.msra.mxu0 0
    %2285 = vmatprep.subr.bf16.mxu0 0
    %2286 = vmatpush1.bf16.msra.mxu0 0
    %2287 = vmatprep.subr.bf16.mxu0 0
    %2288 = vmatpush1.bf16.msra.mxu0 0
    %2289 = vmatprep.subr.bf16.mxu0 0
    %2290 = vmatpush1.bf16.msra.mxu0 0
    %2291 = vmatprep.subr.bf16.mxu0 0
    %2292 = vmatpush1.bf16.msra.mxu0 0
    %2293 = vmatprep.subr.bf16.mxu0 0
    %2294 = vmatpush1.bf16.msra.mxu0 0
    %2295 = vmatprep.subr.bf16.mxu0 0
    %2296 = vmatpush1.bf16.msra.mxu0 0
    %2297 = vmatprep.subr.bf16.mxu0 0
    %2298 = vmatpush1.bf16.msra.mxu0 0
    %2299 = vmatprep.subr.bf16.mxu0 0
    %2300 = vmatpush1.bf16.msra.mxu0 0
    %2301 = vmatprep.subr.bf16.mxu0 0
    %2302 = vmatpush1.bf16.msra.mxu0 0
    %2303 = vmatprep.subr.bf16.mxu0 0
    %2304 = vmatpush1.bf16.msra.mxu0 0
    %2305 = vmatprep.subr.bf16.mxu0 0
    %2306 = vmatpush1.bf16.msra.mxu0 0
    %2307 = vmatprep.subr.bf16.mxu0 0
    %2308 = vmatpush1.bf16.msra.mxu0 0
    %2309 = vmatprep.subr.bf16.mxu0 0
    %2310 = vmatpush1.bf16.msra.mxu0 0
    %2311 = vmatprep.mubr.bf16.mxu0 0
    %2312 = vmatmul.mubr.bf16.gmra.mrb[0].mxu0 %v2237
    %v2313 = vpop.f32.mrb[0].mxu0
    %v2314 = vadd.f32 0.0, %v2313
    %v2315 = vpop.f32.mrb[0].mxu0
    %v2316 = vpop.f32.mrb[0].mxu0
    %v2317 = vpop.f32.mrb[0].mxu0
    %2318 = vdwg.mxu0
    %v2319 = vld [vmem:[%s812] sm:$0xff]
    %v2320 = vadd.f32 %v2319, %v2274
    %v2321 = vxor.u32 %v2320, 2147483648
    %v2322 = vmul.f32 %v2321, 1.442695
    %v2323 = vpow.pop %v2322
    %v2324 = vadd.f32 %v2323, 1.0
    %v2325 = vrcp.pop %v2324
    %v2326 = vmul.f32 1.0, %v2325
    %v2327 = vld [vmem:[%s821] sm:$0xff]
    %v2328 = vadd.f32 %v2327, %v2314
    %v2329 = vxor.u32 %v2328, 2147483648
    %v2330 = vmul.f32 %v2329, 1.442695
    %v2331 = vpow.pop %v2330
    %v2332 = vadd.f32 %v2331, 1.0
    %v2333 = vrcp.pop %v2332
    %v2334 = vmul.f32 1.0, %v2333
    %v2335 = vld [vmem:[%s830] sm:$0xff]
    %2336 = vmatprep.subr.bf16.mxu0 0
    %2337 = vmatpush1.bf16.msra.mxu0 %v2036
    %2338 = vmatprep.subr.bf16.mxu0 0
    %2339 = vmatpush1.bf16.msra.mxu0 %v2037
    %2340 = vmatprep.subr.bf16.mxu0 0
    %2341 = vmatpush1.bf16.msra.mxu0 0
    %2342 = vmatprep.subr.bf16.mxu0 0
    %2343 = vmatpush1.bf16.msra.mxu0 0
    %2344 = vmatprep.subr.bf16.mxu0 0
    %2345 = vmatpush1.bf16.msra.mxu0 0
    %2346 = vmatprep.subr.bf16.mxu0 0
    %2347 = vmatpush1.bf16.msra.mxu0 0
    %2348 = vmatprep.subr.bf16.mxu0 0
    %2349 = vmatpush1.bf16.msra.mxu0 0
    %2350 = vmatprep.subr.bf16.mxu0 0
    %2351 = vmatpush1.bf16.msra.mxu0 0
    %2352 = vmatprep.subr.bf16.mxu0 0
    %2353 = vmatpush1.bf16.msra.mxu0 0
    %2354 = vmatprep.subr.bf16.mxu0 0
    %2355 = vmatpush1.bf16.msra.mxu0 0
    %2356 = vmatprep.subr.bf16.mxu0 0
    %2357 = vmatpush1.bf16.msra.mxu0 0
    %2358 = vmatprep.subr.bf16.mxu0 0
    %2359 = vmatpush1.bf16.msra.mxu0 0
    %2360 = vmatprep.subr.bf16.mxu0 0
    %2361 = vmatpush1.bf16.msra.mxu0 0
    %2362 = vmatprep.subr.bf16.mxu0 0
    %2363 = vmatpush1.bf16.msra.mxu0 0
    %2364 = vmatprep.subr.bf16.mxu0 0
    %2365 = vmatpush1.bf16.msra.mxu0 0
    %2366 = vmatprep.subr.bf16.mxu0 0
    %2367 = vmatpush1.bf16.msra.mxu0 0
    %2368 = vmatprep.mubr.bf16.mxu0 0
    %2369 = vmatmul.mubr.bf16.gmra.mrb[0].mxu0 %v2237
    %v2370 = vpop.f32.mrb[0].mxu0
    %v2371 = vadd.f32 %v2026, %v2370
    %v2372 = vpop.f32.mrb[0].mxu0
    %v2373 = vpop.f32.mrb[0].mxu0
    %v2374 = vpop.f32.mrb[0].mxu0
    %2375 = vdwg.mxu0
    %v2376 = vmul.f32 %v2326, %v2371
    %v2377 = vadd.f32 %v2335, %v2376
    %v2378 = vtanh.pop %v2377
    %v2379 = vsub.f32 1.0, %v2334
    %v2380 = vmul.f32 %v2379, %v2378
    %v2381 = vmul.f32 %v2334, %v2234
    %v2382 = vadd.f32 %v2380, %v2381
    %v2383 = vpack.c.bf16 %v2382, %v2382
    %v2385 = vsel %vm249, %v2383, 0
    %2387 = vmatprep.subr.bf16.mxu0 0
    %2388 = vmatpush1.bf16.msra.mxu0 %v1909
    %2389 = vmatprep.subr.bf16.mxu0 0
    %2390 = vmatpush1.bf16.msra.mxu0 %v1910
    %2391 = vmatprep.subr.bf16.mxu0 0
    %2392 = vmatpush1.bf16.msra.mxu0 0
    %2393 = vmatprep.subr.bf16.mxu0 0
    %2394 = vmatpush1.bf16.msra.mxu0 0
    %2395 = vmatprep.subr.bf16.mxu0 0
    %2396 = vmatpush1.bf16.msra.mxu0 0
    %2397 = vmatprep.subr.bf16.mxu0 0
    %2398 = vmatpush1.bf16.msra.mxu0 0
    %2399 = vmatprep.subr.bf16.mxu0 0
    %2400 = vmatpush1.bf16.msra.mxu0 0
    %2401 = vmatprep.subr.bf16.mxu0 0
    %2402 = vmatpush1.bf16.msra.mxu0 0
    %2403 = vmatprep.subr.bf16.mxu0 0
    %2404 = vmatpush1.bf16.msra.mxu0 0
    %2405 = vmatprep.subr.bf16.mxu0 0
    %2406 = vmatpush1.bf16.msra.mxu0 0
    %2407 = vmatprep.subr.bf16.mxu0 0
    %2408 = vmatpush1.bf16.msra.mxu0 0
    %2409 = vmatprep.subr.bf16.mxu0 0
    %2410 = vmatpush1.bf16.msra.mxu0 0
    %2411 = vmatprep.subr.bf16.mxu0 0
    %2412 = vmatpush1.bf16.msra.mxu0 0
    %2413 = vmatprep.subr.bf16.mxu0 0
    %2414 = vmatpush1.bf16.msra.mxu0 0
    %2415 = vmatprep.subr.bf16.mxu0 0
    %2416 = vmatpush1.bf16.msra.mxu0 0
    %2417 = vmatprep.subr.bf16.mxu0 0
    %2418 = vmatpush1.bf16.msra.mxu0 0
    %2419 = vmatprep.mubr.bf16.mxu0 0
    %2420 = vmatmul.mubr.bf16.gmra.mrb[0].mxu0 %v2385
    %v2421 = vpop.f32.mrb[0].mxu0
    %v2422 = vadd.f32 0.0, %v2421
    %v2423 = vpop.f32.mrb[0].mxu0
    %v2424 = vpop.f32.mrb[0].mxu0
    %v2425 = vpop.f32.mrb[0].mxu0
    %2426 = vdwg.mxu0
    %2427 = vmatprep.subr.bf16.mxu0 0
    %2428 = vmatpush1.bf16.msra.mxu0 %v1961
    %2429 = vmatprep.subr.bf16.mxu0 0
    %2430 = vmatpush1.bf16.msra.mxu0 %v1962
    %2431 = vmatprep.subr.bf16.mxu0 0
    %2432 = vmatpush1.bf16.msra.mxu0 0
    %2433 = vmatprep.subr.bf16.mxu0 0
    %2434 = vmatpush1.bf16.msra.mxu0 0
    %2435 = vmatprep.subr.bf16.mxu0 0
    %2436 = vmatpush1.bf16.msra.mxu0 0
    %2437 = vmatprep.subr.bf16.mxu0 0
    %2438 = vmatpush1.bf16.msra.mxu0 0
    %2439 = vmatprep.subr.bf16.mxu0 0
    %2440 = vmatpush1.bf16.msra.mxu0 0
    %2441 = vmatprep.subr.bf16.mxu0 0
    %2442 = vmatpush1.bf16.msra.mxu0 0
    %2443 = vmatprep.subr.bf16.mxu0 0
    %2444 = vmatpush1.bf16.msra.mxu0 0
    %2445 = vmatprep.subr.bf16.mxu0 0
    %2446 = vmatpush1.bf16.msra.mxu0 0
    %2447 = vmatprep.subr.bf16.mxu0 0
    %2448 = vmatpush1.bf16.msra.mxu0 0
    %2449 = vmatprep.subr.bf16.mxu0 0
    %2450 = vmatpush1.bf16.msra.mxu0 0
    %2451 = vmatprep.subr.bf16.mxu0 0
    %2452 = vmatpush1.bf16.msra.mxu0 0
    %2453 = vmatprep.subr.bf16.mxu0 0
    %2454 = vmatpush1.bf16.msra.mxu0 0
    %2455 = vmatprep.subr.bf16.mxu0 0
    %2456 = vmatpush1.bf16.msra.mxu0 0
    %2457 = vmatprep.subr.bf16.mxu0 0
    %2458 = vmatpush1.bf16.msra.mxu0 0
    %2459 = vmatprep.mubr.bf16.mxu0 0
    %2460 = vmatmul.mubr.bf16.gmra.mrb[0].mxu0 %v2385
    %v2461 = vpop.f32.mrb[0].mxu0
    %v2462 = vadd.f32 0.0, %v2461
    %v2463 = vpop.f32.mrb[0].mxu0
    %v2464 = vpop.f32.mrb[0].mxu0
    %v2465 = vpop.f32.mrb[0].mxu0
    %2466 = vdwg.mxu0
    %v2467 = vld [vmem:[%s965] sm:$0xff]
    %v2468 = vadd.f32 %v2467, %v2422
    %v2469 = vxor.u32 %v2468, 2147483648
    %v2470 = vmul.f32 %v2469, 1.442695
    %v2471 = vpow.pop %v2470
    %v2472 = vadd.f32 %v2471, 1.0
    %v2473 = vrcp.pop %v2472
    %v2474 = vmul.f32 1.0, %v2473
    %v2475 = vld [vmem:[%s974] sm:$0xff]
    %v2476 = vadd.f32 %v2475, %v2462
    %v2477 = vxor.u32 %v2476, 2147483648
    %v2478 = vmul.f32 %v2477, 1.442695
    %v2479 = vpow.pop %v2478
    %v2480 = vadd.f32 %v2479, 1.0
    %v2481 = vrcp.pop %v2480
    %v2482 = vmul.f32 1.0, %v2481
    %v2483 = vld [vmem:[%s983] sm:$0xff]
    %2484 = vmatprep.subr.bf16.mxu0 0
    %2485 = vmatpush1.bf16.msra.mxu0 %v2036
    %2486 = vmatprep.subr.bf16.mxu0 0
    %2487 = vmatpush1.bf16.msra.mxu0 %v2037
    %2488 = vmatprep.subr.bf16.mxu0 0
    %2489 = vmatpush1.bf16.msra.mxu0 0
    %2490 = vmatprep.subr.bf16.mxu0 0
    %2491 = vmatpush1.bf16.msra.mxu0 0
    %2492 = vmatprep.subr.bf16.mxu0 0
    %2493 = vmatpush1.bf16.msra.mxu0 0
    %2494 = vmatprep.subr.bf16.mxu0 0
    %2495 = vmatpush1.bf16.msra.mxu0 0
    %2496 = vmatprep.subr.bf16.mxu0 0
    %2497 = vmatpush1.bf16.msra.mxu0 0
    %2498 = vmatprep.subr.bf16.mxu0 0
    %2499 = vmatpush1.bf16.msra.mxu0 0
    %2500 = vmatprep.subr.bf16.mxu0 0
    %2501 = vmatpush1.bf16.msra.mxu0 0
    %2502 = vmatprep.subr.bf16.mxu0 0
    %2503 = vmatpush1.bf16.msra.mxu0 0
    %2504 = vmatprep.subr.bf16.mxu0 0
    %2505 = vmatpush1.bf16.msra.mxu0 0
    %2506 = vmatprep.subr.bf16.mxu0 0
    %2507 = vmatpush1.bf16.msra.mxu0 0
    %2508 = vmatprep.subr.bf16.mxu0 0
    %2509 = vmatpush1.bf16.msra.mxu0 0
    %2510 = vmatprep.subr.bf16.mxu0 0
    %2511 = vmatpush1.bf16.msra.mxu0 0
    %2512 = vmatprep.subr.bf16.mxu0 0
    %2513 = vmatpush1.bf16.msra.mxu0 0
    %2514 = vmatprep.subr.bf16.mxu0 0
    %2515 = vmatpush1.bf16.msra.mxu0 0
    %2516 = vmatprep.mubr.bf16.mxu0 0
    %2517 = vmatmul.mubr.bf16.gmra.mrb[0].mxu0 %v2385
    %v2518 = vpop.f32.mrb[0].mxu0
    %v2519 = vadd.f32 %v2026, %v2518
    %v2520 = vpop.f32.mrb[0].mxu0
    %v2521 = vpop.f32.mrb[0].mxu0
    %v2522 = vpop.f32.mrb[0].mxu0
    %2523 = vdwg.mxu0
    %v2524 = vmul.f32 %v2474, %v2519
    %v2525 = vadd.f32 %v2483, %v2524
    %v2526 = vtanh.pop %v2525
    %v2527 = vsub.f32 1.0, %v2482
    %v2528 = vmul.f32 %v2527, %v2526
    %v2529 = vmul.f32 %v2482, %v2382
    %v2530 = vadd.f32 %v2528, %v2529
    %v2531 = vpack.c.bf16 %v2530, %v2530
    %v2533 = vsel %vm249, %v2531, 0
    %2535 = vmatprep.subr.bf16.mxu0 0
    %2536 = vmatpush1.bf16.msra.mxu0 %v1909
    %2537 = vmatprep.subr.bf16.mxu0 0
    %2538 = vmatpush1.bf16.msra.mxu0 %v1910
    %2539 = vmatprep.subr.bf16.mxu0 0
    %2540 = vmatpush1.bf16.msra.mxu0 0
    %2541 = vmatprep.subr.bf16.mxu0 0
    %2542 = vmatpush1.bf16.msra.mxu0 0
    %2543 = vmatprep.subr.bf16.mxu0 0
    %2544 = vmatpush1.bf16.msra.mxu0 0
    %2545 = vmatprep.subr.bf16.mxu0 0
    %2546 = vmatpush1.bf16.msra.mxu0 0
    %2547 = vmatprep.subr.bf16.mxu0 0
    %2548 = vmatpush1.bf16.msra.mxu0 0
    %2549 = vmatprep.subr.bf16.mxu0 0
    %2550 = vmatpush1.bf16.msra.mxu0 0
    %2551 = vmatprep.subr.bf16.mxu0 0
    %2552 = vmatpush1.bf16.msra.mxu0 0
    %2553 = vmatprep.subr.bf16.mxu0 0
    %2554 = vmatpush1.bf16.msra.mxu0 0
    %2555 = vmatprep.subr.bf16.mxu0 0
    %2556 = vmatpush1.bf16.msra.mxu0 0
    %2557 = vmatprep.subr.bf16.mxu0 0
    %2558 = vmatpush1.bf16.msra.mxu0 0
    %2559 = vmatprep.subr.bf16.mxu0 0
    %2560 = vmatpush1.bf16.msra.mxu0 0
    %2561 = vmatprep.subr.bf16.mxu0 0
    %2562 = vmatpush1.bf16.msra.mxu0 0
    %2563 = vmatprep.subr.bf16.mxu0 0
    %2564 = vmatpush1.bf16.msra.mxu0 0
    %2565 = vmatprep.subr.bf16.mxu0 0
    %2566 = vmatpush1.bf16.msra.mxu0 0
    %2567 = vmatprep.mubr.bf16.mxu0 0
    %2568 = vmatmul.mubr.bf16.gmra.mrb[0].mxu0 %v2533
    %v2569 = vpop.f32.mrb[0].mxu0
    %v2570 = vadd.f32 0.0, %v2569
    %v2571 = vpop.f32.mrb[0].mxu0
    %v2572 = vpop.f32.mrb[0].mxu0
    %v2573 = vpop.f32.mrb[0].mxu0
    %2574 = vdwg.mxu0
    %2575 = vmatprep.subr.bf16.mxu0 0
    %2576 = vmatpush1.bf16.msra.mxu0 %v1961
    %2577 = vmatprep.subr.bf16.mxu0 0
    %2578 = vmatpush1.bf16.msra.mxu0 %v1962
    %2579 = vmatprep.subr.bf16.mxu0 0
    %2580 = vmatpush1.bf16.msra.mxu0 0
    %2581 = vmatprep.subr.bf16.mxu0 0
    %2582 = vmatpush1.bf16.msra.mxu0 0
    %2583 = vmatprep.subr.bf16.mxu0 0
    %2584 = vmatpush1.bf16.msra.mxu0 0
    %2585 = vmatprep.subr.bf16.mxu0 0
    %2586 = vmatpush1.bf16.msra.mxu0 0
    %2587 = vmatprep.subr.bf16.mxu0 0
    %2588 = vmatpush1.bf16.msra.mxu0 0
    %2589 = vmatprep.subr.bf16.mxu0 0
    %2590 = vmatpush1.bf16.msra.mxu0 0
    %2591 = vmatprep.subr.bf16.mxu0 0
    %2592 = vmatpush1.bf16.msra.mxu0 0
    %2593 = vmatprep.subr.bf16.mxu0 0
    %2594 = vmatpush1.bf16.msra.mxu0 0
    %2595 = vmatprep.subr.bf16.mxu0 0
    %2596 = vmatpush1.bf16.msra.mxu0 0
    %2597 = vmatprep.subr.bf16.mxu0 0
    %2598 = vmatpush1.bf16.msra.mxu0 0
    %2599 = vmatprep.subr.bf16.mxu0 0
    %2600 = vmatpush1.bf16.msra.mxu0 0
    %2601 = vmatprep.subr.bf16.mxu0 0
    %2602 = vmatpush1.bf16.msra.mxu0 0
    %2603 = vmatprep.subr.bf16.mxu0 0
    %2604 = vmatpush1.bf16.msra.mxu0 0
    %2605 = vmatprep.subr.bf16.mxu0 0
    %2606 = vmatpush1.bf16.msra.mxu0 0
    %2607 = vmatprep.mubr.bf16.mxu0 0
    %2608 = vmatmul.mubr.bf16.gmra.mrb[0].mxu0 %v2533
    %v2609 = vpop.f32.mrb[0].mxu0
    %v2610 = vadd.f32 0.0, %v2609
    %v2611 = vpop.f32.mrb[0].mxu0
    %v2612 = vpop.f32.mrb[0].mxu0
    %v2613 = vpop.f32.mrb[0].mxu0
    %2614 = vdwg.mxu0
    %v2615 = vld [vmem:[%s1118] sm:$0xff]
    %v2616 = vadd.f32 %v2615, %v2570
    %v2617 = vxor.u32 %v2616, 2147483648
    %v2618 = vmul.f32 %v2617, 1.442695
    %v2619 = vpow.pop %v2618
    %v2620 = vadd.f32 %v2619, 1.0
    %v2621 = vrcp.pop %v2620
    %v2622 = vmul.f32 1.0, %v2621
    %v2623 = vld [vmem:[%s1127] sm:$0xff]
    %v2624 = vadd.f32 %v2623, %v2610
    %v2625 = vxor.u32 %v2624, 2147483648
    %v2626 = vmul.f32 %v2625, 1.442695
    %v2627 = vpow.pop %v2626
    %v2628 = vadd.f32 %v2627, 1.0
    %v2629 = vrcp.pop %v2628
    %v2630 = vmul.f32 1.0, %v2629
    %v2631 = vld [vmem:[%s1136] sm:$0xff]
    %2632 = vmatprep.subr.bf16.mxu0 0
    %2633 = vmatpush1.bf16.msra.mxu0 %v2036
    %2634 = vmatprep.subr.bf16.mxu0 0
    %2635 = vmatpush1.bf16.msra.mxu0 %v2037
    %2636 = vmatprep.subr.bf16.mxu0 0
    %2637 = vmatpush1.bf16.msra.mxu0 0
    %2638 = vmatprep.subr.bf16.mxu0 0
    %2639 = vmatpush1.bf16.msra.mxu0 0
    %2640 = vmatprep.subr.bf16.mxu0 0
    %2641 = vmatpush1.bf16.msra.mxu0 0
    %2642 = vmatprep.subr.bf16.mxu0 0
    %2643 = vmatpush1.bf16.msra.mxu0 0
    %2644 = vmatprep.subr.bf16.mxu0 0
    %2645 = vmatpush1.bf16.msra.mxu0 0
    %2646 = vmatprep.subr.bf16.mxu0 0
    %2647 = vmatpush1.bf16.msra.mxu0 0
    %2648 = vmatprep.subr.bf16.mxu0 0
    %2649 = vmatpush1.bf16.msra.mxu0 0
    %2650 = vmatprep.subr.bf16.mxu0 0
    %2651 = vmatpush1.bf16.msra.mxu0 0
    %2652 = vmatprep.subr.bf16.mxu0 0
    %2653 = vmatpush1.bf16.msra.mxu0 0
    %2654 = vmatprep.subr.bf16.mxu0 0
    %2655 = vmatpush1.bf16.msra.mxu0 0
    %2656 = vmatprep.subr.bf16.mxu0 0
    %2657 = vmatpush1.bf16.msra.mxu0 0
    %2658 = vmatprep.subr.bf16.mxu0 0
    %2659 = vmatpush1.bf16.msra.mxu0 0
    %2660 = vmatprep.subr.bf16.mxu0 0
    %2661 = vmatpush1.bf16.msra.mxu0 0
    %2662 = vmatprep.subr.bf16.mxu0 0
    %2663 = vmatpush1.bf16.msra.mxu0 0
    %2664 = vmatprep.mubr.bf16.mxu0 0
    %2665 = vmatmul.mubr.bf16.gmra.mrb[0].mxu0 %v2533
    %v2666 = vpop.f32.mrb[0].mxu0
    %v2667 = vadd.f32 %v2026, %v2666
    %v2668 = vpop.f32.mrb[0].mxu0
    %v2669 = vpop.f32.mrb[0].mxu0
    %v2670 = vpop.f32.mrb[0].mxu0
    %2671 = vdwg.mxu0
    %v2672 = vmul.f32 %v2622, %v2667
    %v2673 = vadd.f32 %v2631, %v2672
    %v2674 = vtanh.pop %v2673
    %v2675 = vsub.f32 1.0, %v2630
    %v2676 = vmul.f32 %v2675, %v2674
    %v2677 = vmul.f32 %v2630, %v2530
    %v2678 = vadd.f32 %v2676, %v2677
    %v2679 = vpack.c.bf16 %v2678, %v2678
    %v2681 = vsel %vm249, %v2679, 0
    %2683 = vmatprep.subr.bf16.mxu0 0
    %2684 = vmatpush1.bf16.msra.mxu0 %v1909
    %2685 = vmatprep.subr.bf16.mxu0 0
    %2686 = vmatpush1.bf16.msra.mxu0 %v1910
    %2687 = vmatprep.subr.bf16.mxu0 0
    %2688 = vmatpush1.bf16.msra.mxu0 0
    %2689 = vmatprep.subr.bf16.mxu0 0
    %2690 = vmatpush1.bf16.msra.mxu0 0
    %2691 = vmatprep.subr.bf16.mxu0 0
    %2692 = vmatpush1.bf16.msra.mxu0 0
    %2693 = vmatprep.subr.bf16.mxu0 0
    %2694 = vmatpush1.bf16.msra.mxu0 0
    %2695 = vmatprep.subr.bf16.mxu0 0
    %2696 = vmatpush1.bf16.msra.mxu0 0
    %2697 = vmatprep.subr.bf16.mxu0 0
    %2698 = vmatpush1.bf16.msra.mxu0 0
    %2699 = vmatprep.subr.bf16.mxu0 0
    %2700 = vmatpush1.bf16.msra.mxu0 0
    %2701 = vmatprep.subr.bf16.mxu0 0
    %2702 = vmatpush1.bf16.msra.mxu0 0
    %2703 = vmatprep.subr.bf16.mxu0 0
    %2704 = vmatpush1.bf16.msra.mxu0 0
    %2705 = vmatprep.subr.bf16.mxu0 0
    %2706 = vmatpush1.bf16.msra.mxu0 0
    %2707 = vmatprep.subr.bf16.mxu0 0
    %2708 = vmatpush1.bf16.msra.mxu0 0
    %2709 = vmatprep.subr.bf16.mxu0 0
    %2710 = vmatpush1.bf16.msra.mxu0 0
    %2711 = vmatprep.subr.bf16.mxu0 0
    %2712 = vmatpush1.bf16.msra.mxu0 0
    %2713 = vmatprep.subr.bf16.mxu0 0
    %2714 = vmatpush1.bf16.msra.mxu0 0
    %2715 = vmatprep.mubr.bf16.mxu0 0
    %2716 = vmatmul.mubr.bf16.gmra.mrb[0].mxu0 %v2681
    %v2717 = vpop.f32.mrb[0].mxu0
    %v2718 = vadd.f32 0.0, %v2717
    %v2719 = vpop.f32.mrb[0].mxu0
    %v2720 = vpop.f32.mrb[0].mxu0
    %v2721 = vpop.f32.mrb[0].mxu0
    %2722 = vdwg.mxu0
    %2723 = vmatprep.subr.bf16.mxu0 0
    %2724 = vmatpush1.bf16.msra.mxu0 %v1961
    %2725 = vmatprep.subr.bf16.mxu0 0
    %2726 = vmatpush1.bf16.msra.mxu0 %v1962
    %2727 = vmatprep.subr.bf16.mxu0 0
    %2728 = vmatpush1.bf16.msra.mxu0 0
    %2729 = vmatprep.subr.bf16.mxu0 0
    %2730 = vmatpush1.bf16.msra.mxu0 0
    %2731 = vmatprep.subr.bf16.mxu0 0
    %2732 = vmatpush1.bf16.msra.mxu0 0
    %2733 = vmatprep.subr.bf16.mxu0 0
    %2734 = vmatpush1.bf16.msra.mxu0 0
    %2735 = vmatprep.subr.bf16.mxu0 0
    %2736 = vmatpush1.bf16.msra.mxu0 0
    %2737 = vmatprep.subr.bf16.mxu0 0
    %2738 = vmatpush1.bf16.msra.mxu0 0
    %2739 = vmatprep.subr.bf16.mxu0 0
    %2740 = vmatpush1.bf16.msra.mxu0 0
    %2741 = vmatprep.subr.bf16.mxu0 0
    %2742 = vmatpush1.bf16.msra.mxu0 0
    %2743 = vmatprep.subr.bf16.mxu0 0
    %2744 = vmatpush1.bf16.msra.mxu0 0
    %2745 = vmatprep.subr.bf16.mxu0 0
    %2746 = vmatpush1.bf16.msra.mxu0 0
    %2747 = vmatprep.subr.bf16.mxu0 0
    %2748 = vmatpush1.bf16.msra.mxu0 0
    %2749 = vmatprep.subr.bf16.mxu0 0
    %2750 = vmatpush1.bf16.msra.mxu0 0
    %2751 = vmatprep.subr.bf16.mxu0 0
    %2752 = vmatpush1.bf16.msra.mxu0 0
    %2753 = vmatprep.subr.bf16.mxu0 0
    %2754 = vmatpush1.bf16.msra.mxu0 0
    %2755 = vmatprep.mubr.bf16.mxu0 0
    %2756 = vmatmul.mubr.bf16.gmra.mrb[0].mxu0 %v2681
    %v2757 = vpop.f32.mrb[0].mxu0
    %v2758 = vadd.f32 0.0, %v2757
    %v2759 = vpop.f32.mrb[0].mxu0
    %v2760 = vpop.f32.mrb[0].mxu0
    %v2761 = vpop.f32.mrb[0].mxu0
    %2762 = vdwg.mxu0
    %v2763 = vld [vmem:[%s1271] sm:$0xff]
    %v2764 = vadd.f32 %v2763, %v2718
    %v2765 = vxor.u32 %v2764, 2147483648
    %v2766 = vmul.f32 %v2765, 1.442695
    %v2767 = vpow.pop %v2766
    %v2768 = vadd.f32 %v2767, 1.0
    %v2769 = vrcp.pop %v2768
    %v2770 = vmul.f32 1.0, %v2769
    %v2771 = vld [vmem:[%s1280] sm:$0xff]
    %v2772 = vadd.f32 %v2771, %v2758
    %v2773 = vxor.u32 %v2772, 2147483648
    %v2774 = vmul.f32 %v2773, 1.442695
    %v2775 = vpow.pop %v2774
    %v2776 = vadd.f32 %v2775, 1.0
    %v2777 = vrcp.pop %v2776
    %v2778 = vmul.f32 1.0, %v2777
    %v2779 = vld [vmem:[%s1289] sm:$0xff]
    %2780 = vmatprep.subr.bf16.mxu0 0
    %2781 = vmatpush1.bf16.msra.mxu0 %v2036
    %2782 = vmatprep.subr.bf16.mxu0 0
    %2783 = vmatpush1.bf16.msra.mxu0 %v2037
    %2784 = vmatprep.subr.bf16.mxu0 0
    %2785 = vmatpush1.bf16.msra.mxu0 0
    %2786 = vmatprep.subr.bf16.mxu0 0
    %2787 = vmatpush1.bf16.msra.mxu0 0
    %2788 = vmatprep.subr.bf16.mxu0 0
    %2789 = vmatpush1.bf16.msra.mxu0 0
    %2790 = vmatprep.subr.bf16.mxu0 0
    %2791 = vmatpush1.bf16.msra.mxu0 0
    %2792 = vmatprep.subr.bf16.mxu0 0
    %2793 = vmatpush1.bf16.msra.mxu0 0
    %2794 = vmatprep.subr.bf16.mxu0 0
    %2795 = vmatpush1.bf16.msra.mxu0 0
    %2796 = vmatprep.subr.bf16.mxu0 0
    %2797 = vmatpush1.bf16.msra.mxu0 0
    %2798 = vmatprep.subr.bf16.mxu0 0
    %2799 = vmatpush1.bf16.msra.mxu0 0
    %2800 = vmatprep.subr.bf16.mxu0 0
    %2801 = vmatpush1.bf16.msra.mxu0 0
    %2802 = vmatprep.subr.bf16.mxu0 0
    %2803 = vmatpush1.bf16.msra.mxu0 0
    %2804 = vmatprep.subr.bf16.mxu0 0
    %2805 = vmatpush1.bf16.msra.mxu0 0
    %2806 = vmatprep.subr.bf16.mxu0 0
    %2807 = vmatpush1.bf16.msra.mxu0 0
    %2808 = vmatprep.subr.bf16.mxu0 0
    %2809 = vmatpush1.bf16.msra.mxu0 0
    %2810 = vmatprep.subr.bf16.mxu0 0
    %2811 = vmatpush1.bf16.msra.mxu0 0
    %2812 = vmatprep.mubr.bf16.mxu0 0
    %2813 = vmatmul.mubr.bf16.gmra.mrb[0].mxu0 %v2681
    %v2814 = vpop.f32.mrb[0].mxu0
    %v2815 = vadd.f32 %v2026, %v2814
    %v2816 = vpop.f32.mrb[0].mxu0
    %v2817 = vpop.f32.mrb[0].mxu0
    %v2818 = vpop.f32.mrb[0].mxu0
    %2819 = vdwg.mxu0
    %v2820 = vmul.f32 %v2770, %v2815
    %v2821 = vadd.f32 %v2779, %v2820
    %v2822 = vtanh.pop %v2821
    %v2823 = vsub.f32 1.0, %v2778
    %v2824 = vmul.f32 %v2823, %v2822
    %v2825 = vmul.f32 %v2778, %v2678
    %v2826 = vadd.f32 %v2824, %v2825
    %v2827 = vpack.c.bf16 %v2826, %v2826
    %v2829 = vsel %vm249, %v2827, 0
    %2831 = vmatprep.subr.bf16.mxu0 0
    %2832 = vmatpush1.bf16.msra.mxu0 %v1909
    %2833 = vmatprep.subr.bf16.mxu0 0
    %2834 = vmatpush1.bf16.msra.mxu0 %v1910
    %2835 = vmatprep.subr.bf16.mxu0 0
    %2836 = vmatpush1.bf16.msra.mxu0 0
    %2837 = vmatprep.subr.bf16.mxu0 0
    %2838 = vmatpush1.bf16.msra.mxu0 0
    %2839 = vmatprep.subr.bf16.mxu0 0
    %2840 = vmatpush1.bf16.msra.mxu0 0
    %2841 = vmatprep.subr.bf16.mxu0 0
    %2842 = vmatpush1.bf16.msra.mxu0 0
    %2843 = vmatprep.subr.bf16.mxu0 0
    %2844 = vmatpush1.bf16.msra.mxu0 0
    %2845 = vmatprep.subr.bf16.mxu0 0
    %2846 = vmatpush1.bf16.msra.mxu0 0
    %2847 = vmatprep.subr.bf16.mxu0 0
    %2848 = vmatpush1.bf16.msra.mxu0 0
    %2849 = vmatprep.subr.bf16.mxu0 0
    %2850 = vmatpush1.bf16.msra.mxu0 0
    %2851 = vmatprep.subr.bf16.mxu0 0
    %2852 = vmatpush1.bf16.msra.mxu0 0
    %2853 = vmatprep.subr.bf16.mxu0 0
    %2854 = vmatpush1.bf16.msra.mxu0 0
    %2855 = vmatprep.subr.bf16.mxu0 0
    %2856 = vmatpush1.bf16.msra.mxu0 0
    %2857 = vmatprep.subr.bf16.mxu0 0
    %2858 = vmatpush1.bf16.msra.mxu0 0
    %2859 = vmatprep.subr.bf16.mxu0 0
    %2860 = vmatpush1.bf16.msra.mxu0 0
    %2861 = vmatprep.subr.bf16.mxu0 0
    %2862 = vmatpush1.bf16.msra.mxu0 0
    %2863 = vmatprep.mubr.bf16.mxu0 0
    %2864 = vmatmul.mubr.bf16.gmra.mrb[0].mxu0 %v2829
    %v2865 = vpop.f32.mrb[0].mxu0
    %v2866 = vadd.f32 0.0, %v2865
    %v2867 = vpop.f32.mrb[0].mxu0
    %v2868 = vpop.f32.mrb[0].mxu0
    %v2869 = vpop.f32.mrb[0].mxu0
    %2870 = vdwg.mxu0
    %2871 = vmatprep.subr.bf16.mxu0 0
    %2872 = vmatpush1.bf16.msra.mxu0 %v1961
    %2873 = vmatprep.subr.bf16.mxu0 0
    %2874 = vmatpush1.bf16.msra.mxu0 %v1962
    %2875 = vmatprep.subr.bf16.mxu0 0
    %2876 = vmatpush1.bf16.msra.mxu0 0
    %2877 = vmatprep.subr.bf16.mxu0 0
    %2878 = vmatpush1.bf16.msra.mxu0 0
    %2879 = vmatprep.subr.bf16.mxu0 0
    %2880 = vmatpush1.bf16.msra.mxu0 0
    %2881 = vmatprep.subr.bf16.mxu0 0
    %2882 = vmatpush1.bf16.msra.mxu0 0
    %2883 = vmatprep.subr.bf16.mxu0 0
    %2884 = vmatpush1.bf16.msra.mxu0 0
    %2885 = vmatprep.subr.bf16.mxu0 0
    %2886 = vmatpush1.bf16.msra.mxu0 0
    %2887 = vmatprep.subr.bf16.mxu0 0
    %2888 = vmatpush1.bf16.msra.mxu0 0
    %2889 = vmatprep.subr.bf16.mxu0 0
    %2890 = vmatpush1.bf16.msra.mxu0 0
    %2891 = vmatprep.subr.bf16.mxu0 0
    %2892 = vmatpush1.bf16.msra.mxu0 0
    %2893 = vmatprep.subr.bf16.mxu0 0
    %2894 = vmatpush1.bf16.msra.mxu0 0
    %2895 = vmatprep.subr.bf16.mxu0 0
    %2896 = vmatpush1.bf16.msra.mxu0 0
    %2897 = vmatprep.subr.bf16.mxu0 0
    %2898 = vmatpush1.bf16.msra.mxu0 0
    %2899 = vmatprep.subr.bf16.mxu0 0
    %2900 = vmatpush1.bf16.msra.mxu0 0
    %2901 = vmatprep.subr.bf16.mxu0 0
    %2902 = vmatpush1.bf16.msra.mxu0 0
    %2903 = vmatprep.mubr.bf16.mxu0 0
    %2904 = vmatmul.mubr.bf16.gmra.mrb[0].mxu0 %v2829
    %v2905 = vpop.f32.mrb[0].mxu0
    %v2906 = vadd.f32 0.0, %v2905
    %v2907 = vpop.f32.mrb[0].mxu0
    %v2908 = vpop.f32.mrb[0].mxu0
    %v2909 = vpop.f32.mrb[0].mxu0
    %2910 = vdwg.mxu0
    %v2911 = vld [vmem:[%s1424] sm:$0xff]
    %v2912 = vadd.f32 %v2911, %v2866
    %v2913 = vxor.u32 %v2912, 2147483648
    %v2914 = vmul.f32 %v2913, 1.442695
    %v2915 = vpow.pop %v2914
    %v2916 = vadd.f32 %v2915, 1.0
    %v2917 = vrcp.pop %v2916
    %v2918 = vmul.f32 1.0, %v2917
    %v2919 = vld [vmem:[%s1433] sm:$0xff]
    %v2920 = vadd.f32 %v2919, %v2906
    %v2921 = vxor.u32 %v2920, 2147483648
    %v2922 = vmul.f32 %v2921, 1.442695
    %v2923 = vpow.pop %v2922
    %v2924 = vadd.f32 %v2923, 1.0
    %v2925 = vrcp.pop %v2924
    %v2926 = vmul.f32 1.0, %v2925
    %v2927 = vld [vmem:[%s1442] sm:$0xff]
    %2928 = vmatprep.subr.bf16.mxu0 0
    %2929 = vmatpush1.bf16.msra.mxu0 %v2036
    %2930 = vmatprep.subr.bf16.mxu0 0
    %2931 = vmatpush1.bf16.msra.mxu0 %v2037
    %2932 = vmatprep.subr.bf16.mxu0 0
    %2933 = vmatpush1.bf16.msra.mxu0 0
    %2934 = vmatprep.subr.bf16.mxu0 0
    %2935 = vmatpush1.bf16.msra.mxu0 0
    %2936 = vmatprep.subr.bf16.mxu0 0
    %2937 = vmatpush1.bf16.msra.mxu0 0
    %2938 = vmatprep.subr.bf16.mxu0 0
    %2939 = vmatpush1.bf16.msra.mxu0 0
    %2940 = vmatprep.subr.bf16.mxu0 0
    %2941 = vmatpush1.bf16.msra.mxu0 0
    %2942 = vmatprep.subr.bf16.mxu0 0
    %2943 = vmatpush1.bf16.msra.mxu0 0
    %2944 = vmatprep.subr.bf16.mxu0 0
    %2945 = vmatpush1.bf16.msra.mxu0 0
    %2946 = vmatprep.subr.bf16.mxu0 0
    %2947 = vmatpush1.bf16.msra.mxu0 0
    %2948 = vmatprep.subr.bf16.mxu0 0
    %2949 = vmatpush1.bf16.msra.mxu0 0
    %2950 = vmatprep.subr.bf16.mxu0 0
    %2951 = vmatpush1.bf16.msra.mxu0 0
    %2952 = vmatprep.subr.bf16.mxu0 0
    %2953 = vmatpush1.bf16.msra.mxu0 0
    %2954 = vmatprep.subr.bf16.mxu0 0
    %2955 = vmatpush1.bf16.msra.mxu0 0
    %2956 = vmatprep.subr.bf16.mxu0 0
    %2957 = vmatpush1.bf16.msra.mxu0 0
    %2958 = vmatprep.subr.bf16.mxu0 0
    %2959 = vmatpush1.bf16.msra.mxu0 0
    %2960 = vmatprep.mubr.bf16.mxu0 0
    %2961 = vmatmul.mubr.bf16.gmra.mrb[0].mxu0 %v2829
    %v2962 = vpop.f32.mrb[0].mxu0
    %v2963 = vadd.f32 %v2026, %v2962
    %v2964 = vpop.f32.mrb[0].mxu0
    %v2965 = vpop.f32.mrb[0].mxu0
    %v2966 = vpop.f32.mrb[0].mxu0
    %2967 = vdwg.mxu0
    %v2968 = vmul.f32 %v2918, %v2963
    %v2969 = vadd.f32 %v2927, %v2968
    %v2970 = vtanh.pop %v2969
    %v2971 = vsub.f32 1.0, %v2926
    %v2972 = vmul.f32 %v2971, %v2970
    %v2973 = vmul.f32 %v2926, %v2826
    %v2974 = vadd.f32 %v2972, %v2973
    %v2975 = vpack.c.bf16 %v2974, %v2974
    %v2977 = vsel %vm249, %v2975, 0
    %2979 = vmatprep.subr.bf16.mxu0 0
    %2980 = vmatpush1.bf16.msra.mxu0 %v1909
    %2981 = vmatprep.subr.bf16.mxu0 0
    %2982 = vmatpush1.bf16.msra.mxu0 %v1910
    %2983 = vmatprep.subr.bf16.mxu0 0
    %2984 = vmatpush1.bf16.msra.mxu0 0
    %2985 = vmatprep.subr.bf16.mxu0 0
    %2986 = vmatpush1.bf16.msra.mxu0 0
    %2987 = vmatprep.subr.bf16.mxu0 0
    %2988 = vmatpush1.bf16.msra.mxu0 0
    %2989 = vmatprep.subr.bf16.mxu0 0
    %2990 = vmatpush1.bf16.msra.mxu0 0
    %2991 = vmatprep.subr.bf16.mxu0 0
    %2992 = vmatpush1.bf16.msra.mxu0 0
    %2993 = vmatprep.subr.bf16.mxu0 0
    %2994 = vmatpush1.bf16.msra.mxu0 0
    %2995 = vmatprep.subr.bf16.mxu0 0
    %2996 = vmatpush1.bf16.msra.mxu0 0
    %2997 = vmatprep.subr.bf16.mxu0 0
    %2998 = vmatpush1.bf16.msra.mxu0 0
    %2999 = vmatprep.subr.bf16.mxu0 0
    %3000 = vmatpush1.bf16.msra.mxu0 0
    %3001 = vmatprep.subr.bf16.mxu0 0
    %3002 = vmatpush1.bf16.msra.mxu0 0
    %3003 = vmatprep.subr.bf16.mxu0 0
    %3004 = vmatpush1.bf16.msra.mxu0 0
    %3005 = vmatprep.subr.bf16.mxu0 0
    %3006 = vmatpush1.bf16.msra.mxu0 0
    %3007 = vmatprep.subr.bf16.mxu0 0
    %3008 = vmatpush1.bf16.msra.mxu0 0
    %3009 = vmatprep.subr.bf16.mxu0 0
    %3010 = vmatpush1.bf16.msra.mxu0 0
    %3011 = vmatprep.mubr.bf16.mxu0 0
    %3012 = vmatmul.mubr.bf16.gmra.mrb[0].mxu0 %v2977
    %v3013 = vpop.f32.mrb[0].mxu0
    %v3014 = vadd.f32 0.0, %v3013
    %v3015 = vpop.f32.mrb[0].mxu0
    %v3016 = vpop.f32.mrb[0].mxu0
    %v3017 = vpop.f32.mrb[0].mxu0
    %3018 = vdwg.mxu0
    %3019 = vmatprep.subr.bf16.mxu0 0
    %3020 = vmatpush1.bf16.msra.mxu0 %v1961
    %3021 = vmatprep.subr.bf16.mxu0 0
    %3022 = vmatpush1.bf16.msra.mxu0 %v1962
    %3023 = vmatprep.subr.bf16.mxu0 0
    %3024 = vmatpush1.bf16.msra.mxu0 0
    %3025 = vmatprep.subr.bf16.mxu0 0
    %3026 = vmatpush1.bf16.msra.mxu0 0
    %3027 = vmatprep.subr.bf16.mxu0 0
    %3028 = vmatpush1.bf16.msra.mxu0 0
    %3029 = vmatprep.subr.bf16.mxu0 0
    %3030 = vmatpush1.bf16.msra.mxu0 0
    %3031 = vmatprep.subr.bf16.mxu0 0
    %3032 = vmatpush1.bf16.msra.mxu0 0
    %3033 = vmatprep.subr.bf16.mxu0 0
    %3034 = vmatpush1.bf16.msra.mxu0 0
    %3035 = vmatprep.subr.bf16.mxu0 0
    %3036 = vmatpush1.bf16.msra.mxu0 0
    %3037 = vmatprep.subr.bf16.mxu0 0
    %3038 = vmatpush1.bf16.msra.mxu0 0
    %3039 = vmatprep.subr.bf16.mxu0 0
    %3040 = vmatpush1.bf16.msra.mxu0 0
    %3041 = vmatprep.subr.bf16.mxu0 0
    %3042 = vmatpush1.bf16.msra.mxu0 0
    %3043 = vmatprep.subr.bf16.mxu0 0
    %3044 = vmatpush1.bf16.msra.mxu0 0
    %3045 = vmatprep.subr.bf16.mxu0 0
    %3046 = vmatpush1.bf16.msra.mxu0 0
    %3047 = vmatprep.subr.bf16.mxu0 0
    %3048 = vmatpush1.bf16.msra.mxu0 0
    %3049 = vmatprep.subr.bf16.mxu0 0
    %3050 = vmatpush1.bf16.msra.mxu0 0
    %3051 = vmatprep.mubr.bf16.mxu0 0
    %3052 = vmatmul.mubr.bf16.gmra.mrb[0].mxu0 %v2977
    %v3053 = vpop.f32.mrb[0].mxu0
    %v3054 = vadd.f32 0.0, %v3053
    %v3055 = vpop.f32.mrb[0].mxu0
    %v3056 = vpop.f32.mrb[0].mxu0
    %v3057 = vpop.f32.mrb[0].mxu0
    %3058 = vdwg.mxu0
    %v3059 = vld [vmem:[%s1577] sm:$0xff]
    %v3060 = vadd.f32 %v3059, %v3014
    %v3061 = vxor.u32 %v3060, 2147483648
    %v3062 = vmul.f32 %v3061, 1.442695
    %v3063 = vpow.pop %v3062
    %v3064 = vadd.f32 %v3063, 1.0
    %v3065 = vrcp.pop %v3064
    %v3066 = vmul.f32 1.0, %v3065
    %v3067 = vld [vmem:[%s1586] sm:$0xff]
    %v3068 = vadd.f32 %v3067, %v3054
    %v3069 = vxor.u32 %v3068, 2147483648
    %v3070 = vmul.f32 %v3069, 1.442695
    %v3071 = vpow.pop %v3070
    %v3072 = vadd.f32 %v3071, 1.0
    %v3073 = vrcp.pop %v3072
    %v3074 = vmul.f32 1.0, %v3073
    %v3075 = vld [vmem:[%s1595] sm:$0xff]
    %3076 = vmatprep.subr.bf16.mxu0 0
    %3077 = vmatpush1.bf16.msra.mxu0 %v2036
    %3078 = vmatprep.subr.bf16.mxu0 0
    %3079 = vmatpush1.bf16.msra.mxu0 %v2037
    %3080 = vmatprep.subr.bf16.mxu0 0
    %3081 = vmatpush1.bf16.msra.mxu0 0
    %3082 = vmatprep.subr.bf16.mxu0 0
    %3083 = vmatpush1.bf16.msra.mxu0 0
    %3084 = vmatprep.subr.bf16.mxu0 0
    %3085 = vmatpush1.bf16.msra.mxu0 0
    %3086 = vmatprep.subr.bf16.mxu0 0
    %3087 = vmatpush1.bf16.msra.mxu0 0
    %3088 = vmatprep.subr.bf16.mxu0 0
    %3089 = vmatpush1.bf16.msra.mxu0 0
    %3090 = vmatprep.subr.bf16.mxu0 0
    %3091 = vmatpush1.bf16.msra.mxu0 0
    %3092 = vmatprep.subr.bf16.mxu0 0
    %3093 = vmatpush1.bf16.msra.mxu0 0
    %3094 = vmatprep.subr.bf16.mxu0 0
    %3095 = vmatpush1.bf16.msra.mxu0 0
    %3096 = vmatprep.subr.bf16.mxu0 0
    %3097 = vmatpush1.bf16.msra.mxu0 0
    %3098 = vmatprep.subr.bf16.mxu0 0
    %3099 = vmatpush1.bf16.msra.mxu0 0
    %3100 = vmatprep.subr.bf16.mxu0 0
    %3101 = vmatpush1.bf16.msra.mxu0 0
    %3102 = vmatprep.subr.bf16.mxu0 0
    %3103 = vmatpush1.bf16.msra.mxu0 0
    %3104 = vmatprep.subr.bf16.mxu0 0
    %3105 = vmatpush1.bf16.msra.mxu0 0
    %3106 = vmatprep.subr.bf16.mxu0 0
    %3107 = vmatpush1.bf16.msra.mxu0 0
    %3108 = vmatprep.mubr.bf16.mxu0 0
    %3109 = vmatmul.mubr.bf16.gmra.mrb[0].mxu0 %v2977
    %v3110 = vpop.f32.mrb[0].mxu0
    %v3111 = vadd.f32 %v2026, %v3110
    %v3112 = vpop.f32.mrb[0].mxu0
    %v3113 = vpop.f32.mrb[0].mxu0
    %v3114 = vpop.f32.mrb[0].mxu0
    %3115 = vdwg.mxu0
    %v3116 = vmul.f32 %v3066, %v3111
    %v3117 = vadd.f32 %v3075, %v3116
    %v3118 = vtanh.pop %v3117
    %v3119 = vsub.f32 1.0, %v3074
    %v3120 = vmul.f32 %v3119, %v3118
    %v3121 = vmul.f32 %v3074, %v2974
    %v3122 = vadd.f32 %v3120, %v3121
    %v3123 = vpack.c.bf16 %v3122, %v3122
    %v3124 = vld [vmem:[%s17] sm:$0xf]
    %v3125 = vld [vmem:[%s17 + $0x4] sm:$0xf]
    %v3126 = vld [vmem:[%s17 + $0x8] sm:$0xf]
    %v3127 = vld [vmem:[%s17 + $0xc] sm:$0xf]
    %v3128 = vld [vmem:[%s18] sm:$0x1]
    %v3130 = vlaneseq
    %v3131 = vshrl.u32 %v3130, 7
    %v3132 = vsub.s32 0, %v3131
    %v3133 = vrot.slane %v3128, %v3132
    %v3139 = vunpack.c.l.b16 %v3124
    %v3140 = vunpack.c.l.b16 %v3125
    %v3141 = vunpack.c.l.b16 %v3126
    %v3142 = vunpack.c.l.b16 %v3127
    %v3143 = vpack.c.b16 %v3140, %v3139
    %v3144 = vpack.c.b16 %v3142, %v3141
    %v3148 = vsel %vm249, %v3123, 0
    %3150 = vmatprep.subr.bf16.mxu0 0
    %3151 = vmatpush1.bf16.msra.mxu0 %v3143
    %3152 = vmatprep.subr.bf16.mxu0 0
    %3153 = vmatpush1.bf16.msra.mxu0 %v3144
    %3154 = vmatprep.subr.bf16.mxu0 0
    %3155 = vmatpush1.bf16.msra.mxu0 0
    %3156 = vmatprep.subr.bf16.mxu0 0
    %3157 = vmatpush1.bf16.msra.mxu0 0
    %3158 = vmatprep.subr.bf16.mxu0 0
    %3159 = vmatpush1.bf16.msra.mxu0 0
    %3160 = vmatprep.subr.bf16.mxu0 0
    %3161 = vmatpush1.bf16.msra.mxu0 0
    %3162 = vmatprep.subr.bf16.mxu0 0
    %3163 = vmatpush1.bf16.msra.mxu0 0
    %3164 = vmatprep.subr.bf16.mxu0 0
    %3165 = vmatpush1.bf16.msra.mxu0 0
    %3166 = vmatprep.subr.bf16.mxu0 0
    %3167 = vmatpush1.bf16.msra.mxu0 0
    %3168 = vmatprep.subr.bf16.mxu0 0
    %3169 = vmatpush1.bf16.msra.mxu0 0
    %3170 = vmatprep.subr.bf16.mxu0 0
    %3171 = vmatpush1.bf16.msra.mxu0 0
    %3172 = vmatprep.subr.bf16.mxu0 0
    %3173 = vmatpush1.bf16.msra.mxu0 0
    %3174 = vmatprep.subr.bf16.mxu0 0
    %3175 = vmatpush1.bf16.msra.mxu0 0
    %3176 = vmatprep.subr.bf16.mxu0 0
    %3177 = vmatpush1.bf16.msra.mxu0 0
    %3178 = vmatprep.subr.bf16.mxu0 0
    %3179 = vmatpush1.bf16.msra.mxu0 0
    %3180 = vmatprep.subr.bf16.mxu0 0
    %3181 = vmatpush1.bf16.msra.mxu0 0
    %3182 = vmatprep.mubr.bf16.mxu0 0
    %3183 = vmatmul.mubr.bf16.gmra.mrb[0].mxu0 %v3148
    %v3184 = vpop.f32.mrb[0].mxu0
    %v3185 = vadd.f32 %v3133, %v3184
    %v3186 = vpop.f32.mrb[0].mxu0
    %v3187 = vpop.f32.mrb[0].mxu0
    %v3188 = vpop.f32.mrb[0].mxu0
    %3189 = vdwg.mxu0
    %3190 = vst.msk [vmem:[%s19] sm:$0xff] %vm152, %v3185
    // Predicated region
    $region98: #{tpu_custom_call.1} parent=1 // pred_check
      _
    $region99: #{tpu_custom_call.1} parent=1 // pred_check_branch
      %3192 = sbr.rel (0) target = $region101
    $region100: #{tpu_custom_call.1} parent=1 // pred_region
      _
    $region101: #{tpu_custom_call.1} parent=1 // pred_fallthru
      _
    // Predicated region
    $region102: #{tpu_custom_call.1} parent=1 // pred_check
      _
    $region103: #{tpu_custom_call.1} parent=1 // pred_check_branch
      %3194 = sbr.rel (0) target = $region105
    $region104: #{tpu_custom_call.1} parent=1 // pred_region
      _
    $region105: #{tpu_custom_call.1} parent=1 // pred_fallthru
      _
    %3195 = vsyncpa [#allocation7], 1
    %3196 = vsyncpa [#allocation9], 1
    %3197 = vsyncpa [#allocation12], 1

</llo_original>
